<compile_context>
chip_gen: v7x
topology: tpu7x:2x2x1
jax: 0.10.0
libtpu: 0.0.40
codegen_flags: <defaults>
</compile_context>

<pallas_src>
import functools

import jax
import jax.numpy as jnp
from jax.experimental import pallas as pl
from jax.experimental.pallas import tpu as pltpu

# Model dimensions (from DuelingDQN.__init__, useCNN={'use': False, 'dim': DIM})
DIM = 3          # useCNN['dim'] default
H1 = 1024
H2 = 256
H3 = 64
NBR_ACTIONS = 2  # default


def _leaky_relu(v):
    # F.leaky_relu(v, 0.1) == max(v, 0.1*v): mul+max (2 VALU ops) instead of
    # cmp+mul+select on the largest (TB,1024)/(TB,256) activations.
    return jnp.maximum(v, 0.1 * v)


def _round_up(x, m):
    return ((x + m - 1) // m) * m


def _chip_class():
    """Coarse TPU-generation bucket used for tiling / layer-1 dispatch."""
    try:
        kind = jax.devices()[0].device_kind.lower()
    except Exception:
        return "v6e"
    if any(t in kind for t in ("v2", "v3", "v4", "v5")):
        return "v5e"   # older chips: 16 MiB scoped-VMEM default, slower MXU
    if "v7" in kind or "7x" in kind:
        return "v7x"
    return "v6e"


def dueling_dqn_kernel(x_ref,
                       w1_ref, b1_ref,
                       w2_ref, b2_ref,
                       w3_ref, b3_ref,
                       wo_ref, bo_ref,
                       out_ref,
                       *, layer1_on_mxu):
    x = x_ref[...]                                   # (TB, dim) f32
    dim = x.shape[1]

    # ---- layer 1 (dim -> 1024).
    if layer1_on_mxu or dim > 16:
        # v6e/v7x: bf16 MXU matmul (Mosaic pads tiny K); keeps the saturated
        # VALU slot free of ~dim*TB*1024 FMAs and (TB,1)->(TB,1024) broadcasts.
        pre1 = jnp.dot(x.astype(w1_ref.dtype), w1_ref[...],
                       preferred_element_type=jnp.float32) + b1_ref[...]
    else:
        # v5e: the 197 TF/s MXU already carries the 1024x256 matmul; do `dim`
        # broadcasted VPU FMAs instead of a K-padded MXU pass.
        w1 = w1_ref[...]                             # (dim, H1) f32
        pre1 = x[:, 0:1] * w1[0:1, :]
        for d in range(1, dim):
            pre1 = pre1 + x[:, d:d + 1] * w1[d:d + 1, :]
        pre1 = pre1 + b1_ref[...]
    h1 = _leaky_relu(pre1)

    # ---- layers 2/3 on the MXU: bf16 x bf16 inputs, f32 accumulate.
    h2 = _leaky_relu(
        jnp.dot(h1.astype(w2_ref.dtype), w2_ref[...],
                preferred_element_type=jnp.float32) + b2_ref[...])
    fx = _leaky_relu(
        jnp.dot(h2.astype(w3_ref.dtype), w3_ref[...],
                preferred_element_type=jnp.float32) + b3_ref[...])

    # ---- dueling head: v + a - mean(a) is linear in fx, so the combine is
    # folded into (wo, bo) wrapper-side.  Single (H3, A) matmul, no epilogue.
    # TODO(synk): if profiling shows the narrow (TB, A) store as exposed
    # writeback, emit the output lane-dense ((A, TB) transposed) instead.
    out_ref[...] = (jnp.dot(fx.astype(wo_ref.dtype), wo_ref[...],
                            preferred_element_type=jnp.float32)
                    + bo_ref[...]).astype(out_ref.dtype)


def _default_tile_b(batch, chip):
    b8 = _round_up(max(batch, 1), 8)
    if chip == "v7x":
        if b8 < 256:
            return b8
        # Even number of grid steps so both TensorCores get whole tiles;
        # tiles capped at 1024 rows (only 64 MiB VMEM per TC on v7x).
        steps = 2 * pl.cdiv(b8, 2 * 1024)
        return _round_up(pl.cdiv(b8, steps), 8)
    if chip == "v6e":
        # Per-grid-step overhead ~0.35us against ~1-2us of per-tile work:
        # prefer big tiles; 32 MiB scoped default easily holds TB=1024.
        return min(2048 if b8 >= 8192 else 1024, b8)
    # v5e / older: keep the (TB,1024) h1 slab inside the 16 MiB scoped default.
    return min(512, b8)


def _vmem_estimate(tile_b, dim, d1, d2, d3, n_act, wbytes, l1_wbytes, weight_bufs):
    io = 2 * 4 * tile_b * (dim + n_act)                         # dbl-buffered x / out
    inter = tile_b * ((4 + wbytes) * (d1 + d2 + d3) + 4 * n_act)  # f32 + bf16 copies
    wts = (l1_wbytes * dim * d1
           + wbytes * (d1 * d2 + d2 * d3 + d3 * n_act)
           + 4 * (d1 + d2 + d3 + n_act))
    return io + inter + weight_bufs * wts


def dueling_dqn_forward(x, params, *, tile_b=None, weight_dtype=jnp.bfloat16,
                        layer1_on_mxu=None, chip=None):
    batch, dim = x.shape
    d1 = params["w1"].shape[1]
    d2 = params["w2"].shape[1]
    d3 = params["w3"].shape[1]
    n_act = params["wa"].shape[1]

    if chip is None:
        chip = _chip_class()
    if layer1_on_mxu is None:
        layer1_on_mxu = chip in ("v6e", "v7x")
    if tile_b is None:
        tile_b = _default_tile_b(batch, chip)
    assert tile_b % 8 == 0, "tile_b must be a multiple of 8 (f32 sublane)"

    # Ragged batches: no wrapper-side zero-pad copy.  The last tile is partial;
    # OOB tail rows hold unspecified data, but every op here is row-wise
    # independent and the masked output DMA drops the tail rows.
    grid = (pl.cdiv(batch, tile_b),)
    b_work = grid[0] * tile_b

    # Fold the dueling combine (linear in fx) into the head weights:
    #   out[:, j] = fx @ (wv + wa[:, j] - mean_k wa[:, k]) + (bv + ba[j] - mean ba)
    wv, bv, wa, ba = params["wv"], params["bv"], params["wa"], params["ba"]
    w_out = (wv + wa - jnp.mean(wa, axis=1, keepdims=True)).astype(weight_dtype)
    b_out = bv + ba - jnp.mean(ba, axis=1, keepdims=True)      # stays f32

    b1, b2, b3 = params["b1"], params["b2"], params["b3"]
    w2 = params["w2"].astype(weight_dtype)
    w3 = params["w3"].astype(weight_dtype)

    def batch_map(i):
        return (i, 0)

    def rep_map(i):
        return (0, 0)

    def build_and_run(l1_mxu, single_buffer_weights):
        # Layer-1 weight dtype follows its compute path (bf16 MXU vs f32 VPU).
        w1 = params["w1"].astype(weight_dtype if l1_mxu else jnp.float32)
        weights = (w1, b1, w2, b2, w3, b3, w_out, b_out)

        # Grid-invariant weights: constant index_map so they are not re-fetched
        # per step; request single buffering to halve their VMEM footprint.
        if single_buffer_weights:
            w_specs = [pl.BlockSpec(w.shape, rep_map,
                                    pipeline_mode=pl.Buffered(buffer_count=1))
                       for w in weights]
        else:
            w_specs = [pl.BlockSpec(w.shape, rep_map) for w in weights]

        wbytes = jnp.dtype(weight_dtype).itemsize
        vmem_est = _vmem_estimate(tile_b, dim, d1, d2, d3, n_act, wbytes,
                                  wbytes if l1_mxu else 4,
                                  1 if single_buffer_weights else 2)
        default_scoped = (16 if chip == "v5e" else 32) * 1024 * 1024
        clamp = (48 if chip == "v7x" else 64) * 1024 * 1024
        vmem_limit = None
        if vmem_est > int(0.8 * default_scoped):
            vmem_limit = min(max(int(1.25 * vmem_est), default_scoped), clamp)

        flops = 2 * b_work * (dim * d1 + d1 * d2 + d2 * d3 + d3 * n_act)
        bytes_accessed = (batch * dim * 4
                          + sum(int(w.size) * w.dtype.itemsize for w in weights)
                          + batch * n_act * 4)

        kernel = functools.partial(dueling_dqn_kernel, layer1_on_mxu=l1_mxu)
        out = pl.pallas_call(
            kernel,
            out_shape=jax.ShapeDtypeStruct((batch, n_act), jnp.float32),
            grid_spec=pltpu.PrefetchScalarGridSpec(
                num_scalar_prefetch=0,
                grid=grid,
                in_specs=[pl.BlockSpec((tile_b, dim), batch_map)] + w_specs,
                out_specs=pl.BlockSpec((tile_b, n_act), batch_map),
            ),
            compiler_params=pltpu.CompilerParams(
                dimension_semantics=("parallel",),
                vmem_limit_bytes=vmem_limit),
            cost_estimate=pl.CostEstimate(
                flops=flops, transcendentals=0, bytes_accessed=bytes_accessed),
        )(x, *weights)
        return jax.block_until_ready(out)

    # Preference ladder: single-buffered weights + requested layer-1 path first,
    # then progressively more conservative configs so the call stays runnable
    # even if pipeline_mode=Buffered(1) or the K=3 bf16 matmul is unsupported
    # on this backend/jax version.  (Numerical drift between the l1 paths is
    # O(bf16 eps) and inside the test tolerance.)
    attempts = [(layer1_on_mxu, True), (layer1_on_mxu, False)]
    if layer1_on_mxu:
        attempts.append((False, False))
    last_err = None
    for l1_mxu, single_buf in attempts:
        try:
            return build_and_run(l1_mxu, single_buf)
        except Exception as e:          # fall back to the next configuration
            last_err = e
    raise last_err


def init_params(key):
    """Deterministic synthetic parameters (shapes from DuelingDQN.__init__)."""
    keys = jax.random.split(key, 10)

    def lin(kw, kb, fan_in, fan_out):
        bound = 1.0 / jnp.sqrt(fan_in)
        # stored as (in, out) — pre-transposed relative to torch's (out, in)
        w = jax.random.uniform(kw, (fan_in, fan_out), jnp.float32, -bound, bound)
        b = jax.random.uniform(kb, (1, fan_out), jnp.float32, -bound, bound)
        return w, b

    w1, b1 = lin(keys[0], keys[1], DIM, H1)
    w2, b2 = lin(keys[2], keys[3], H1, H2)
    w3, b3 = lin(keys[4], keys[5], H2, H3)
    wv, bv = lin(keys[6], keys[7], H3, 1)
    wa, ba = lin(keys[8], keys[9], H3, NBR_ACTIONS)
    return dict(w1=w1, b1=b1, w2=w2, b2=b2, w3=w3, b3=b3,
                wv=wv, bv=bv, wa=wa, ba=ba)


def reference_forward(x, p, *, weight_dtype=jnp.float32, layer1_on_mxu=False):
    """Pure-JAX reference of the PyTorch MLP forward.  `weight_dtype` and
    `layer1_on_mxu` mirror the kernel's bf16 rounding of MXU inputs; the
    dueling combine is folded exactly like the kernel wrapper does."""
    hp = jax.lax.Precision.HIGHEST

    def q(v):  # mirror bf16 rounding, then do exact-f32 math
        return v.astype(weight_dtype).astype(jnp.float32)

    if layer1_on_mxu:
        pre1 = jnp.dot(q(x), q(p["w1"]), precision=hp) + p["b1"]
    else:
        pre1 = jnp.dot(x, p["w1"], precision=hp) + p["b1"]
    h1 = _leaky_relu(pre1)
    h2 = _leaky_relu(jnp.dot(q(h1), q(p["w2"]), precision=hp) + p["b2"])
    fx = _leaky_relu(jnp.dot(q(h2), q(p["w3"]), precision=hp) + p["b3"])
    w_out = p["wv"] + p["wa"] - jnp.mean(p["wa"], axis=1, keepdims=True)
    b_out = p["bv"] + p["ba"] - jnp.mean(p["ba"], axis=1, keepdims=True)
    return jnp.dot(q(fx), q(w_out), precision=hp) + b_out


if __name__ == "__main__":
    key = jax.random.PRNGKey(0)
    k_x, k_p = jax.random.split(key)

    params = init_params(k_p)

    chip = _chip_class()
    l1_mxu = chip in ("v6e", "v7x")

    for batch in (8, 6):   # batch=6 exercises the ragged (partial tile) path
        x = jax.random.normal(jax.random.fold_in(k_x, batch), (batch, DIM),
                              dtype=jnp.float32)
        out = jax.block_until_ready(
            dueling_dqn_forward(x, params, layer1_on_mxu=l1_mxu, chip=chip))
        ref = reference_forward(x, params, weight_dtype=jnp.bfloat16,
                                layer1_on_mxu=l1_mxu)
        assert out.shape == (batch, NBR_ACTIONS)
        assert jnp.allclose(out, ref, atol=5e-3, rtol=5e-3), \
            float(jnp.max(jnp.abs(out - ref)))

    print("KERNEL_OK")
</pallas_src>

<mosaic_0001>
module attributes {stable_mosaic.version = 11 : i64} {
  func.func @dueling_dqn_kernel(%arg0: i32, %arg1: memref<8x3xf32, #tpu.memory_space<vmem>>, %arg2: memref<3x1024xbf16, #tpu.memory_space<vmem>>, %arg3: memref<1x1024xf32, #tpu.memory_space<vmem>>, %arg4: memref<1024x256xbf16, #tpu.memory_space<vmem>>, %arg5: memref<1x256xf32, #tpu.memory_space<vmem>>, %arg6: memref<256x64xbf16, #tpu.memory_space<vmem>>, %arg7: memref<1x64xf32, #tpu.memory_space<vmem>>, %arg8: memref<64x2xbf16, #tpu.memory_space<vmem>>, %arg9: memref<1x2xf32, #tpu.memory_space<vmem>>, %arg10: memref<8x2xf32, #tpu.memory_space<vmem>>) attributes {dimension_semantics = [#tpu.dimension_semantics<parallel>], iteration_bounds = array<i64: 1>, scalar_prefetch = 0 : i64, scratch_operands = 0 : i64, tpu.core_type = #tpu.core_type<tc>, window_params = [{transform_indices = @transform_0, window_bounds = array<i64: 8, 3>}, {pipeline_mode = #tpu.pipeline_mode<synchronous>, transform_indices = @transform_1, window_bounds = array<i64: 3, 1024>}, {pipeline_mode = #tpu.pipeline_mode<synchronous>, transform_indices = @transform_2, window_bounds = array<i64: 1, 1024>}, {pipeline_mode = #tpu.pipeline_mode<synchronous>, transform_indices = @transform_3, window_bounds = array<i64: 1024, 256>}, {pipeline_mode = #tpu.pipeline_mode<synchronous>, transform_indices = @transform_4, window_bounds = array<i64: 1, 256>}, {pipeline_mode = #tpu.pipeline_mode<synchronous>, transform_indices = @transform_5, window_bounds = array<i64: 256, 64>}, {pipeline_mode = #tpu.pipeline_mode<synchronous>, transform_indices = @transform_6, window_bounds = array<i64: 1, 64>}, {pipeline_mode = #tpu.pipeline_mode<synchronous>, transform_indices = @transform_7, window_bounds = array<i64: 64, 2>}, {pipeline_mode = #tpu.pipeline_mode<synchronous>, transform_indices = @transform_8, window_bounds = array<i64: 1, 2>}, {transform_indices = @transform_9, window_bounds = array<i64: 8, 2>}]} {
    %c0 = arith.constant 0 : index
    %c0_0 = arith.constant 0 : index
    %0 = vector.load %arg1[%c0, %c0_0] : memref<8x3xf32, #tpu.memory_space<vmem>>, vector<8x3xf32>
    %1 = arith.truncf %0 : vector<8x3xf32> to vector<8x3xbf16>
    %c0_1 = arith.constant 0 : index
    %c0_2 = arith.constant 0 : index
    %2 = vector.load %arg2[%c0_1, %c0_2] : memref<3x1024xbf16, #tpu.memory_space<vmem>>, vector<3x1024xbf16>
    %cst = arith.constant dense<0.000000e+00> : vector<8x1024xf32>
    %3 = tpu.matmul %1, %2, %cst {dimension_numbers = #tpu.dot_dimension_numbers<[1], [0], [0], [1], [0, 0, 1, 1], [], []>} : vector<8x3xbf16>, vector<3x1024xbf16>, vector<8x1024xf32> -> vector<8x1024xf32>
    %c0_3 = arith.constant 0 : index
    %c0_4 = arith.constant 0 : index
    %4 = vector.load %arg3[%c0_3, %c0_4] : memref<1x1024xf32, #tpu.memory_space<vmem>>, vector<1x1024xf32>
    %5 = vector.broadcast %4 : vector<1x1024xf32> to vector<8x1024xf32>
    %6 = arith.addf %3, %5 : vector<8x1024xf32>
    %cst_5 = arith.constant 1.000000e-01 : f32
    %7 = vector.broadcast %cst_5 : f32 to vector<8x1024xf32>
    %8 = arith.mulf %7, %6 : vector<8x1024xf32>
    %9 = arith.maximumf %6, %8 : vector<8x1024xf32>
    %10 = arith.truncf %9 : vector<8x1024xf32> to vector<8x1024xbf16>
    %c0_6 = arith.constant 0 : index
    %c0_7 = arith.constant 0 : index
    %11 = vector.load %arg4[%c0_6, %c0_7] : memref<1024x256xbf16, #tpu.memory_space<vmem>>, vector<1024x256xbf16>
    %cst_8 = arith.constant dense<0.000000e+00> : vector<8x256xf32>
    %12 = tpu.matmul %10, %11, %cst_8 {dimension_numbers = #tpu.dot_dimension_numbers<[1], [0], [0], [1], [0, 0, 1, 1], [], []>} : vector<8x1024xbf16>, vector<1024x256xbf16>, vector<8x256xf32> -> vector<8x256xf32>
    %c0_9 = arith.constant 0 : index
    %c0_10 = arith.constant 0 : index
    %13 = vector.load %arg5[%c0_9, %c0_10] : memref<1x256xf32, #tpu.memory_space<vmem>>, vector<1x256xf32>
    %14 = vector.broadcast %13 : vector<1x256xf32> to vector<8x256xf32>
    %15 = arith.addf %12, %14 : vector<8x256xf32>
    %cst_11 = arith.constant 1.000000e-01 : f32
    %16 = vector.broadcast %cst_11 : f32 to vector<8x256xf32>
    %17 = arith.mulf %16, %15 : vector<8x256xf32>
    %18 = arith.maximumf %15, %17 : vector<8x256xf32>
    %19 = arith.truncf %18 : vector<8x256xf32> to vector<8x256xbf16>
    %c0_12 = arith.constant 0 : index
    %c0_13 = arith.constant 0 : index
    %20 = vector.load %arg6[%c0_12, %c0_13] : memref<256x64xbf16, #tpu.memory_space<vmem>>, vector<256x64xbf16>
    %cst_14 = arith.constant dense<0.000000e+00> : vector<8x64xf32>
    %21 = tpu.matmul %19, %20, %cst_14 {dimension_numbers = #tpu.dot_dimension_numbers<[1], [0], [0], [1], [0, 0, 1, 1], [], []>} : vector<8x256xbf16>, vector<256x64xbf16>, vector<8x64xf32> -> vector<8x64xf32>
    %c0_15 = arith.constant 0 : index
    %c0_16 = arith.constant 0 : index
    %22 = vector.load %arg7[%c0_15, %c0_16] : memref<1x64xf32, #tpu.memory_space<vmem>>, vector<1x64xf32>
    %23 = vector.broadcast %22 : vector<1x64xf32> to vector<8x64xf32>
    %24 = arith.addf %21, %23 : vector<8x64xf32>
    %cst_17 = arith.constant 1.000000e-01 : f32
    %25 = vector.broadcast %cst_17 : f32 to vector<8x64xf32>
    %26 = arith.mulf %25, %24 : vector<8x64xf32>
    %27 = arith.maximumf %24, %26 : vector<8x64xf32>
    %28 = arith.truncf %27 : vector<8x64xf32> to vector<8x64xbf16>
    %c0_18 = arith.constant 0 : index
    %c0_19 = arith.constant 0 : index
    %29 = vector.load %arg8[%c0_18, %c0_19] : memref<64x2xbf16, #tpu.memory_space<vmem>>, vector<64x2xbf16>
    %cst_20 = arith.constant dense<0.000000e+00> : vector<8x2xf32>
    %30 = tpu.matmul %28, %29, %cst_20 {dimension_numbers = #tpu.dot_dimension_numbers<[1], [0], [0], [1], [0, 0, 1, 1], [], []>} : vector<8x64xbf16>, vector<64x2xbf16>, vector<8x2xf32> -> vector<8x2xf32>
    %c0_21 = arith.constant 0 : index
    %c0_22 = arith.constant 0 : index
    %31 = vector.load %arg9[%c0_21, %c0_22] : memref<1x2xf32, #tpu.memory_space<vmem>>, vector<1x2xf32>
    %32 = vector.broadcast %31 : vector<1x2xf32> to vector<8x2xf32>
    %33 = arith.addf %30, %32 : vector<8x2xf32>
    %c0_23 = arith.constant 0 : index
    %c0_24 = arith.constant 0 : index
    %34 = vector.load %arg10[%c0_23, %c0_24] : memref<8x2xf32, #tpu.memory_space<vmem>>, vector<8x2xf32>
    tpu.vector_store %arg10[%c0_23, %c0_24], %33 {strides = array<i32>} : memref<8x2xf32, #tpu.memory_space<vmem>>, vector<8x2xf32>,
    return
  }
  func.func @transform_0(%arg0: i32) -> (i32, i32) {
    %c0_i32 = arith.constant 0 : i32
    %c0_i32_0 = arith.constant 0 : i32
    return %arg0, %c0_i32 : i32, i32
  }
  func.func @transform_1(%arg0: i32) -> (i32, i32) {
    %c0_i32 = arith.constant 0 : i32
    %c0_i32_0 = arith.constant 0 : i32
    %c0_i32_1 = arith.constant 0 : i32
    return %c0_i32, %c0_i32_0 : i32, i32
  }
  func.func @transform_2(%arg0: i32) -> (i32, i32) {
    %c0_i32 = arith.constant 0 : i32
    %c0_i32_0 = arith.constant 0 : i32
    %c0_i32_1 = arith.constant 0 : i32
    return %c0_i32, %c0_i32_0 : i32, i32
  }
  func.func @transform_3(%arg0: i32) -> (i32, i32) {
    %c0_i32 = arith.constant 0 : i32
    %c0_i32_0 = arith.constant 0 : i32
    %c0_i32_1 = arith.constant 0 : i32
    return %c0_i32, %c0_i32_0 : i32, i32
  }
  func.func @transform_4(%arg0: i32) -> (i32, i32) {
    %c0_i32 = arith.constant 0 : i32
    %c0_i32_0 = arith.constant 0 : i32
    %c0_i32_1 = arith.constant 0 : i32
    return %c0_i32, %c0_i32_0 : i32, i32
  }
  func.func @transform_5(%arg0: i32) -> (i32, i32) {
    %c0_i32 = arith.constant 0 : i32
    %c0_i32_0 = arith.constant 0 : i32
    %c0_i32_1 = arith.constant 0 : i32
    return %c0_i32, %c0_i32_0 : i32, i32
  }
  func.func @transform_6(%arg0: i32) -> (i32, i32) {
    %c0_i32 = arith.constant 0 : i32
    %c0_i32_0 = arith.constant 0 : i32
    %c0_i32_1 = arith.constant 0 : i32
    return %c0_i32, %c0_i32_0 : i32, i32
  }
  func.func @transform_7(%arg0: i32) -> (i32, i32) {
    %c0_i32 = arith.constant 0 : i32
    %c0_i32_0 = arith.constant 0 : i32
    %c0_i32_1 = arith.constant 0 : i32
    return %c0_i32, %c0_i32_0 : i32, i32
  }
  func.func @transform_8(%arg0: i32) -> (i32, i32) {
    %c0_i32 = arith.constant 0 : i32
    %c0_i32_0 = arith.constant 0 : i32
    %c0_i32_1 = arith.constant 0 : i32
    return %c0_i32, %c0_i32_0 : i32, i32
  }
  func.func @transform_9(%arg0: i32) -> (i32, i32) {
    %c0_i32 = arith.constant 0 : i32
    %c0_i32_0 = arith.constant 0 : i32
    return %arg0, %c0_i32 : i32, i32
  }
}

module attributes {stable_mosaic.version = 11 : i64} {
  func.func @dueling_dqn_kernel(%arg0: i32, %arg1: memref<8x3xf32, #tpu.memory_space<vmem>>, %arg2: memref<3x1024xbf16, #tpu.memory_space<vmem>>, %arg3: memref<1x1024xf32, #tpu.memory_space<vmem>>, %arg4: memref<1024x256xbf16, #tpu.memory_space<vmem>>, %arg5: memref<1x256xf32, #tpu.memory_space<vmem>>, %arg6: memref<256x64xbf16, #tpu.memory_space<vmem>>, %arg7: memref<1x64xf32, #tpu.memory_space<vmem>>, %arg8: memref<64x2xbf16, #tpu.memory_space<vmem>>, %arg9: memref<1x2xf32, #tpu.memory_space<vmem>>, %arg10: memref<8x2xf32, #tpu.memory_space<vmem>>) attributes {dimension_semantics = [#tpu.dimension_semantics<parallel>], iteration_bounds = array<i64: 1>, scalar_prefetch = 0 : i64, scratch_operands = 0 : i64, tpu.core_type = #tpu.core_type<tc>, window_params = [{transform_indices = @transform_0, window_bounds = array<i64: 8, 3>}, {pipeline_mode = #tpu.pipeline_mode<synchronous>, transform_indices = @transform_1, window_bounds = array<i64: 3, 1024>}, {pipeline_mode = #tpu.pipeline_mode<synchronous>, transform_indices = @transform_2, window_bounds = array<i64: 1, 1024>}, {pipeline_mode = #tpu.pipeline_mode<synchronous>, transform_indices = @transform_3, window_bounds = array<i64: 1024, 256>}, {pipeline_mode = #tpu.pipeline_mode<synchronous>, transform_indices = @transform_4, window_bounds = array<i64: 1, 256>}, {pipeline_mode = #tpu.pipeline_mode<synchronous>, transform_indices = @transform_5, window_bounds = array<i64: 256, 64>}, {pipeline_mode = #tpu.pipeline_mode<synchronous>, transform_indices = @transform_6, window_bounds = array<i64: 1, 64>}, {pipeline_mode = #tpu.pipeline_mode<synchronous>, transform_indices = @transform_7, window_bounds = array<i64: 64, 2>}, {pipeline_mode = #tpu.pipeline_mode<synchronous>, transform_indices = @transform_8, window_bounds = array<i64: 1, 2>}, {transform_indices = @transform_9, window_bounds = array<i64: 8, 2>}]} {
    %c0 = arith.constant 0 : index
    %c0_0 = arith.constant 0 : index
    %0 = vector.load %arg1[%c0, %c0_0] : memref<8x3xf32, #tpu.memory_space<vmem>>, vector<8x3xf32>
    %1 = arith.truncf %0 : vector<8x3xf32> to vector<8x3xbf16>
    %c0_1 = arith.constant 0 : index
    %c0_2 = arith.constant 0 : index
    %2 = vector.load %arg2[%c0_1, %c0_2] : memref<3x1024xbf16, #tpu.memory_space<vmem>>, vector<3x1024xbf16>
    %cst = arith.constant dense<0.000000e+00> : vector<8x1024xf32>
    %3 = tpu.matmul %1, %2, %cst {dimension_numbers = #tpu.dot_dimension_numbers<[1], [0], [0], [1], [0, 0, 1, 1], [], []>} : vector<8x3xbf16>, vector<3x1024xbf16>, vector<8x1024xf32> -> vector<8x1024xf32>
    %c0_3 = arith.constant 0 : index
    %c0_4 = arith.constant 0 : index
    %4 = vector.load %arg3[%c0_3, %c0_4] : memref<1x1024xf32, #tpu.memory_space<vmem>>, vector<1x1024xf32>
    %5 = vector.broadcast %4 : vector<1x1024xf32> to vector<8x1024xf32>
    %6 = arith.addf %3, %5 : vector<8x1024xf32>
    %cst_5 = arith.constant 1.000000e-01 : f32
    %7 = vector.broadcast %cst_5 : f32 to vector<8x1024xf32>
    %8 = arith.mulf %7, %6 : vector<8x1024xf32>
    %9 = arith.maximumf %6, %8 : vector<8x1024xf32>
    %10 = arith.truncf %9 : vector<8x1024xf32> to vector<8x1024xbf16>
    %c0_6 = arith.constant 0 : index
    %c0_7 = arith.constant 0 : index
    %11 = vector.load %arg4[%c0_6, %c0_7] : memref<1024x256xbf16, #tpu.memory_space<vmem>>, vector<1024x256xbf16>
    %cst_8 = arith.constant dense<0.000000e+00> : vector<8x256xf32>
    %12 = tpu.matmul %10, %11, %cst_8 {dimension_numbers = #tpu.dot_dimension_numbers<[1], [0], [0], [1], [0, 0, 1, 1], [], []>} : vector<8x1024xbf16>, vector<1024x256xbf16>, vector<8x256xf32> -> vector<8x256xf32>
    %c0_9 = arith.constant 0 : index
    %c0_10 = arith.constant 0 : index
    %13 = vector.load %arg5[%c0_9, %c0_10] : memref<1x256xf32, #tpu.memory_space<vmem>>, vector<1x256xf32>
    %14 = vector.broadcast %13 : vector<1x256xf32> to vector<8x256xf32>
    %15 = arith.addf %12, %14 : vector<8x256xf32>
    %cst_11 = arith.constant 1.000000e-01 : f32
    %16 = vector.broadcast %cst_11 : f32 to vector<8x256xf32>
    %17 = arith.mulf %16, %15 : vector<8x256xf32>
    %18 = arith.maximumf %15, %17 : vector<8x256xf32>
    %19 = arith.truncf %18 : vector<8x256xf32> to vector<8x256xbf16>
    %c0_12 = arith.constant 0 : index
    %c0_13 = arith.constant 0 : index
    %20 = vector.load %arg6[%c0_12, %c0_13] : memref<256x64xbf16, #tpu.memory_space<vmem>>, vector<256x64xbf16>
    %cst_14 = arith.constant dense<0.000000e+00> : vector<8x64xf32>
    %21 = tpu.matmul %19, %20, %cst_14 {dimension_numbers = #tpu.dot_dimension_numbers<[1], [0], [0], [1], [0, 0, 1, 1], [], []>} : vector<8x256xbf16>, vector<256x64xbf16>, vector<8x64xf32> -> vector<8x64xf32>
    %c0_15 = arith.constant 0 : index
    %c0_16 = arith.constant 0 : index
    %22 = vector.load %arg7[%c0_15, %c0_16] : memref<1x64xf32, #tpu.memory_space<vmem>>, vector<1x64xf32>
    %23 = vector.broadcast %22 : vector<1x64xf32> to vector<8x64xf32>
    %24 = arith.addf %21, %23 : vector<8x64xf32>
    %cst_17 = arith.constant 1.000000e-01 : f32
    %25 = vector.broadcast %cst_17 : f32 to vector<8x64xf32>
    %26 = arith.mulf %25, %24 : vector<8x64xf32>
    %27 = arith.maximumf %24, %26 : vector<8x64xf32>
    %28 = arith.truncf %27 : vector<8x64xf32> to vector<8x64xbf16>
    %c0_18 = arith.constant 0 : index
    %c0_19 = arith.constant 0 : index
    %29 = vector.load %arg8[%c0_18, %c0_19] : memref<64x2xbf16, #tpu.memory_space<vmem>>, vector<64x2xbf16>
    %cst_20 = arith.constant dense<0.000000e+00> : vector<8x2xf32>
    %30 = tpu.matmul %28, %29, %cst_20 {dimension_numbers = #tpu.dot_dimension_numbers<[1], [0], [0], [1], [0, 0, 1, 1], [], []>} : vector<8x64xbf16>, vector<64x2xbf16>, vector<8x2xf32> -> vector<8x2xf32>
    %c0_21 = arith.constant 0 : index
    %c0_22 = arith.constant 0 : index
    %31 = vector.load %arg9[%c0_21, %c0_22] : memref<1x2xf32, #tpu.memory_space<vmem>>, vector<1x2xf32>
    %32 = vector.broadcast %31 : vector<1x2xf32> to vector<8x2xf32>
    %33 = arith.addf %30, %32 : vector<8x2xf32>
    %c0_23 = arith.constant 0 : index
    %c0_24 = arith.constant 0 : index
    %34 = vector.load %arg10[%c0_23, %c0_24] : memref<8x2xf32, #tpu.memory_space<vmem>>, vector<8x2xf32>
    tpu.vector_store %arg10[%c0_23, %c0_24], %33 {strides = array<i32>} : memref<8x2xf32, #tpu.memory_space<vmem>>, vector<8x2xf32>,
    return
  }
  func.func @transform_0(%arg0: i32) -> (i32, i32) {
    %c0_i32 = arith.constant 0 : i32
    %c0_i32_0 = arith.constant 0 : i32
    return %arg0, %c0_i32 : i32, i32
  }
  func.func @transform_1(%arg0: i32) -> (i32, i32) {
    %c0_i32 = arith.constant 0 : i32
    %c0_i32_0 = arith.constant 0 : i32
    %c0_i32_1 = arith.constant 0 : i32
    return %c0_i32, %c0_i32_0 : i32, i32
  }
  func.func @transform_2(%arg0: i32) -> (i32, i32) {
    %c0_i32 = arith.constant 0 : i32
    %c0_i32_0 = arith.constant 0 : i32
    %c0_i32_1 = arith.constant 0 : i32
    return %c0_i32, %c0_i32_0 : i32, i32
  }
  func.func @transform_3(%arg0: i32) -> (i32, i32) {
    %c0_i32 = arith.constant 0 : i32
    %c0_i32_0 = arith.constant 0 : i32
    %c0_i32_1 = arith.constant 0 : i32
    return %c0_i32, %c0_i32_0 : i32, i32
  }
  func.func @transform_4(%arg0: i32) -> (i32, i32) {
    %c0_i32 = arith.constant 0 : i32
    %c0_i32_0 = arith.constant 0 : i32
    %c0_i32_1 = arith.constant 0 : i32
    return %c0_i32, %c0_i32_0 : i32, i32
  }
  func.func @transform_5(%arg0: i32) -> (i32, i32) {
    %c0_i32 = arith.constant 0 : i32
    %c0_i32_0 = arith.constant 0 : i32
    %c0_i32_1 = arith.constant 0 : i32
    return %c0_i32, %c0_i32_0 : i32, i32
  }
  func.func @transform_6(%arg0: i32) -> (i32, i32) {
    %c0_i32 = arith.constant 0 : i32
    %c0_i32_0 = arith.constant 0 : i32
    %c0_i32_1 = arith.constant 0 : i32
    return %c0_i32, %c0_i32_0 : i32, i32
  }
  func.func @transform_7(%arg0: i32) -> (i32, i32) {
    %c0_i32 = arith.constant 0 : i32
    %c0_i32_0 = arith.constant 0 : i32
    %c0_i32_1 = arith.constant 0 : i32
    return %c0_i32, %c0_i32_0 : i32, i32
  }
  func.func @transform_8(%arg0: i32) -> (i32, i32) {
    %c0_i32 = arith.constant 0 : i32
    %c0_i32_0 = arith.constant 0 : i32
    %c0_i32_1 = arith.constant 0 : i32
    return %c0_i32, %c0_i32_0 : i32, i32
  }
  func.func @transform_9(%arg0: i32) -> (i32, i32) {
    %c0_i32 = arith.constant 0 : i32
    %c0_i32_0 = arith.constant 0 : i32
    return %arg0, %c0_i32 : i32, i32
  }
}

module attributes {stable_mosaic.version = 11 : i64} {
  func.func @dueling_dqn_kernel(%arg0: i32, %arg1: memref<8x3xf32, #tpu.memory_space<vmem>>, %arg2: memref<3x1024xf32, #tpu.memory_space<vmem>>, %arg3: memref<1x1024xf32, #tpu.memory_space<vmem>>, %arg4: memref<1024x256xbf16, #tpu.memory_space<vmem>>, %arg5: memref<1x256xf32, #tpu.memory_space<vmem>>, %arg6: memref<256x64xbf16, #tpu.memory_space<vmem>>, %arg7: memref<1x64xf32, #tpu.memory_space<vmem>>, %arg8: memref<64x2xbf16, #tpu.memory_space<vmem>>, %arg9: memref<1x2xf32, #tpu.memory_space<vmem>>, %arg10: memref<8x2xf32, #tpu.memory_space<vmem>>) attributes {dimension_semantics = [#tpu.dimension_semantics<parallel>], iteration_bounds = array<i64: 1>, scalar_prefetch = 0 : i64, scratch_operands = 0 : i64, tpu.core_type = #tpu.core_type<tc>, window_params = [{transform_indices = @transform_0, window_bounds = array<i64: 8, 3>}, {pipeline_mode = #tpu.pipeline_mode<synchronous>, transform_indices = @transform_1, window_bounds = array<i64: 3, 1024>}, {pipeline_mode = #tpu.pipeline_mode<synchronous>, transform_indices = @transform_2, window_bounds = array<i64: 1, 1024>}, {pipeline_mode = #tpu.pipeline_mode<synchronous>, transform_indices = @transform_3, window_bounds = array<i64: 1024, 256>}, {pipeline_mode = #tpu.pipeline_mode<synchronous>, transform_indices = @transform_4, window_bounds = array<i64: 1, 256>}, {pipeline_mode = #tpu.pipeline_mode<synchronous>, transform_indices = @transform_5, window_bounds = array<i64: 256, 64>}, {pipeline_mode = #tpu.pipeline_mode<synchronous>, transform_indices = @transform_6, window_bounds = array<i64: 1, 64>}, {pipeline_mode = #tpu.pipeline_mode<synchronous>, transform_indices = @transform_7, window_bounds = array<i64: 64, 2>}, {pipeline_mode = #tpu.pipeline_mode<synchronous>, transform_indices = @transform_8, window_bounds = array<i64: 1, 2>}, {transform_indices = @transform_9, window_bounds = array<i64: 8, 2>}]} {
    %c0 = arith.constant 0 : index
    %c0_0 = arith.constant 0 : index
    %0 = vector.load %arg1[%c0, %c0_0] : memref<8x3xf32, #tpu.memory_space<vmem>>, vector<8x3xf32>
    %c0_1 = arith.constant 0 : index
    %c0_2 = arith.constant 0 : index
    %1 = vector.load %arg2[%c0_1, %c0_2] : memref<3x1024xf32, #tpu.memory_space<vmem>>, vector<3x1024xf32>
    %2 = vector.extract_strided_slice %0 {offsets = [0, 0], sizes = [8, 1], strides = [1, 1]} : vector<8x3xf32> to vector<8x1xf32>
    %3 = vector.extract_strided_slice %1 {offsets = [0, 0], sizes = [1, 1024], strides = [1, 1]} : vector<3x1024xf32> to vector<1x1024xf32>
    %4 = vector.broadcast %2 : vector<8x1xf32> to vector<8x1024xf32>
    %5 = vector.broadcast %3 : vector<1x1024xf32> to vector<8x1024xf32>
    %6 = arith.mulf %4, %5 : vector<8x1024xf32>
    %7 = vector.extract_strided_slice %0 {offsets = [0, 1], sizes = [8, 1], strides = [1, 1]} : vector<8x3xf32> to vector<8x1xf32>
    %8 = vector.extract_strided_slice %1 {offsets = [1, 0], sizes = [1, 1024], strides = [1, 1]} : vector<3x1024xf32> to vector<1x1024xf32>
    %9 = vector.broadcast %7 : vector<8x1xf32> to vector<8x1024xf32>
    %10 = vector.broadcast %8 : vector<1x1024xf32> to vector<8x1024xf32>
    %11 = arith.mulf %9, %10 : vector<8x1024xf32>
    %12 = arith.addf %6, %11 : vector<8x1024xf32>
    %13 = vector.extract_strided_slice %0 {offsets = [0, 2], sizes = [8, 1], strides = [1, 1]} : vector<8x3xf32> to vector<8x1xf32>
    %14 = vector.extract_strided_slice %1 {offsets = [2, 0], sizes = [1, 1024], strides = [1, 1]} : vector<3x1024xf32> to vector<1x1024xf32>
    %15 = vector.broadcast %13 : vector<8x1xf32> to vector<8x1024xf32>
    %16 = vector.broadcast %14 : vector<1x1024xf32> to vector<8x1024xf32>
    %17 = arith.mulf %15, %16 : vector<8x1024xf32>
    %18 = arith.addf %12, %17 : vector<8x1024xf32>
    %c0_3 = arith.constant 0 : index
    %c0_4 = arith.constant 0 : index
    %19 = vector.load %arg3[%c0_3, %c0_4] : memref<1x1024xf32, #tpu.memory_space<vmem>>, vector<1x1024xf32>
    %20 = vector.broadcast %19 : vector<1x1024xf32> to vector<8x1024xf32>
    %21 = arith.addf %18, %20 : vector<8x1024xf32>
    %cst = arith.constant 1.000000e-01 : f32
    %22 = vector.broadcast %cst : f32 to vector<8x1024xf32>
    %23 = arith.mulf %22, %21 : vector<8x1024xf32>
    %24 = arith.maximumf %21, %23 : vector<8x1024xf32>
    %25 = arith.truncf %24 : vector<8x1024xf32> to vector<8x1024xbf16>
    %c0_5 = arith.constant 0 : index
    %c0_6 = arith.constant 0 : index
    %26 = vector.load %arg4[%c0_5, %c0_6] : memref<1024x256xbf16, #tpu.memory_space<vmem>>, vector<1024x256xbf16>
    %cst_7 = arith.constant dense<0.000000e+00> : vector<8x256xf32>
    %27 = tpu.matmul %25, %26, %cst_7 {dimension_numbers = #tpu.dot_dimension_numbers<[1], [0], [0], [1], [0, 0, 1, 1], [], []>} : vector<8x1024xbf16>, vector<1024x256xbf16>, vector<8x256xf32> -> vector<8x256xf32>
    %c0_8 = arith.constant 0 : index
    %c0_9 = arith.constant 0 : index
    %28 = vector.load %arg5[%c0_8, %c0_9] : memref<1x256xf32, #tpu.memory_space<vmem>>, vector<1x256xf32>
    %29 = vector.broadcast %28 : vector<1x256xf32> to vector<8x256xf32>
    %30 = arith.addf %27, %29 : vector<8x256xf32>
    %cst_10 = arith.constant 1.000000e-01 : f32
    %31 = vector.broadcast %cst_10 : f32 to vector<8x256xf32>
    %32 = arith.mulf %31, %30 : vector<8x256xf32>
    %33 = arith.maximumf %30, %32 : vector<8x256xf32>
    %34 = arith.truncf %33 : vector<8x256xf32> to vector<8x256xbf16>
    %c0_11 = arith.constant 0 : index
    %c0_12 = arith.constant 0 : index
    %35 = vector.load %arg6[%c0_11, %c0_12] : memref<256x64xbf16, #tpu.memory_space<vmem>>, vector<256x64xbf16>
    %cst_13 = arith.constant dense<0.000000e+00> : vector<8x64xf32>
    %36 = tpu.matmul %34, %35, %cst_13 {dimension_numbers = #tpu.dot_dimension_numbers<[1], [0], [0], [1], [0, 0, 1, 1], [], []>} : vector<8x256xbf16>, vector<256x64xbf16>, vector<8x64xf32> -> vector<8x64xf32>
    %c0_14 = arith.constant 0 : index
    %c0_15 = arith.constant 0 : index
    %37 = vector.load %arg7[%c0_14, %c0_15] : memref<1x64xf32, #tpu.memory_space<vmem>>, vector<1x64xf32>
    %38 = vector.broadcast %37 : vector<1x64xf32> to vector<8x64xf32>
    %39 = arith.addf %36, %38 : vector<8x64xf32>
    %cst_16 = arith.constant 1.000000e-01 : f32
    %40 = vector.broadcast %cst_16 : f32 to vector<8x64xf32>
    %41 = arith.mulf %40, %39 : vector<8x64xf32>
    %42 = arith.maximumf %39, %41 : vector<8x64xf32>
    %43 = arith.truncf %42 : vector<8x64xf32> to vector<8x64xbf16>
    %c0_17 = arith.constant 0 : index
    %c0_18 = arith.constant 0 : index
    %44 = vector.load %arg8[%c0_17, %c0_18] : memref<64x2xbf16, #tpu.memory_space<vmem>>, vector<64x2xbf16>
    %cst_19 = arith.constant dense<0.000000e+00> : vector<8x2xf32>
    %45 = tpu.matmul %43, %44, %cst_19 {dimension_numbers = #tpu.dot_dimension_numbers<[1], [0], [0], [1], [0, 0, 1, 1], [], []>} : vector<8x64xbf16>, vector<64x2xbf16>, vector<8x2xf32> -> vector<8x2xf32>
    %c0_20 = arith.constant 0 : index
    %c0_21 = arith.constant 0 : index
    %46 = vector.load %arg9[%c0_20, %c0_21] : memref<1x2xf32, #tpu.memory_space<vmem>>, vector<1x2xf32>
    %47 = vector.broadcast %46 : vector<1x2xf32> to vector<8x2xf32>
    %48 = arith.addf %45, %47 : vector<8x2xf32>
    %c0_22 = arith.constant 0 : index
    %c0_23 = arith.constant 0 : index
    %49 = vector.load %arg10[%c0_22, %c0_23] : memref<8x2xf32, #tpu.memory_space<vmem>>, vector<8x2xf32>
    tpu.vector_store %arg10[%c0_22, %c0_23], %48 {strides = array<i32>} : memref<8x2xf32, #tpu.memory_space<vmem>>, vector<8x2xf32>,
    return
  }
  func.func @transform_0(%arg0: i32) -> (i32, i32) {
    %c0_i32 = arith.constant 0 : i32
    %c0_i32_0 = arith.constant 0 : i32
    return %arg0, %c0_i32 : i32, i32
  }
  func.func @transform_1(%arg0: i32) -> (i32, i32) {
    %c0_i32 = arith.constant 0 : i32
    %c0_i32_0 = arith.constant 0 : i32
    %c0_i32_1 = arith.constant 0 : i32
    return %c0_i32, %c0_i32_0 : i32, i32
  }
  func.func @transform_2(%arg0: i32) -> (i32, i32) {
    %c0_i32 = arith.constant 0 : i32
    %c0_i32_0 = arith.constant 0 : i32
    %c0_i32_1 = arith.constant 0 : i32
    return %c0_i32, %c0_i32_0 : i32, i32
  }
  func.func @transform_3(%arg0: i32) -> (i32, i32) {
    %c0_i32 = arith.constant 0 : i32
    %c0_i32_0 = arith.constant 0 : i32
    %c0_i32_1 = arith.constant 0 : i32
    return %c0_i32, %c0_i32_0 : i32, i32
  }
  func.func @transform_4(%arg0: i32) -> (i32, i32) {
    %c0_i32 = arith.constant 0 : i32
    %c0_i32_0 = arith.constant 0 : i32
    %c0_i32_1 = arith.constant 0 : i32
    return %c0_i32, %c0_i32_0 : i32, i32
  }
  func.func @transform_5(%arg0: i32) -> (i32, i32) {
    %c0_i32 = arith.constant 0 : i32
    %c0_i32_0 = arith.constant 0 : i32
    %c0_i32_1 = arith.constant 0 : i32
    return %c0_i32, %c0_i32_0 : i32, i32
  }
  func.func @transform_6(%arg0: i32) -> (i32, i32) {
    %c0_i32 = arith.constant 0 : i32
    %c0_i32_0 = arith.constant 0 : i32
    %c0_i32_1 = arith.constant 0 : i32
    return %c0_i32, %c0_i32_0 : i32, i32
  }
  func.func @transform_7(%arg0: i32) -> (i32, i32) {
    %c0_i32 = arith.constant 0 : i32
    %c0_i32_0 = arith.constant 0 : i32
    %c0_i32_1 = arith.constant 0 : i32
    return %c0_i32, %c0_i32_0 : i32, i32
  }
  func.func @transform_8(%arg0: i32) -> (i32, i32) {
    %c0_i32 = arith.constant 0 : i32
    %c0_i32_0 = arith.constant 0 : i32
    %c0_i32_1 = arith.constant 0 : i32
    return %c0_i32, %c0_i32_0 : i32, i32
  }
  func.func @transform_9(%arg0: i32) -> (i32, i32) {
    %c0_i32 = arith.constant 0 : i32
    %c0_i32_0 = arith.constant 0 : i32
    return %arg0, %c0_i32 : i32, i32
  }
}

</mosaic_0001>

<llo_original>
// kernel: tpu_custom_call.1
$region0: #{tpu_custom_call.1}
  #allocation0 [shape = 'u32[]', space=smem, size = 0x4, offset = 0x4, fixed_abs, tag = 'smem constant byte address 0x4 - core index']
  #allocation1 [shape = 'u32[144,128]{1,0:T(1,128)}', space=vmem, size = 0x12000, scoped, tag = 'internal scratch']
  %s0 = inlined_call_operand.vmem [shape: f32[8,3], index: 0, kind: input, shape index: {}]
  %s1 = inlined_call_operand.vmem [shape: bf16[3,1024], index: 1, kind: input, shape index: {}]
  %s2 = inlined_call_operand.vmem [shape: f32[1,1024], index: 2, kind: input, shape index: {}]
  %s3 = inlined_call_operand.hbm [shape: bf16[1024,256], index: 3, kind: input, shape index: {}]
  %s4 = inlined_call_operand.vmem [shape: f32[1,256], index: 4, kind: input, shape index: {}]
  %s5 = inlined_call_operand.vmem [shape: bf16[256,64], index: 5, kind: input, shape index: {}]
  %s6 = inlined_call_operand.vmem [shape: f32[1,64], index: 6, kind: input, shape index: {}]
  %s7 = inlined_call_operand.vmem [shape: bf16[64,2], index: 7, kind: input, shape index: {}]
  %s8 = inlined_call_operand.vmem [shape: f32[1,2], index: 8, kind: input, shape index: {}]
  %s9 = inlined_call_operand.vmem [shape: f32[8,2], index: 9, kind: output, shape index: {}]
  %s10 = sld [smem:[#allocation0]]
  $region50: #{tpu_custom_call.1} parent=0
    _
  %s12 = ssub.s32 1, %s10
  %s13 = scalar_select 0, %s12, %s10
  $region1: #{tpu_custom_call.1} parent=0
    #allocation2 [shape = 'u8[524288]{0}', space=vmem, size = 0x80000, scoped, tag = 'input window, operand 3, single buffered']
    #allocation3 [shape = 's32[1]{0}', space=sflag, size = 0x4, scoped, tag = 'scoped memory for tpu_custom_call.1']
    %14 = vsyncpa [#allocation3], 0
    // Predicated region
    $region2: #{tpu_custom_call.1} parent=1 // pred_check
      _
    $region3: #{tpu_custom_call.1} parent=1 // pred_check_branch
      %16 = sbr.rel (0) target = $region5
    $region4: #{tpu_custom_call.1} parent=1 // pred_region
      _
    $region5: #{tpu_custom_call.1} parent=1 // pred_fallthru
      _
    // Predicated region
    $region6: #{tpu_custom_call.1} parent=1 // pred_check
      _
    $region7: #{tpu_custom_call.1} parent=1 // pred_check_branch
      %18 = sbr.rel (0) target = $region9
    $region8: #{tpu_custom_call.1} parent=1 // pred_region
      _
    $region9: #{tpu_custom_call.1} parent=1 // pred_fallthru
      _
    // Predicated region
    $region10: #{tpu_custom_call.1} parent=1 // pred_check
      _
    $region11: #{tpu_custom_call.1} parent=1 // pred_check_branch
      %20 = sbr.rel (0) target = $region13
    $region12: #{tpu_custom_call.1} parent=1 // pred_region
      _
    $region13: #{tpu_custom_call.1} parent=1 // pred_fallthru
      _
    // Predicated region
    $region14: #{tpu_custom_call.1} parent=1 // pred_check
      _
    $region15: #{tpu_custom_call.1} parent=1 // pred_check_branch
      %22 = sbr.rel (0) target = $region17
    $region16: #{tpu_custom_call.1} parent=1 // pred_region
      %s24 = ssub.s32 16384, 16384
      %25 = vsyncadd [#allocation3], %s24
      %s26 = sshll.u32 [#allocation2], 4
      %s27 = int_to_ptr.vmem [resolvable:$true] %s26
      %32 = dma.hbm_to_vmem [thread:$0]  %s3, 16384, %s27, [#allocation3], 128, 128, 8
    $region17: #{tpu_custom_call.1} parent=1 // pred_fallthru
      _
    // Predicated region
    $region18: #{tpu_custom_call.1} parent=1 // pred_check
      _
    $region19: #{tpu_custom_call.1} parent=1 // pred_check_branch
      %34 = sbr.rel (0) target = $region21
    $region20: #{tpu_custom_call.1} parent=1 // pred_region
      _
    $region21: #{tpu_custom_call.1} parent=1 // pred_fallthru
      _
    // Predicated region
    $region22: #{tpu_custom_call.1} parent=1 // pred_check
      _
    $region23: #{tpu_custom_call.1} parent=1 // pred_check_branch
      %36 = sbr.rel (0) target = $region25
    $region24: #{tpu_custom_call.1} parent=1 // pred_region
      _
    $region25: #{tpu_custom_call.1} parent=1 // pred_fallthru
      _
    // Predicated region
    $region26: #{tpu_custom_call.1} parent=1 // pred_check
      _
    $region27: #{tpu_custom_call.1} parent=1 // pred_check_branch
      %38 = sbr.rel (0) target = $region29
    $region28: #{tpu_custom_call.1} parent=1 // pred_region
      _
    $region29: #{tpu_custom_call.1} parent=1 // pred_fallthru
      _
    // Predicated region
    $region30: #{tpu_custom_call.1} parent=1 // pred_check
      _
    $region31: #{tpu_custom_call.1} parent=1 // pred_check_branch
      %40 = sbr.rel (0) target = $region33
    $region32: #{tpu_custom_call.1} parent=1 // pred_region
      _
    $region33: #{tpu_custom_call.1} parent=1 // pred_fallthru
      _
    // Predicated region
    $region34: #{tpu_custom_call.1} parent=1 // pred_check
      _
    $region35: #{tpu_custom_call.1} parent=1 // pred_check_branch
      %42 = sbr.rel (0) target = $region37
    $region36: #{tpu_custom_call.1} parent=1 // pred_region
      _
    $region37: #{tpu_custom_call.1} parent=1 // pred_fallthru
      _
    // Predicated region
    $region38: #{tpu_custom_call.1} parent=1 // pred_check
      _
    $region39: #{tpu_custom_call.1} parent=1 // pred_check_branch
      %44 = sbr.rel (0) target = $region41
    $region40: #{tpu_custom_call.1} parent=1 // pred_region
      %45 = dma.done [#allocation3], 16384
    $region41: #{tpu_custom_call.1} parent=1 // pred_fallthru
      _
    %v47 = vld [vmem:[%s0] sm:$0xff]
    %v48 = vpack.c.bf16 %v47, %v47
    %v49 = vld [vmem:[%s1] sm:$0xff]
    %v50 = vld [vmem:[%s1 + $0x8] sm:$0xff]
    %v51 = vld [vmem:[%s2] sm:$0xff]
    %v53 = vlaneseq
    %v54 = vshrl.u32 %v53, 7
    %v55 = vsub.s32 0, %v54
    %v56 = vrot.slane %v51, %v55
    %v57 = vlaneseq
    %v58 = vshrl.u32 %v57, 7
    %v59 = vsub.s32 1, %v58
    %v60 = vrot.slane %v51, %v59
    %v61 = vlaneseq
    %v62 = vshrl.u32 %v61, 7
    %v63 = vsub.s32 2, %v62
    %v64 = vrot.slane %v51, %v63
    %v65 = vlaneseq
    %v66 = vshrl.u32 %v65, 7
    %v67 = vsub.s32 3, %v66
    %v68 = vrot.slane %v51, %v67
    %v69 = vlaneseq
    %v70 = vshrl.u32 %v69, 7
    %v71 = vsub.s32 4, %v70
    %v72 = vrot.slane %v51, %v71
    %v73 = vlaneseq
    %v74 = vshrl.u32 %v73, 7
    %v75 = vsub.s32 5, %v74
    %v76 = vrot.slane %v51, %v75
    %v77 = vlaneseq
    %v78 = vshrl.u32 %v77, 7
    %v79 = vsub.s32 6, %v78
    %v80 = vrot.slane %v51, %v79
    %v81 = vlaneseq
    %v82 = vshrl.u32 %v81, 7
    %v83 = vsub.s32 7, %v82
    %v84 = vrot.slane %v51, %v83
    %v95 = vcombine.high %v49, %v49
    %v97 = vunpack.c.l.s4 1983009808
    %v98 = vunpack.c.0.s8 %v97
    %v99 = vlaneseq
    %v100 = vshrl.u32 %v99, 7
    %v101 = vsub.s32 %v98, %v100
    %v102 = vrot.slane %v49, %v101
    %v104 = vunpack.c.l.s4 1983009808
    %v105 = vunpack.c.0.s8 %v104
    %v106 = vlaneseq
    %v107 = vshrl.u32 %v106, 7
    %v108 = vsub.s32 %v105, %v107
    %v109 = vrot.slane %v95, %v108
    %v110 = vcombine.high %v102, %v102
    %v111 = vcombine.high %v109, %v109
    %v112 = vcombine.high %v50, %v50
    %v114 = vunpack.c.l.s4 1983009808
    %v115 = vunpack.c.0.s8 %v114
    %v116 = vlaneseq
    %v117 = vshrl.u32 %v116, 7
    %v118 = vsub.s32 %v115, %v117
    %v119 = vrot.slane %v50, %v118
    %v121 = vunpack.c.l.s4 1983009808
    %v122 = vunpack.c.0.s8 %v121
    %v123 = vlaneseq
    %v124 = vshrl.u32 %v123, 7
    %v125 = vsub.s32 %v122, %v124
    %v126 = vrot.slane %v112, %v125
    %v127 = vcombine.high %v119, %v119
    %v128 = vcombine.high %v126, %v126
    %vm129 = vcmask 23552
    %v131 = vsel %vm129, %v48, 0
    %vm133 = vcmask 1040384
    %vm134 = vcmask 1041408
    %v135 = vsel %vm133, 4294967295, 65535
    %v136 = vsel %vm134, %v135, 0
    %v138 = vand.u32 %v102, %v136
    %v141 = vand.u32 %v110, %v136
    %v144 = vand.u32 %v109, %v136
    %v147 = vand.u32 %v111, %v136
    %v150 = vand.u32 %v119, %v136
    %v153 = vand.u32 %v127, %v136
    %v156 = vand.u32 %v126, %v136
    %v159 = vand.u32 %v128, %v136
    %161 = vmatprep.subr.bf16.mxu0 %v141
    %162 = vmatpush1.bf16.msra.mxu0 %v138
    %163 = vmatprep.subr.bf16.mxu0 0
    %164 = vmatpush1.bf16.msra.mxu0 0
    %165 = vmatprep.subr.bf16.mxu0 0
    %166 = vmatpush1.bf16.msra.mxu0 0
    %167 = vmatprep.subr.bf16.mxu0 0
    %168 = vmatpush1.bf16.msra.mxu0 0
    %169 = vmatprep.subr.bf16.mxu0 0
    %170 = vmatpush1.bf16.msra.mxu0 0
    %171 = vmatprep.subr.bf16.mxu0 0
    %172 = vmatpush1.bf16.msra.mxu0 0
    %173 = vmatprep.subr.bf16.mxu0 0
    %174 = vmatpush1.bf16.msra.mxu0 0
    %175 = vmatprep.subr.bf16.mxu0 0
    %176 = vmatpush1.bf16.msra.mxu0 0
    %177 = vmatprep.subr.bf16.mxu0 0
    %178 = vmatpush1.bf16.msra.mxu0 0
    %179 = vmatprep.subr.bf16.mxu0 0
    %180 = vmatpush1.bf16.msra.mxu0 0
    %181 = vmatprep.subr.bf16.mxu0 0
    %182 = vmatpush1.bf16.msra.mxu0 0
    %183 = vmatprep.subr.bf16.mxu0 0
    %184 = vmatpush1.bf16.msra.mxu0 0
    %185 = vmatprep.subr.bf16.mxu0 0
    %186 = vmatpush1.bf16.msra.mxu0 0
    %187 = vmatprep.subr.bf16.mxu0 0
    %188 = vmatpush1.bf16.msra.mxu0 0
    %189 = vmatprep.subr.bf16.mxu0 0
    %190 = vmatpush1.bf16.msra.mxu0 0
    %191 = vmatprep.subr.bf16.mxu0 0
    %192 = vmatpush1.bf16.msra.mxu0 0
    %193 = vmatprep.mubr.bf16.mxu0 0
    %194 = vmatmul.mubr.bf16.gmra.mrb[0].mxu0 %v131
    %v195 = vpop.f32.mrb[0].mxu0
    %v196 = vadd.f32 %v56, %v195
    %v197 = vpop.f32.mrb[0].mxu0
    %v198 = vadd.f32 %v60, %v197
    %v199 = vpop.f32.mrb[0].mxu0
    %v200 = vpop.f32.mrb[0].mxu0
    %201 = vdwg.mxu0
    %202 = vmatprep.subr.bf16.mxu0 %v147
    %203 = vmatpush1.bf16.msra.mxu0 %v144
    %204 = vmatprep.subr.bf16.mxu0 0
    %205 = vmatpush1.bf16.msra.mxu0 0
    %206 = vmatprep.subr.bf16.mxu0 0
    %207 = vmatpush1.bf16.msra.mxu0 0
    %208 = vmatprep.subr.bf16.mxu0 0
    %209 = vmatpush1.bf16.msra.mxu0 0
    %210 = vmatprep.subr.bf16.mxu0 0
    %211 = vmatpush1.bf16.msra.mxu0 0
    %212 = vmatprep.subr.bf16.mxu0 0
    %213 = vmatpush1.bf16.msra.mxu0 0
    %214 = vmatprep.subr.bf16.mxu0 0
    %215 = vmatpush1.bf16.msra.mxu0 0
    %216 = vmatprep.subr.bf16.mxu0 0
    %217 = vmatpush1.bf16.msra.mxu0 0
    %218 = vmatprep.subr.bf16.mxu0 0
    %219 = vmatpush1.bf16.msra.mxu0 0
    %220 = vmatprep.subr.bf16.mxu0 0
    %221 = vmatpush1.bf16.msra.mxu0 0
    %222 = vmatprep.subr.bf16.mxu0 0
    %223 = vmatpush1.bf16.msra.mxu0 0
    %224 = vmatprep.subr.bf16.mxu0 0
    %225 = vmatpush1.bf16.msra.mxu0 0
    %226 = vmatprep.subr.bf16.mxu0 0
    %227 = vmatpush1.bf16.msra.mxu0 0
    %228 = vmatprep.subr.bf16.mxu0 0
    %229 = vmatpush1.bf16.msra.mxu0 0
    %230 = vmatprep.subr.bf16.mxu0 0
    %231 = vmatpush1.bf16.msra.mxu0 0
    %232 = vmatprep.subr.bf16.mxu0 0
    %233 = vmatpush1.bf16.msra.mxu0 0
    %234 = vmatprep.mubr.bf16.mxu0 0
    %235 = vmatmul.mubr.bf16.gmra.mrb[0].mxu0 %v131
    %v236 = vpop.f32.mrb[0].mxu0
    %v237 = vadd.f32 %v64, %v236
    %v238 = vpop.f32.mrb[0].mxu0
    %v239 = vadd.f32 %v68, %v238
    %v240 = vpop.f32.mrb[0].mxu0
    %v241 = vpop.f32.mrb[0].mxu0
    %242 = vdwg.mxu0
    %243 = vmatprep.subr.bf16.mxu0 %v153
    %244 = vmatpush1.bf16.msra.mxu0 %v150
    %245 = vmatprep.subr.bf16.mxu0 0
    %246 = vmatpush1.bf16.msra.mxu0 0
    %247 = vmatprep.subr.bf16.mxu0 0
    %248 = vmatpush1.bf16.msra.mxu0 0
    %249 = vmatprep.subr.bf16.mxu0 0
    %250 = vmatpush1.bf16.msra.mxu0 0
    %251 = vmatprep.subr.bf16.mxu0 0
    %252 = vmatpush1.bf16.msra.mxu0 0
    %253 = vmatprep.subr.bf16.mxu0 0
    %254 = vmatpush1.bf16.msra.mxu0 0
    %255 = vmatprep.subr.bf16.mxu0 0
    %256 = vmatpush1.bf16.msra.mxu0 0
    %257 = vmatprep.subr.bf16.mxu0 0
    %258 = vmatpush1.bf16.msra.mxu0 0
    %259 = vmatprep.subr.bf16.mxu0 0
    %260 = vmatpush1.bf16.msra.mxu0 0
    %261 = vmatprep.subr.bf16.mxu0 0
    %262 = vmatpush1.bf16.msra.mxu0 0
    %263 = vmatprep.subr.bf16.mxu0 0
    %264 = vmatpush1.bf16.msra.mxu0 0
    %265 = vmatprep.subr.bf16.mxu0 0
    %266 = vmatpush1.bf16.msra.mxu0 0
    %267 = vmatprep.subr.bf16.mxu0 0
    %268 = vmatpush1.bf16.msra.mxu0 0
    %269 = vmatprep.subr.bf16.mxu0 0
    %270 = vmatpush1.bf16.msra.mxu0 0
    %271 = vmatprep.subr.bf16.mxu0 0
    %272 = vmatpush1.bf16.msra.mxu0 0
    %273 = vmatprep.subr.bf16.mxu0 0
    %274 = vmatpush1.bf16.msra.mxu0 0
    %275 = vmatprep.mubr.bf16.mxu0 0
    %276 = vmatmul.mubr.bf16.gmra.mrb[0].mxu0 %v131
    %v277 = vpop.f32.mrb[0].mxu0
    %v278 = vadd.f32 %v72, %v277
    %v279 = vpop.f32.mrb[0].mxu0
    %v280 = vadd.f32 %v76, %v279
    %v281 = vpop.f32.mrb[0].mxu0
    %v282 = vpop.f32.mrb[0].mxu0
    %283 = vdwg.mxu0
    %284 = vmatprep.subr.bf16.mxu0 %v159
    %285 = vmatpush1.bf16.msra.mxu0 %v156
    %286 = vmatprep.subr.bf16.mxu0 0
    %287 = vmatpush1.bf16.msra.mxu0 0
    %288 = vmatprep.subr.bf16.mxu0 0
    %289 = vmatpush1.bf16.msra.mxu0 0
    %290 = vmatprep.subr.bf16.mxu0 0
    %291 = vmatpush1.bf16.msra.mxu0 0
    %292 = vmatprep.subr.bf16.mxu0 0
    %293 = vmatpush1.bf16.msra.mxu0 0
    %294 = vmatprep.subr.bf16.mxu0 0
    %295 = vmatpush1.bf16.msra.mxu0 0
    %296 = vmatprep.subr.bf16.mxu0 0
    %297 = vmatpush1.bf16.msra.mxu0 0
    %298 = vmatprep.subr.bf16.mxu0 0
    %299 = vmatpush1.bf16.msra.mxu0 0
    %300 = vmatprep.subr.bf16.mxu0 0
    %301 = vmatpush1.bf16.msra.mxu0 0
    %302 = vmatprep.subr.bf16.mxu0 0
    %303 = vmatpush1.bf16.msra.mxu0 0
    %304 = vmatprep.subr.bf16.mxu0 0
    %305 = vmatpush1.bf16.msra.mxu0 0
    %306 = vmatprep.subr.bf16.mxu0 0
    %307 = vmatpush1.bf16.msra.mxu0 0
    %308 = vmatprep.subr.bf16.mxu0 0
    %309 = vmatpush1.bf16.msra.mxu0 0
    %310 = vmatprep.subr.bf16.mxu0 0
    %311 = vmatpush1.bf16.msra.mxu0 0
    %312 = vmatprep.subr.bf16.mxu0 0
    %313 = vmatpush1.bf16.msra.mxu0 0
    %314 = vmatprep.subr.bf16.mxu0 0
    %315 = vmatpush1.bf16.msra.mxu0 0
    %316 = vmatprep.mubr.bf16.mxu0 0
    %317 = vmatmul.mubr.bf16.gmra.mrb[0].mxu0 %v131
    %v318 = vpop.f32.mrb[0].mxu0
    %v319 = vadd.f32 %v80, %v318
    %v320 = vpop.f32.mrb[0].mxu0
    %v321 = vadd.f32 %v84, %v320
    %v322 = vpop.f32.mrb[0].mxu0
    %v323 = vpop.f32.mrb[0].mxu0
    %324 = vdwg.mxu0
    %v325 = vmul.f32 %v196, 0.1
    %v326 = vmul.f32 %v198, 0.1
    %v327 = vmul.f32 %v237, 0.1
    %v328 = vmul.f32 %v239, 0.1
    %v329 = vmul.f32 %v278, 0.1
    %v330 = vmul.f32 %v280, 0.1
    %v331 = vmul.f32 %v319, 0.1
    %v332 = vmul.f32 %v321, 0.1
    %v333 = vmax.f32 %v196, %v325
    %v334 = vmax.f32 %v198, %v326
    %v335 = vmax.f32 %v237, %v327
    %v336 = vmax.f32 %v239, %v328
    %v337 = vmax.f32 %v278, %v329
    %v338 = vmax.f32 %v280, %v330
    %v339 = vmax.f32 %v319, %v331
    %v340 = vmax.f32 %v321, %v332
    %v341 = vpack.c.bf16 %v333, %v333
    %v342 = vpack.c.bf16 %v334, %v334
    %v343 = vpack.c.bf16 %v335, %v335
    %v344 = vpack.c.bf16 %v336, %v336
    %v345 = vpack.c.bf16 %v337, %v337
    %v346 = vpack.c.bf16 %v338, %v338
    %v347 = vpack.c.bf16 %v339, %v339
    %v348 = vpack.c.bf16 %v340, %v340
    %v349 = vld [vmem:[#allocation2] sm:$0xff]
    %v350 = vld [vmem:[#allocation2 + $0x8] sm:$0xff]
    %v351 = vld [vmem:[#allocation2 + $0x10] sm:$0xff]
    %v352 = vld [vmem:[#allocation2 + $0x18] sm:$0xff]
    %v353 = vld [vmem:[#allocation2 + $0x20] sm:$0xff]
    %v354 = vld [vmem:[#allocation2 + $0x28] sm:$0xff]
    %v355 = vld [vmem:[#allocation2 + $0x30] sm:$0xff]
    %v356 = vld [vmem:[#allocation2 + $0x38] sm:$0xff]
    %v357 = vld [vmem:[#allocation2 + $0x40] sm:$0xff]
    %v358 = vld [vmem:[#allocation2 + $0x48] sm:$0xff]
    %v359 = vld [vmem:[#allocation2 + $0x50] sm:$0xff]
    %v360 = vld [vmem:[#allocation2 + $0x58] sm:$0xff]
    %v361 = vld [vmem:[#allocation2 + $0x60] sm:$0xff]
    %v362 = vld [vmem:[#allocation2 + $0x68] sm:$0xff]
    %v363 = vld [vmem:[#allocation2 + $0x70] sm:$0xff]
    %v364 = vld [vmem:[#allocation2 + $0x78] sm:$0xff]
    %v365 = vld [vmem:[#allocation2 + $0x80] sm:$0xff]
    %v366 = vld [vmem:[#allocation2 + $0x88] sm:$0xff]
    %v367 = vld [vmem:[#allocation2 + $0x90] sm:$0xff]
    %v368 = vld [vmem:[#allocation2 + $0x98] sm:$0xff]
    %v369 = vld [vmem:[#allocation2 + $0xa0] sm:$0xff]
    %v370 = vld [vmem:[#allocation2 + $0xa8] sm:$0xff]
    %v371 = vld [vmem:[#allocation2 + $0xb0] sm:$0xff]
    %v372 = vld [vmem:[#allocation2 + $0xb8] sm:$0xff]
    %v373 = vld [vmem:[#allocation2 + $0xc0] sm:$0xff]
    %v374 = vld [vmem:[#allocation2 + $0xc8] sm:$0xff]
    %v375 = vld [vmem:[#allocation2 + $0xd0] sm:$0xff]
    %v376 = vld [vmem:[#allocation2 + $0xd8] sm:$0xff]
    %v377 = vld [vmem:[#allocation2 + $0xe0] sm:$0xff]
    %v378 = vld [vmem:[#allocation2 + $0xe8] sm:$0xff]
    %v379 = vld [vmem:[#allocation2 + $0xf0] sm:$0xff]
    %v380 = vld [vmem:[#allocation2 + $0xf8] sm:$0xff]
    %v381 = vld [vmem:[#allocation2 + $0x100] sm:$0xff]
    %v382 = vld [vmem:[#allocation2 + $0x108] sm:$0xff]
    %v383 = vld [vmem:[#allocation2 + $0x110] sm:$0xff]
    %v384 = vld [vmem:[#allocation2 + $0x118] sm:$0xff]
    %v385 = vld [vmem:[#allocation2 + $0x120] sm:$0xff]
    %v386 = vld [vmem:[#allocation2 + $0x128] sm:$0xff]
    %v387 = vld [vmem:[#allocation2 + $0x130] sm:$0xff]
    %v388 = vld [vmem:[#allocation2 + $0x138] sm:$0xff]
    %v389 = vld [vmem:[#allocation2 + $0x140] sm:$0xff]
    %v390 = vld [vmem:[#allocation2 + $0x148] sm:$0xff]
    %v391 = vld [vmem:[#allocation2 + $0x150] sm:$0xff]
    %v392 = vld [vmem:[#allocation2 + $0x158] sm:$0xff]
    %v393 = vld [vmem:[#allocation2 + $0x160] sm:$0xff]
    %v394 = vld [vmem:[#allocation2 + $0x168] sm:$0xff]
    %v395 = vld [vmem:[#allocation2 + $0x170] sm:$0xff]
    %v396 = vld [vmem:[#allocation2 + $0x178] sm:$0xff]
    %v397 = vld [vmem:[#allocation2 + $0x180] sm:$0xff]
    %v398 = vld [vmem:[#allocation2 + $0x188] sm:$0xff]
    %v399 = vld [vmem:[#allocation2 + $0x190] sm:$0xff]
    %v400 = vld [vmem:[#allocation2 + $0x198] sm:$0xff]
    %v401 = vld [vmem:[#allocation2 + $0x1a0] sm:$0xff]
    %v402 = vld [vmem:[#allocation2 + $0x1a8] sm:$0xff]
    %v403 = vld [vmem:[#allocation2 + $0x1b0] sm:$0xff]
    %v404 = vld [vmem:[#allocation2 + $0x1b8] sm:$0xff]
    %v405 = vld [vmem:[#allocation2 + $0x1c0] sm:$0xff]
    %v406 = vld [vmem:[#allocation2 + $0x1c8] sm:$0xff]
    %v407 = vld [vmem:[#allocation2 + $0x1d0] sm:$0xff]
    %v408 = vld [vmem:[#allocation2 + $0x1d8] sm:$0xff]
    %v409 = vld [vmem:[#allocation2 + $0x1e0] sm:$0xff]
    %v410 = vld [vmem:[#allocation2 + $0x1e8] sm:$0xff]
    %v411 = vld [vmem:[#allocation2 + $0x1f0] sm:$0xff]
    %v412 = vld [vmem:[#allocation2 + $0x1f8] sm:$0xff]
    %v413 = vld [vmem:[#allocation2 + $0x200] sm:$0xff]
    %v414 = vld [vmem:[#allocation2 + $0x208] sm:$0xff]
    %v415 = vld [vmem:[#allocation2 + $0x210] sm:$0xff]
    %v416 = vld [vmem:[#allocation2 + $0x218] sm:$0xff]
    %v417 = vld [vmem:[#allocation2 + $0x220] sm:$0xff]
    %v418 = vld [vmem:[#allocation2 + $0x228] sm:$0xff]
    %v419 = vld [vmem:[#allocation2 + $0x230] sm:$0xff]
    %v420 = vld [vmem:[#allocation2 + $0x238] sm:$0xff]
    %v421 = vld [vmem:[#allocation2 + $0x240] sm:$0xff]
    %v422 = vld [vmem:[#allocation2 + $0x248] sm:$0xff]
    %v423 = vld [vmem:[#allocation2 + $0x250] sm:$0xff]
    %v424 = vld [vmem:[#allocation2 + $0x258] sm:$0xff]
    %v425 = vld [vmem:[#allocation2 + $0x260] sm:$0xff]
    %v426 = vld [vmem:[#allocation2 + $0x268] sm:$0xff]
    %v427 = vld [vmem:[#allocation2 + $0x270] sm:$0xff]
    %v428 = vld [vmem:[#allocation2 + $0x278] sm:$0xff]
    %v429 = vld [vmem:[#allocation2 + $0x280] sm:$0xff]
    %v430 = vld [vmem:[#allocation2 + $0x288] sm:$0xff]
    %v431 = vld [vmem:[#allocation2 + $0x290] sm:$0xff]
    %v432 = vld [vmem:[#allocation2 + $0x298] sm:$0xff]
    %v433 = vld [vmem:[#allocation2 + $0x2a0] sm:$0xff]
    %v434 = vld [vmem:[#allocation2 + $0x2a8] sm:$0xff]
    %v435 = vld [vmem:[#allocation2 + $0x2b0] sm:$0xff]
    %v436 = vld [vmem:[#allocation2 + $0x2b8] sm:$0xff]
    %v437 = vld [vmem:[#allocation2 + $0x2c0] sm:$0xff]
    %v438 = vld [vmem:[#allocation2 + $0x2c8] sm:$0xff]
    %v439 = vld [vmem:[#allocation2 + $0x2d0] sm:$0xff]
    %v440 = vld [vmem:[#allocation2 + $0x2d8] sm:$0xff]
    %v441 = vld [vmem:[#allocation2 + $0x2e0] sm:$0xff]
    %v442 = vld [vmem:[#allocation2 + $0x2e8] sm:$0xff]
    %v443 = vld [vmem:[#allocation2 + $0x2f0] sm:$0xff]
    %v444 = vld [vmem:[#allocation2 + $0x2f8] sm:$0xff]
    %v445 = vld [vmem:[#allocation2 + $0x300] sm:$0xff]
    %v446 = vld [vmem:[#allocation2 + $0x308] sm:$0xff]
    %v447 = vld [vmem:[#allocation2 + $0x310] sm:$0xff]
    %v448 = vld [vmem:[#allocation2 + $0x318] sm:$0xff]
    %v449 = vld [vmem:[#allocation2 + $0x320] sm:$0xff]
    %v450 = vld [vmem:[#allocation2 + $0x328] sm:$0xff]
    %v451 = vld [vmem:[#allocation2 + $0x330] sm:$0xff]
    %v452 = vld [vmem:[#allocation2 + $0x338] sm:$0xff]
    %v453 = vld [vmem:[#allocation2 + $0x340] sm:$0xff]
    %v454 = vld [vmem:[#allocation2 + $0x348] sm:$0xff]
    %v455 = vld [vmem:[#allocation2 + $0x350] sm:$0xff]
    %v456 = vld [vmem:[#allocation2 + $0x358] sm:$0xff]
    %v457 = vld [vmem:[#allocation2 + $0x360] sm:$0xff]
    %v458 = vld [vmem:[#allocation2 + $0x368] sm:$0xff]
    %v459 = vld [vmem:[#allocation2 + $0x370] sm:$0xff]
    %v460 = vld [vmem:[#allocation2 + $0x378] sm:$0xff]
    %v461 = vld [vmem:[#allocation2 + $0x380] sm:$0xff]
    %v462 = vld [vmem:[#allocation2 + $0x388] sm:$0xff]
    %v463 = vld [vmem:[#allocation2 + $0x390] sm:$0xff]
    %v464 = vld [vmem:[#allocation2 + $0x398] sm:$0xff]
    %v465 = vld [vmem:[#allocation2 + $0x3a0] sm:$0xff]
    %v466 = vld [vmem:[#allocation2 + $0x3a8] sm:$0xff]
    %v467 = vld [vmem:[#allocation2 + $0x3b0] sm:$0xff]
    %v468 = vld [vmem:[#allocation2 + $0x3b8] sm:$0xff]
    %v469 = vld [vmem:[#allocation2 + $0x3c0] sm:$0xff]
    %v470 = vld [vmem:[#allocation2 + $0x3c8] sm:$0xff]
    %v471 = vld [vmem:[#allocation2 + $0x3d0] sm:$0xff]
    %v472 = vld [vmem:[#allocation2 + $0x3d8] sm:$0xff]
    %v473 = vld [vmem:[#allocation2 + $0x3e0] sm:$0xff]
    %v474 = vld [vmem:[#allocation2 + $0x3e8] sm:$0xff]
    %v475 = vld [vmem:[#allocation2 + $0x3f0] sm:$0xff]
    %v476 = vld [vmem:[#allocation2 + $0x3f8] sm:$0xff]
    %v477 = vld [vmem:[%s4] sm:$0x3]
    %v479 = vlaneseq
    %v480 = vshrl.u32 %v479, 7
    %v481 = vsub.s32 0, %v480
    %v482 = vrot.slane %v477, %v481
    %v483 = vlaneseq
    %v484 = vshrl.u32 %v483, 7
    %v485 = vsub.s32 1, %v484
    %v486 = vrot.slane %v477, %v485
    %v617 = vunpack.c.l.b16 %v349
    %v618 = vunpack.c.h.b16 %v349
    %v619 = vunpack.c.l.b16 %v350
    %v620 = vunpack.c.h.b16 %v350
    %v621 = vunpack.c.l.b16 %v351
    %v622 = vunpack.c.h.b16 %v351
    %v623 = vunpack.c.l.b16 %v352
    %v624 = vunpack.c.h.b16 %v352
    %v625 = vunpack.c.l.b16 %v353
    %v626 = vunpack.c.h.b16 %v353
    %v627 = vunpack.c.l.b16 %v354
    %v628 = vunpack.c.h.b16 %v354
    %v629 = vunpack.c.l.b16 %v355
    %v630 = vunpack.c.h.b16 %v355
    %v631 = vunpack.c.l.b16 %v356
    %v632 = vunpack.c.h.b16 %v356
    %v633 = vunpack.c.l.b16 %v357
    %v634 = vunpack.c.h.b16 %v357
    %v635 = vunpack.c.l.b16 %v358
    %v636 = vunpack.c.h.b16 %v358
    %v637 = vunpack.c.l.b16 %v359
    %v638 = vunpack.c.h.b16 %v359
    %v639 = vunpack.c.l.b16 %v360
    %v640 = vunpack.c.h.b16 %v360
    %v641 = vunpack.c.l.b16 %v361
    %v642 = vunpack.c.h.b16 %v361
    %v643 = vunpack.c.l.b16 %v362
    %v644 = vunpack.c.h.b16 %v362
    %v645 = vunpack.c.l.b16 %v363
    %v646 = vunpack.c.h.b16 %v363
    %v647 = vunpack.c.l.b16 %v364
    %v648 = vunpack.c.h.b16 %v364
    %v649 = vunpack.c.l.b16 %v365
    %v650 = vunpack.c.h.b16 %v365
    %v651 = vunpack.c.l.b16 %v366
    %v652 = vunpack.c.h.b16 %v366
    %v653 = vunpack.c.l.b16 %v367
    %v654 = vunpack.c.h.b16 %v367
    %v655 = vunpack.c.l.b16 %v368
    %v656 = vunpack.c.h.b16 %v368
    %v657 = vunpack.c.l.b16 %v369
    %v658 = vunpack.c.h.b16 %v369
    %v659 = vunpack.c.l.b16 %v370
    %v660 = vunpack.c.h.b16 %v370
    %v661 = vunpack.c.l.b16 %v371
    %v662 = vunpack.c.h.b16 %v371
    %v663 = vunpack.c.l.b16 %v372
    %v664 = vunpack.c.h.b16 %v372
    %v665 = vunpack.c.l.b16 %v373
    %v666 = vunpack.c.h.b16 %v373
    %v667 = vunpack.c.l.b16 %v374
    %v668 = vunpack.c.h.b16 %v374
    %v669 = vunpack.c.l.b16 %v375
    %v670 = vunpack.c.h.b16 %v375
    %v671 = vunpack.c.l.b16 %v376
    %v672 = vunpack.c.h.b16 %v376
    %v673 = vunpack.c.l.b16 %v377
    %v674 = vunpack.c.h.b16 %v377
    %v675 = vunpack.c.l.b16 %v378
    %v676 = vunpack.c.h.b16 %v378
    %v677 = vunpack.c.l.b16 %v379
    %v678 = vunpack.c.h.b16 %v379
    %v679 = vunpack.c.l.b16 %v380
    %v680 = vunpack.c.h.b16 %v380
    %v681 = vunpack.c.l.b16 %v381
    %v682 = vunpack.c.h.b16 %v381
    %v683 = vunpack.c.l.b16 %v382
    %v684 = vunpack.c.h.b16 %v382
    %v685 = vunpack.c.l.b16 %v383
    %v686 = vunpack.c.h.b16 %v383
    %v687 = vunpack.c.l.b16 %v384
    %v688 = vunpack.c.h.b16 %v384
    %v689 = vunpack.c.l.b16 %v385
    %v690 = vunpack.c.h.b16 %v385
    %v691 = vunpack.c.l.b16 %v386
    %v692 = vunpack.c.h.b16 %v386
    %v693 = vunpack.c.l.b16 %v387
    %v694 = vunpack.c.h.b16 %v387
    %v695 = vunpack.c.l.b16 %v388
    %v696 = vunpack.c.h.b16 %v388
    %v697 = vunpack.c.l.b16 %v389
    %v698 = vunpack.c.h.b16 %v389
    %v699 = vunpack.c.l.b16 %v390
    %v700 = vunpack.c.h.b16 %v390
    %v701 = vunpack.c.l.b16 %v391
    %v702 = vunpack.c.h.b16 %v391
    %v703 = vunpack.c.l.b16 %v392
    %v704 = vunpack.c.h.b16 %v392
    %v705 = vunpack.c.l.b16 %v393
    %v706 = vunpack.c.h.b16 %v393
    %v707 = vunpack.c.l.b16 %v394
    %v708 = vunpack.c.h.b16 %v394
    %v709 = vunpack.c.l.b16 %v395
    %v710 = vunpack.c.h.b16 %v395
    %v711 = vunpack.c.l.b16 %v396
    %v712 = vunpack.c.h.b16 %v396
    %v713 = vunpack.c.l.b16 %v397
    %v714 = vunpack.c.h.b16 %v397
    %v715 = vunpack.c.l.b16 %v398
    %v716 = vunpack.c.h.b16 %v398
    %v717 = vunpack.c.l.b16 %v399
    %v718 = vunpack.c.h.b16 %v399
    %v719 = vunpack.c.l.b16 %v400
    %v720 = vunpack.c.h.b16 %v400
    %v721 = vunpack.c.l.b16 %v401
    %v722 = vunpack.c.h.b16 %v401
    %v723 = vunpack.c.l.b16 %v402
    %v724 = vunpack.c.h.b16 %v402
    %v725 = vunpack.c.l.b16 %v403
    %v726 = vunpack.c.h.b16 %v403
    %v727 = vunpack.c.l.b16 %v404
    %v728 = vunpack.c.h.b16 %v404
    %v729 = vunpack.c.l.b16 %v405
    %v730 = vunpack.c.h.b16 %v405
    %v731 = vunpack.c.l.b16 %v406
    %v732 = vunpack.c.h.b16 %v406
    %v733 = vunpack.c.l.b16 %v407
    %v734 = vunpack.c.h.b16 %v407
    %v735 = vunpack.c.l.b16 %v408
    %v736 = vunpack.c.h.b16 %v408
    %v737 = vunpack.c.l.b16 %v409
    %v738 = vunpack.c.h.b16 %v409
    %v739 = vunpack.c.l.b16 %v410
    %v740 = vunpack.c.h.b16 %v410
    %v741 = vunpack.c.l.b16 %v411
    %v742 = vunpack.c.h.b16 %v411
    %v743 = vunpack.c.l.b16 %v412
    %v744 = vunpack.c.h.b16 %v412
    %v745 = vunpack.c.l.b16 %v413
    %v746 = vunpack.c.h.b16 %v413
    %v747 = vunpack.c.l.b16 %v414
    %v748 = vunpack.c.h.b16 %v414
    %v749 = vunpack.c.l.b16 %v415
    %v750 = vunpack.c.h.b16 %v415
    %v751 = vunpack.c.l.b16 %v416
    %v752 = vunpack.c.h.b16 %v416
    %v753 = vunpack.c.l.b16 %v417
    %v754 = vunpack.c.h.b16 %v417
    %v755 = vunpack.c.l.b16 %v418
    %v756 = vunpack.c.h.b16 %v418
    %v757 = vunpack.c.l.b16 %v419
    %v758 = vunpack.c.h.b16 %v419
    %v759 = vunpack.c.l.b16 %v420
    %v760 = vunpack.c.h.b16 %v420
    %v761 = vunpack.c.l.b16 %v421
    %v762 = vunpack.c.h.b16 %v421
    %v763 = vunpack.c.l.b16 %v422
    %v764 = vunpack.c.h.b16 %v422
    %v765 = vunpack.c.l.b16 %v423
    %v766 = vunpack.c.h.b16 %v423
    %v767 = vunpack.c.l.b16 %v424
    %v768 = vunpack.c.h.b16 %v424
    %v769 = vunpack.c.l.b16 %v425
    %v770 = vunpack.c.h.b16 %v425
    %v771 = vunpack.c.l.b16 %v426
    %v772 = vunpack.c.h.b16 %v426
    %v773 = vunpack.c.l.b16 %v427
    %v774 = vunpack.c.h.b16 %v427
    %v775 = vunpack.c.l.b16 %v428
    %v776 = vunpack.c.h.b16 %v428
    %v777 = vunpack.c.l.b16 %v429
    %v778 = vunpack.c.h.b16 %v429
    %v779 = vunpack.c.l.b16 %v430
    %v780 = vunpack.c.h.b16 %v430
    %v781 = vunpack.c.l.b16 %v431
    %v782 = vunpack.c.h.b16 %v431
    %v783 = vunpack.c.l.b16 %v432
    %v784 = vunpack.c.h.b16 %v432
    %v785 = vunpack.c.l.b16 %v433
    %v786 = vunpack.c.h.b16 %v433
    %v787 = vunpack.c.l.b16 %v434
    %v788 = vunpack.c.h.b16 %v434
    %v789 = vunpack.c.l.b16 %v435
    %v790 = vunpack.c.h.b16 %v435
    %v791 = vunpack.c.l.b16 %v436
    %v792 = vunpack.c.h.b16 %v436
    %v793 = vunpack.c.l.b16 %v437
    %v794 = vunpack.c.h.b16 %v437
    %v795 = vunpack.c.l.b16 %v438
    %v796 = vunpack.c.h.b16 %v438
    %v797 = vunpack.c.l.b16 %v439
    %v798 = vunpack.c.h.b16 %v439
    %v799 = vunpack.c.l.b16 %v440
    %v800 = vunpack.c.h.b16 %v440
    %v801 = vunpack.c.l.b16 %v441
    %v802 = vunpack.c.h.b16 %v441
    %v803 = vunpack.c.l.b16 %v442
    %v804 = vunpack.c.h.b16 %v442
    %v805 = vunpack.c.l.b16 %v443
    %v806 = vunpack.c.h.b16 %v443
    %v807 = vunpack.c.l.b16 %v444
    %v808 = vunpack.c.h.b16 %v444
    %v809 = vunpack.c.l.b16 %v445
    %v810 = vunpack.c.h.b16 %v445
    %v811 = vunpack.c.l.b16 %v446
    %v812 = vunpack.c.h.b16 %v446
    %v813 = vunpack.c.l.b16 %v447
    %v814 = vunpack.c.h.b16 %v447
    %v815 = vunpack.c.l.b16 %v448
    %v816 = vunpack.c.h.b16 %v448
    %v817 = vunpack.c.l.b16 %v449
    %v818 = vunpack.c.h.b16 %v449
    %v819 = vunpack.c.l.b16 %v450
    %v820 = vunpack.c.h.b16 %v450
    %v821 = vunpack.c.l.b16 %v451
    %v822 = vunpack.c.h.b16 %v451
    %v823 = vunpack.c.l.b16 %v452
    %v824 = vunpack.c.h.b16 %v452
    %v825 = vunpack.c.l.b16 %v453
    %v826 = vunpack.c.h.b16 %v453
    %v827 = vunpack.c.l.b16 %v454
    %v828 = vunpack.c.h.b16 %v454
    %v829 = vunpack.c.l.b16 %v455
    %v830 = vunpack.c.h.b16 %v455
    %v831 = vunpack.c.l.b16 %v456
    %v832 = vunpack.c.h.b16 %v456
    %v833 = vunpack.c.l.b16 %v457
    %v834 = vunpack.c.h.b16 %v457
    %v835 = vunpack.c.l.b16 %v458
    %v836 = vunpack.c.h.b16 %v458
    %v837 = vunpack.c.l.b16 %v459
    %v838 = vunpack.c.h.b16 %v459
    %v839 = vunpack.c.l.b16 %v460
    %v840 = vunpack.c.h.b16 %v460
    %v841 = vunpack.c.l.b16 %v461
    %v842 = vunpack.c.h.b16 %v461
    %v843 = vunpack.c.l.b16 %v462
    %v844 = vunpack.c.h.b16 %v462
    %v845 = vunpack.c.l.b16 %v463
    %v846 = vunpack.c.h.b16 %v463
    %v847 = vunpack.c.l.b16 %v464
    %v848 = vunpack.c.h.b16 %v464
    %v849 = vunpack.c.l.b16 %v465
    %v850 = vunpack.c.h.b16 %v465
    %v851 = vunpack.c.l.b16 %v466
    %v852 = vunpack.c.h.b16 %v466
    %v853 = vunpack.c.l.b16 %v467
    %v854 = vunpack.c.h.b16 %v467
    %v855 = vunpack.c.l.b16 %v468
    %v856 = vunpack.c.h.b16 %v468
    %v857 = vunpack.c.l.b16 %v469
    %v858 = vunpack.c.h.b16 %v469
    %v859 = vunpack.c.l.b16 %v470
    %v860 = vunpack.c.h.b16 %v470
    %v861 = vunpack.c.l.b16 %v471
    %v862 = vunpack.c.h.b16 %v471
    %v863 = vunpack.c.l.b16 %v472
    %v864 = vunpack.c.h.b16 %v472
    %v865 = vunpack.c.l.b16 %v473
    %v866 = vunpack.c.h.b16 %v473
    %v867 = vunpack.c.l.b16 %v474
    %v868 = vunpack.c.h.b16 %v474
    %v869 = vunpack.c.l.b16 %v475
    %v870 = vunpack.c.h.b16 %v475
    %v871 = vunpack.c.l.b16 %v476
    %v872 = vunpack.c.h.b16 %v476
    %v873 = vpack.c.b16 %v619, %v617
    %v874 = vpack.c.b16 %v620, %v618
    %v875 = vpack.c.b16 %v623, %v621
    %v876 = vpack.c.b16 %v624, %v622
    %v877 = vpack.c.b16 %v627, %v625
    %v878 = vpack.c.b16 %v628, %v626
    %v879 = vpack.c.b16 %v631, %v629
    %v880 = vpack.c.b16 %v632, %v630
    %v881 = vpack.c.b16 %v635, %v633
    %v882 = vpack.c.b16 %v636, %v634
    %v883 = vpack.c.b16 %v639, %v637
    %v884 = vpack.c.b16 %v640, %v638
    %v885 = vpack.c.b16 %v643, %v641
    %v886 = vpack.c.b16 %v644, %v642
    %v887 = vpack.c.b16 %v647, %v645
    %v888 = vpack.c.b16 %v648, %v646
    %v889 = vpack.c.b16 %v651, %v649
    %v890 = vpack.c.b16 %v652, %v650
    %v891 = vpack.c.b16 %v655, %v653
    %v892 = vpack.c.b16 %v656, %v654
    %v893 = vpack.c.b16 %v659, %v657
    %v894 = vpack.c.b16 %v660, %v658
    %v895 = vpack.c.b16 %v663, %v661
    %v896 = vpack.c.b16 %v664, %v662
    %v897 = vpack.c.b16 %v667, %v665
    %v898 = vpack.c.b16 %v668, %v666
    %v899 = vpack.c.b16 %v671, %v669
    %v900 = vpack.c.b16 %v672, %v670
    %v901 = vpack.c.b16 %v675, %v673
    %v902 = vpack.c.b16 %v676, %v674
    %v903 = vpack.c.b16 %v679, %v677
    %v904 = vpack.c.b16 %v680, %v678
    %v905 = vpack.c.b16 %v683, %v681
    %v906 = vpack.c.b16 %v684, %v682
    %v907 = vpack.c.b16 %v687, %v685
    %v908 = vpack.c.b16 %v688, %v686
    %v909 = vpack.c.b16 %v691, %v689
    %v910 = vpack.c.b16 %v692, %v690
    %v911 = vpack.c.b16 %v695, %v693
    %v912 = vpack.c.b16 %v696, %v694
    %v913 = vpack.c.b16 %v699, %v697
    %v914 = vpack.c.b16 %v700, %v698
    %v915 = vpack.c.b16 %v703, %v701
    %v916 = vpack.c.b16 %v704, %v702
    %v917 = vpack.c.b16 %v707, %v705
    %v918 = vpack.c.b16 %v708, %v706
    %v919 = vpack.c.b16 %v711, %v709
    %v920 = vpack.c.b16 %v712, %v710
    %v921 = vpack.c.b16 %v715, %v713
    %v922 = vpack.c.b16 %v716, %v714
    %v923 = vpack.c.b16 %v719, %v717
    %v924 = vpack.c.b16 %v720, %v718
    %v925 = vpack.c.b16 %v723, %v721
    %v926 = vpack.c.b16 %v724, %v722
    %v927 = vpack.c.b16 %v727, %v725
    %v928 = vpack.c.b16 %v728, %v726
    %v929 = vpack.c.b16 %v731, %v729
    %v930 = vpack.c.b16 %v732, %v730
    %v931 = vpack.c.b16 %v735, %v733
    %v932 = vpack.c.b16 %v736, %v734
    %v933 = vpack.c.b16 %v739, %v737
    %v934 = vpack.c.b16 %v740, %v738
    %v935 = vpack.c.b16 %v743, %v741
    %v936 = vpack.c.b16 %v744, %v742
    %v937 = vpack.c.b16 %v747, %v745
    %v938 = vpack.c.b16 %v748, %v746
    %v939 = vpack.c.b16 %v751, %v749
    %v940 = vpack.c.b16 %v752, %v750
    %v941 = vpack.c.b16 %v755, %v753
    %v942 = vpack.c.b16 %v756, %v754
    %v943 = vpack.c.b16 %v759, %v757
    %v944 = vpack.c.b16 %v760, %v758
    %v945 = vpack.c.b16 %v763, %v761
    %v946 = vpack.c.b16 %v764, %v762
    %v947 = vpack.c.b16 %v767, %v765
    %v948 = vpack.c.b16 %v768, %v766
    %v949 = vpack.c.b16 %v771, %v769
    %v950 = vpack.c.b16 %v772, %v770
    %v951 = vpack.c.b16 %v775, %v773
    %v952 = vpack.c.b16 %v776, %v774
    %v953 = vpack.c.b16 %v779, %v777
    %v954 = vpack.c.b16 %v780, %v778
    %v955 = vpack.c.b16 %v783, %v781
    %v956 = vpack.c.b16 %v784, %v782
    %v957 = vpack.c.b16 %v787, %v785
    %v958 = vpack.c.b16 %v788, %v786
    %v959 = vpack.c.b16 %v791, %v789
    %v960 = vpack.c.b16 %v792, %v790
    %v961 = vpack.c.b16 %v795, %v793
    %v962 = vpack.c.b16 %v796, %v794
    %v963 = vpack.c.b16 %v799, %v797
    %v964 = vpack.c.b16 %v800, %v798
    %v965 = vpack.c.b16 %v803, %v801
    %v966 = vpack.c.b16 %v804, %v802
    %v967 = vpack.c.b16 %v807, %v805
    %v968 = vpack.c.b16 %v808, %v806
    %v969 = vpack.c.b16 %v811, %v809
    %v970 = vpack.c.b16 %v812, %v810
    %v971 = vpack.c.b16 %v815, %v813
    %v972 = vpack.c.b16 %v816, %v814
    %v973 = vpack.c.b16 %v819, %v817
    %v974 = vpack.c.b16 %v820, %v818
    %v975 = vpack.c.b16 %v823, %v821
    %v976 = vpack.c.b16 %v824, %v822
    %v977 = vpack.c.b16 %v827, %v825
    %v978 = vpack.c.b16 %v828, %v826
    %v979 = vpack.c.b16 %v831, %v829
    %v980 = vpack.c.b16 %v832, %v830
    %v981 = vpack.c.b16 %v835, %v833
    %v982 = vpack.c.b16 %v836, %v834
    %v983 = vpack.c.b16 %v839, %v837
    %v984 = vpack.c.b16 %v840, %v838
    %v985 = vpack.c.b16 %v843, %v841
    %v986 = vpack.c.b16 %v844, %v842
    %v987 = vpack.c.b16 %v847, %v845
    %v988 = vpack.c.b16 %v848, %v846
    %v989 = vpack.c.b16 %v851, %v849
    %v990 = vpack.c.b16 %v852, %v850
    %v991 = vpack.c.b16 %v855, %v853
    %v992 = vpack.c.b16 %v856, %v854
    %v993 = vpack.c.b16 %v859, %v857
    %v994 = vpack.c.b16 %v860, %v858
    %v995 = vpack.c.b16 %v863, %v861
    %v996 = vpack.c.b16 %v864, %v862
    %v997 = vpack.c.b16 %v867, %v865
    %v998 = vpack.c.b16 %v868, %v866
    %v999 = vpack.c.b16 %v871, %v869
    %v1000 = vpack.c.b16 %v872, %v870
    %1129 = vmatprep.subr.bf16.mxu0 %v874
    %1130 = vmatpush1.bf16.msra.mxu0 %v873
    %1131 = vmatprep.subr.bf16.mxu0 %v876
    %1132 = vmatpush1.bf16.msra.mxu0 %v875
    %1133 = vmatprep.subr.bf16.mxu0 %v878
    %1134 = vmatpush1.bf16.msra.mxu0 %v877
    %1135 = vmatprep.subr.bf16.mxu0 %v880
    %1136 = vmatpush1.bf16.msra.mxu0 %v879
    %1137 = vmatprep.subr.bf16.mxu0 %v882
    %1138 = vmatpush1.bf16.msra.mxu0 %v881
    %1139 = vmatprep.subr.bf16.mxu0 %v884
    %1140 = vmatpush1.bf16.msra.mxu0 %v883
    %1141 = vmatprep.subr.bf16.mxu0 %v886
    %1142 = vmatpush1.bf16.msra.mxu0 %v885
    %1143 = vmatprep.subr.bf16.mxu0 %v888
    %1144 = vmatpush1.bf16.msra.mxu0 %v887
    %1145 = vmatprep.subr.bf16.mxu0 %v890
    %1146 = vmatpush1.bf16.msra.mxu0 %v889
    %1147 = vmatprep.subr.bf16.mxu0 %v892
    %1148 = vmatpush1.bf16.msra.mxu0 %v891
    %1149 = vmatprep.subr.bf16.mxu0 %v894
    %1150 = vmatpush1.bf16.msra.mxu0 %v893
    %1151 = vmatprep.subr.bf16.mxu0 %v896
    %1152 = vmatpush1.bf16.msra.mxu0 %v895
    %1153 = vmatprep.subr.bf16.mxu0 %v898
    %1154 = vmatpush1.bf16.msra.mxu0 %v897
    %1155 = vmatprep.subr.bf16.mxu0 %v900
    %1156 = vmatpush1.bf16.msra.mxu0 %v899
    %1157 = vmatprep.subr.bf16.mxu0 %v902
    %1158 = vmatpush1.bf16.msra.mxu0 %v901
    %1159 = vmatprep.subr.bf16.mxu0 %v904
    %1160 = vmatpush1.bf16.msra.mxu0 %v903
    %1161 = vmatprep.mubr.bf16.mxu0 %v342
    %1162 = vmatmul.mubr.bf16.gmra.mrb[0].mxu0 %v341
    %v1163 = vpop.f32.mrb[0].mxu0
    %v1164 = vadd.f32 %v482, %v1163
    %v1165 = vpop.f32.mrb[0].mxu0
    %v1166 = vadd.f32 %v486, %v1165
    %v1167 = vpop.f32.mrb[0].mxu0
    %v1168 = vpop.f32.mrb[0].mxu0
    %1169 = vdwg.mxu0
    %1170 = vmatprep.subr.bf16.mxu0 %v906
    %1171 = vmatpush1.bf16.msra.mxu0 %v905
    %1172 = vmatprep.subr.bf16.mxu0 %v908
    %1173 = vmatpush1.bf16.msra.mxu0 %v907
    %1174 = vmatprep.subr.bf16.mxu0 %v910
    %1175 = vmatpush1.bf16.msra.mxu0 %v909
    %1176 = vmatprep.subr.bf16.mxu0 %v912
    %1177 = vmatpush1.bf16.msra.mxu0 %v911
    %1178 = vmatprep.subr.bf16.mxu0 %v914
    %1179 = vmatpush1.bf16.msra.mxu0 %v913
    %1180 = vmatprep.subr.bf16.mxu0 %v916
    %1181 = vmatpush1.bf16.msra.mxu0 %v915
    %1182 = vmatprep.subr.bf16.mxu0 %v918
    %1183 = vmatpush1.bf16.msra.mxu0 %v917
    %1184 = vmatprep.subr.bf16.mxu0 %v920
    %1185 = vmatpush1.bf16.msra.mxu0 %v919
    %1186 = vmatprep.subr.bf16.mxu0 %v922
    %1187 = vmatpush1.bf16.msra.mxu0 %v921
    %1188 = vmatprep.subr.bf16.mxu0 %v924
    %1189 = vmatpush1.bf16.msra.mxu0 %v923
    %1190 = vmatprep.subr.bf16.mxu0 %v926
    %1191 = vmatpush1.bf16.msra.mxu0 %v925
    %1192 = vmatprep.subr.bf16.mxu0 %v928
    %1193 = vmatpush1.bf16.msra.mxu0 %v927
    %1194 = vmatprep.subr.bf16.mxu0 %v930
    %1195 = vmatpush1.bf16.msra.mxu0 %v929
    %1196 = vmatprep.subr.bf16.mxu0 %v932
    %1197 = vmatpush1.bf16.msra.mxu0 %v931
    %1198 = vmatprep.subr.bf16.mxu0 %v934
    %1199 = vmatpush1.bf16.msra.mxu0 %v933
    %1200 = vmatprep.subr.bf16.mxu0 %v936
    %1201 = vmatpush1.bf16.msra.mxu0 %v935
    %1202 = vmatprep.mubr.bf16.mxu0 %v344
    %1203 = vmatmul.mubr.bf16.gmra.mrb[0].mxu0 %v343
    %v1204 = vpop.f32.mrb[0].mxu0
    %v1205 = vadd.f32 %v1164, %v1204
    %v1206 = vpop.f32.mrb[0].mxu0
    %v1207 = vadd.f32 %v1166, %v1206
    %v1208 = vpop.f32.mrb[0].mxu0
    %v1209 = vpop.f32.mrb[0].mxu0
    %1210 = vdwg.mxu0
    %1211 = vmatprep.subr.bf16.mxu0 %v938
    %1212 = vmatpush1.bf16.msra.mxu0 %v937
    %1213 = vmatprep.subr.bf16.mxu0 %v940
    %1214 = vmatpush1.bf16.msra.mxu0 %v939
    %1215 = vmatprep.subr.bf16.mxu0 %v942
    %1216 = vmatpush1.bf16.msra.mxu0 %v941
    %1217 = vmatprep.subr.bf16.mxu0 %v944
    %1218 = vmatpush1.bf16.msra.mxu0 %v943
    %1219 = vmatprep.subr.bf16.mxu0 %v946
    %1220 = vmatpush1.bf16.msra.mxu0 %v945
    %1221 = vmatprep.subr.bf16.mxu0 %v948
    %1222 = vmatpush1.bf16.msra.mxu0 %v947
    %1223 = vmatprep.subr.bf16.mxu0 %v950
    %1224 = vmatpush1.bf16.msra.mxu0 %v949
    %1225 = vmatprep.subr.bf16.mxu0 %v952
    %1226 = vmatpush1.bf16.msra.mxu0 %v951
    %1227 = vmatprep.subr.bf16.mxu0 %v954
    %1228 = vmatpush1.bf16.msra.mxu0 %v953
    %1229 = vmatprep.subr.bf16.mxu0 %v956
    %1230 = vmatpush1.bf16.msra.mxu0 %v955
    %1231 = vmatprep.subr.bf16.mxu0 %v958
    %1232 = vmatpush1.bf16.msra.mxu0 %v957
    %1233 = vmatprep.subr.bf16.mxu0 %v960
    %1234 = vmatpush1.bf16.msra.mxu0 %v959
    %1235 = vmatprep.subr.bf16.mxu0 %v962
    %1236 = vmatpush1.bf16.msra.mxu0 %v961
    %1237 = vmatprep.subr.bf16.mxu0 %v964
    %1238 = vmatpush1.bf16.msra.mxu0 %v963
    %1239 = vmatprep.subr.bf16.mxu0 %v966
    %1240 = vmatpush1.bf16.msra.mxu0 %v965
    %1241 = vmatprep.subr.bf16.mxu0 %v968
    %1242 = vmatpush1.bf16.msra.mxu0 %v967
    %1243 = vmatprep.mubr.bf16.mxu0 %v346
    %1244 = vmatmul.mubr.bf16.gmra.mrb[0].mxu0 %v345
    %v1245 = vpop.f32.mrb[0].mxu0
    %v1246 = vadd.f32 %v1205, %v1245
    %v1247 = vpop.f32.mrb[0].mxu0
    %v1248 = vadd.f32 %v1207, %v1247
    %v1249 = vpop.f32.mrb[0].mxu0
    %v1250 = vpop.f32.mrb[0].mxu0
    %1251 = vdwg.mxu0
    %1252 = vmatprep.subr.bf16.mxu0 %v970
    %1253 = vmatpush1.bf16.msra.mxu0 %v969
    %1254 = vmatprep.subr.bf16.mxu0 %v972
    %1255 = vmatpush1.bf16.msra.mxu0 %v971
    %1256 = vmatprep.subr.bf16.mxu0 %v974
    %1257 = vmatpush1.bf16.msra.mxu0 %v973
    %1258 = vmatprep.subr.bf16.mxu0 %v976
    %1259 = vmatpush1.bf16.msra.mxu0 %v975
    %1260 = vmatprep.subr.bf16.mxu0 %v978
    %1261 = vmatpush1.bf16.msra.mxu0 %v977
    %1262 = vmatprep.subr.bf16.mxu0 %v980
    %1263 = vmatpush1.bf16.msra.mxu0 %v979
    %1264 = vmatprep.subr.bf16.mxu0 %v982
    %1265 = vmatpush1.bf16.msra.mxu0 %v981
    %1266 = vmatprep.subr.bf16.mxu0 %v984
    %1267 = vmatpush1.bf16.msra.mxu0 %v983
    %1268 = vmatprep.subr.bf16.mxu0 %v986
    %1269 = vmatpush1.bf16.msra.mxu0 %v985
    %1270 = vmatprep.subr.bf16.mxu0 %v988
    %1271 = vmatpush1.bf16.msra.mxu0 %v987
    %1272 = vmatprep.subr.bf16.mxu0 %v990
    %1273 = vmatpush1.bf16.msra.mxu0 %v989
    %1274 = vmatprep.subr.bf16.mxu0 %v992
    %1275 = vmatpush1.bf16.msra.mxu0 %v991
    %1276 = vmatprep.subr.bf16.mxu0 %v994
    %1277 = vmatpush1.bf16.msra.mxu0 %v993
    %1278 = vmatprep.subr.bf16.mxu0 %v996
    %1279 = vmatpush1.bf16.msra.mxu0 %v995
    %1280 = vmatprep.subr.bf16.mxu0 %v998
    %1281 = vmatpush1.bf16.msra.mxu0 %v997
    %1282 = vmatprep.subr.bf16.mxu0 %v1000
    %1283 = vmatpush1.bf16.msra.mxu0 %v999
    %1284 = vmatprep.mubr.bf16.mxu0 %v348
    %1285 = vmatmul.mubr.bf16.gmra.mrb[0].mxu0 %v347
    %v1286 = vpop.f32.mrb[0].mxu0
    %v1287 = vadd.f32 %v1246, %v1286
    %v1288 = vpop.f32.mrb[0].mxu0
    %v1289 = vadd.f32 %v1248, %v1288
    %v1290 = vpop.f32.mrb[0].mxu0
    %v1291 = vpop.f32.mrb[0].mxu0
    %1292 = vdwg.mxu0
    %v1293 = vmul.f32 %v1287, 0.1
    %v1294 = vmul.f32 %v1289, 0.1
    %v1295 = vmax.f32 %v1287, %v1293
    %v1296 = vmax.f32 %v1289, %v1294
    %v1297 = vpack.c.bf16 %v1295, %v1295
    %v1298 = vpack.c.bf16 %v1296, %v1296
    %v1299 = vld [vmem:[%s5] sm:$0xf]
    %v1300 = vld [vmem:[%s5 + $0x4] sm:$0xf]
    %v1301 = vld [vmem:[%s5 + $0x8] sm:$0xf]
    %v1302 = vld [vmem:[%s5 + $0xc] sm:$0xf]
    %v1303 = vld [vmem:[%s5 + $0x10] sm:$0xf]
    %v1304 = vld [vmem:[%s5 + $0x14] sm:$0xf]
    %v1305 = vld [vmem:[%s5 + $0x18] sm:$0xf]
    %v1306 = vld [vmem:[%s5 + $0x1c] sm:$0xf]
    %v1307 = vld [vmem:[%s5 + $0x20] sm:$0xf]
    %v1308 = vld [vmem:[%s5 + $0x24] sm:$0xf]
    %v1309 = vld [vmem:[%s5 + $0x28] sm:$0xf]
    %v1310 = vld [vmem:[%s5 + $0x2c] sm:$0xf]
    %v1311 = vld [vmem:[%s5 + $0x30] sm:$0xf]
    %v1312 = vld [vmem:[%s5 + $0x34] sm:$0xf]
    %v1313 = vld [vmem:[%s5 + $0x38] sm:$0xf]
    %v1314 = vld [vmem:[%s5 + $0x3c] sm:$0xf]
    %v1315 = vld [vmem:[%s5 + $0x40] sm:$0xf]
    %v1316 = vld [vmem:[%s5 + $0x44] sm:$0xf]
    %v1317 = vld [vmem:[%s5 + $0x48] sm:$0xf]
    %v1318 = vld [vmem:[%s5 + $0x4c] sm:$0xf]
    %v1319 = vld [vmem:[%s5 + $0x50] sm:$0xf]
    %v1320 = vld [vmem:[%s5 + $0x54] sm:$0xf]
    %v1321 = vld [vmem:[%s5 + $0x58] sm:$0xf]
    %v1322 = vld [vmem:[%s5 + $0x5c] sm:$0xf]
    %v1323 = vld [vmem:[%s5 + $0x60] sm:$0xf]
    %v1324 = vld [vmem:[%s5 + $0x64] sm:$0xf]
    %v1325 = vld [vmem:[%s5 + $0x68] sm:$0xf]
    %v1326 = vld [vmem:[%s5 + $0x6c] sm:$0xf]
    %v1327 = vld [vmem:[%s5 + $0x70] sm:$0xf]
    %v1328 = vld [vmem:[%s5 + $0x74] sm:$0xf]
    %v1329 = vld [vmem:[%s5 + $0x78] sm:$0xf]
    %v1330 = vld [vmem:[%s5 + $0x7c] sm:$0xf]
    %v1331 = vld [vmem:[%s6] sm:$0x1]
    %v1333 = vlaneseq
    %v1334 = vshrl.u32 %v1333, 7
    %v1335 = vsub.s32 0, %v1334
    %v1336 = vrot.slane %v1331, %v1335
    %v1370 = vunpack.c.l.b16 %v1299
    %v1371 = vunpack.c.l.b16 %v1300
    %v1372 = vunpack.c.l.b16 %v1301
    %v1373 = vunpack.c.l.b16 %v1302
    %v1374 = vunpack.c.l.b16 %v1303
    %v1375 = vunpack.c.l.b16 %v1304
    %v1376 = vunpack.c.l.b16 %v1305
    %v1377 = vunpack.c.l.b16 %v1306
    %v1378 = vunpack.c.l.b16 %v1307
    %v1379 = vunpack.c.l.b16 %v1308
    %v1380 = vunpack.c.l.b16 %v1309
    %v1381 = vunpack.c.l.b16 %v1310
    %v1382 = vunpack.c.l.b16 %v1311
    %v1383 = vunpack.c.l.b16 %v1312
    %v1384 = vunpack.c.l.b16 %v1313
    %v1385 = vunpack.c.l.b16 %v1314
    %v1386 = vunpack.c.l.b16 %v1315
    %v1387 = vunpack.c.l.b16 %v1316
    %v1388 = vunpack.c.l.b16 %v1317
    %v1389 = vunpack.c.l.b16 %v1318
    %v1390 = vunpack.c.l.b16 %v1319
    %v1391 = vunpack.c.l.b16 %v1320
    %v1392 = vunpack.c.l.b16 %v1321
    %v1393 = vunpack.c.l.b16 %v1322
    %v1394 = vunpack.c.l.b16 %v1323
    %v1395 = vunpack.c.l.b16 %v1324
    %v1396 = vunpack.c.l.b16 %v1325
    %v1397 = vunpack.c.l.b16 %v1326
    %v1398 = vunpack.c.l.b16 %v1327
    %v1399 = vunpack.c.l.b16 %v1328
    %v1400 = vunpack.c.l.b16 %v1329
    %v1401 = vunpack.c.l.b16 %v1330
    %v1402 = vpack.c.b16 %v1371, %v1370
    %v1403 = vpack.c.b16 %v1373, %v1372
    %v1404 = vpack.c.b16 %v1375, %v1374
    %v1405 = vpack.c.b16 %v1377, %v1376
    %v1406 = vpack.c.b16 %v1379, %v1378
    %v1407 = vpack.c.b16 %v1381, %v1380
    %v1408 = vpack.c.b16 %v1383, %v1382
    %v1409 = vpack.c.b16 %v1385, %v1384
    %v1410 = vpack.c.b16 %v1387, %v1386
    %v1411 = vpack.c.b16 %v1389, %v1388
    %v1412 = vpack.c.b16 %v1391, %v1390
    %v1413 = vpack.c.b16 %v1393, %v1392
    %v1414 = vpack.c.b16 %v1395, %v1394
    %v1415 = vpack.c.b16 %v1397, %v1396
    %v1416 = vpack.c.b16 %v1399, %v1398
    %v1417 = vpack.c.b16 %v1401, %v1400
    %1434 = vmatprep.subr.bf16.mxu0 0
    %1435 = vmatpush1.bf16.msra.mxu0 %v1402
    %1436 = vmatprep.subr.bf16.mxu0 0
    %1437 = vmatpush1.bf16.msra.mxu0 %v1403
    %1438 = vmatprep.subr.bf16.mxu0 0
    %1439 = vmatpush1.bf16.msra.mxu0 %v1404
    %1440 = vmatprep.subr.bf16.mxu0 0
    %1441 = vmatpush1.bf16.msra.mxu0 %v1405
    %1442 = vmatprep.subr.bf16.mxu0 0
    %1443 = vmatpush1.bf16.msra.mxu0 %v1406
    %1444 = vmatprep.subr.bf16.mxu0 0
    %1445 = vmatpush1.bf16.msra.mxu0 %v1407
    %1446 = vmatprep.subr.bf16.mxu0 0
    %1447 = vmatpush1.bf16.msra.mxu0 %v1408
    %1448 = vmatprep.subr.bf16.mxu0 0
    %1449 = vmatpush1.bf16.msra.mxu0 %v1409
    %1450 = vmatprep.subr.bf16.mxu0 0
    %1451 = vmatpush1.bf16.msra.mxu0 %v1410
    %1452 = vmatprep.subr.bf16.mxu0 0
    %1453 = vmatpush1.bf16.msra.mxu0 %v1411
    %1454 = vmatprep.subr.bf16.mxu0 0
    %1455 = vmatpush1.bf16.msra.mxu0 %v1412
    %1456 = vmatprep.subr.bf16.mxu0 0
    %1457 = vmatpush1.bf16.msra.mxu0 %v1413
    %1458 = vmatprep.subr.bf16.mxu0 0
    %1459 = vmatpush1.bf16.msra.mxu0 %v1414
    %1460 = vmatprep.subr.bf16.mxu0 0
    %1461 = vmatpush1.bf16.msra.mxu0 %v1415
    %1462 = vmatprep.subr.bf16.mxu0 0
    %1463 = vmatpush1.bf16.msra.mxu0 %v1416
    %1464 = vmatprep.subr.bf16.mxu0 0
    %1465 = vmatpush1.bf16.msra.mxu0 %v1417
    %1466 = vmatprep.mubr.bf16.mxu0 %v1298
    %1467 = vmatmul.mubr.bf16.gmra.mrb[0].mxu0 %v1297
    %v1468 = vpop.f32.mrb[0].mxu0
    %v1469 = vadd.f32 %v1336, %v1468
    %v1470 = vpop.f32.mrb[0].mxu0
    %v1471 = vpop.f32.mrb[0].mxu0
    %v1472 = vpop.f32.mrb[0].mxu0
    %1473 = vdwg.mxu0
    %v1474 = vmul.f32 %v1469, 0.1
    %v1475 = vmax.f32 %v1469, %v1474
    %v1476 = vpack.c.bf16 %v1475, %v1475
    %v1477 = vld [vmem:[%s7] sm:$0xf]
    %v1478 = vld [vmem:[%s7 + $0x4] sm:$0xf]
    %v1479 = vld [vmem:[%s7 + $0x8] sm:$0xf]
    %v1480 = vld [vmem:[%s7 + $0xc] sm:$0xf]
    %v1481 = vld [vmem:[%s7 + $0x10] sm:$0xf]
    %v1482 = vld [vmem:[%s7 + $0x14] sm:$0xf]
    %v1483 = vld [vmem:[%s7 + $0x18] sm:$0xf]
    %v1484 = vld [vmem:[%s7 + $0x1c] sm:$0xf]
    %v1485 = vld [vmem:[%s8] sm:$0x1]
    %v1487 = vlaneseq
    %v1488 = vshrl.u32 %v1487, 7
    %v1489 = vsub.s32 0, %v1488
    %v1490 = vrot.slane %v1485, %v1489
    %v1500 = vunpack.c.l.b16 %v1477
    %v1501 = vunpack.c.l.b16 %v1478
    %v1502 = vunpack.c.l.b16 %v1479
    %v1503 = vunpack.c.l.b16 %v1480
    %v1504 = vunpack.c.l.b16 %v1481
    %v1505 = vunpack.c.l.b16 %v1482
    %v1506 = vunpack.c.l.b16 %v1483
    %v1507 = vunpack.c.l.b16 %v1484
    %v1508 = vpack.c.b16 %v1501, %v1500
    %v1509 = vpack.c.b16 %v1503, %v1502
    %v1510 = vpack.c.b16 %v1505, %v1504
    %v1511 = vpack.c.b16 %v1507, %v1506
    %vm1516 = vcmask 523264
    %v1518 = vsel %vm1516, %v1476, 0
    %1520 = vmatprep.subr.bf16.mxu0 0
    %1521 = vmatpush1.bf16.msra.mxu0 %v1508
    %1522 = vmatprep.subr.bf16.mxu0 0
    %1523 = vmatpush1.bf16.msra.mxu0 %v1509
    %1524 = vmatprep.subr.bf16.mxu0 0
    %1525 = vmatpush1.bf16.msra.mxu0 %v1510
    %1526 = vmatprep.subr.bf16.mxu0 0
    %1527 = vmatpush1.bf16.msra.mxu0 %v1511
    %1528 = vmatprep.subr.bf16.mxu0 0
    %1529 = vmatpush1.bf16.msra.mxu0 0
    %1530 = vmatprep.subr.bf16.mxu0 0
    %1531 = vmatpush1.bf16.msra.mxu0 0
    %1532 = vmatprep.subr.bf16.mxu0 0
    %1533 = vmatpush1.bf16.msra.mxu0 0
    %1534 = vmatprep.subr.bf16.mxu0 0
    %1535 = vmatpush1.bf16.msra.mxu0 0
    %1536 = vmatprep.subr.bf16.mxu0 0
    %1537 = vmatpush1.bf16.msra.mxu0 0
    %1538 = vmatprep.subr.bf16.mxu0 0
    %1539 = vmatpush1.bf16.msra.mxu0 0
    %1540 = vmatprep.subr.bf16.mxu0 0
    %1541 = vmatpush1.bf16.msra.mxu0 0
    %1542 = vmatprep.subr.bf16.mxu0 0
    %1543 = vmatpush1.bf16.msra.mxu0 0
    %1544 = vmatprep.subr.bf16.mxu0 0
    %1545 = vmatpush1.bf16.msra.mxu0 0
    %1546 = vmatprep.subr.bf16.mxu0 0
    %1547 = vmatpush1.bf16.msra.mxu0 0
    %1548 = vmatprep.subr.bf16.mxu0 0
    %1549 = vmatpush1.bf16.msra.mxu0 0
    %1550 = vmatprep.subr.bf16.mxu0 0
    %1551 = vmatpush1.bf16.msra.mxu0 0
    %1552 = vmatprep.mubr.bf16.mxu0 0
    %1553 = vmatmul.mubr.bf16.gmra.mrb[0].mxu0 %v1518
    %v1554 = vpop.f32.mrb[0].mxu0
    %v1555 = vadd.f32 %v1490, %v1554
    %v1556 = vpop.f32.mrb[0].mxu0
    %v1557 = vpop.f32.mrb[0].mxu0
    %v1558 = vpop.f32.mrb[0].mxu0
    %1559 = vdwg.mxu0
    %vm1560 = vcmask 15360
    %1561 = vst.msk [vmem:[%s9] sm:$0xff] %vm1560, %v1555
    // Predicated region
    $region42: #{tpu_custom_call.1} parent=1 // pred_check
      _
    $region43: #{tpu_custom_call.1} parent=1 // pred_check_branch
      %1563 = sbr.rel (0) target = $region45
    $region44: #{tpu_custom_call.1} parent=1 // pred_region
      _
    $region45: #{tpu_custom_call.1} parent=1 // pred_fallthru
      _
    // Predicated region
    $region46: #{tpu_custom_call.1} parent=1 // pred_check
      _
    $region47: #{tpu_custom_call.1} parent=1 // pred_check_branch
      %1565 = sbr.rel (0) target = $region49
    $region48: #{tpu_custom_call.1} parent=1 // pred_region
      _
    $region49: #{tpu_custom_call.1} parent=1 // pred_fallthru
      _
    %1566 = vsyncpa [#allocation3], 1

// kernel: tpu_custom_call.1
$region0: #{tpu_custom_call.1}
  #allocation0 [shape = 'u32[]', space=smem, size = 0x4, offset = 0x4, fixed_abs, tag = 'smem constant byte address 0x4 - core index']
  #allocation1 [shape = 'u32[144,128]{1,0:T(1,128)}', space=vmem, size = 0x12000, scoped, tag = 'internal scratch']
  %s0 = inlined_call_operand.vmem [shape: f32[8,3], index: 0, kind: input, shape index: {}]
  %s1 = inlined_call_operand.vmem [shape: bf16[3,1024], index: 1, kind: input, shape index: {}]
  %s2 = inlined_call_operand.vmem [shape: f32[1,1024], index: 2, kind: input, shape index: {}]
  %s3 = inlined_call_operand.hbm [shape: bf16[1024,256], index: 3, kind: input, shape index: {}]
  %s4 = inlined_call_operand.vmem [shape: f32[1,256], index: 4, kind: input, shape index: {}]
  %s5 = inlined_call_operand.vmem [shape: bf16[256,64], index: 5, kind: input, shape index: {}]
  %s6 = inlined_call_operand.vmem [shape: f32[1,64], index: 6, kind: input, shape index: {}]
  %s7 = inlined_call_operand.vmem [shape: bf16[64,2], index: 7, kind: input, shape index: {}]
  %s8 = inlined_call_operand.vmem [shape: f32[1,2], index: 8, kind: input, shape index: {}]
  %s9 = inlined_call_operand.vmem [shape: f32[8,2], index: 9, kind: output, shape index: {}]
  %s10 = sld [smem:[#allocation0]]
  $region50: #{tpu_custom_call.1} parent=0
    _
  %s12 = ssub.s32 1, %s10
  %s13 = scalar_select 0, %s12, %s10
  $region1: #{tpu_custom_call.1} parent=0
    #allocation2 [shape = 'u8[524288]{0}', space=vmem, size = 0x80000, scoped, tag = 'input window, operand 3, single buffered']
    #allocation3 [shape = 's32[1]{0}', space=sflag, size = 0x4, scoped, tag = 'scoped memory for tpu_custom_call.1']
    %14 = vsyncpa [#allocation3], 0
    // Predicated region
    $region2: #{tpu_custom_call.1} parent=1 // pred_check
      _
    $region3: #{tpu_custom_call.1} parent=1 // pred_check_branch
      %16 = sbr.rel (0) target = $region5
    $region4: #{tpu_custom_call.1} parent=1 // pred_region
      _
    $region5: #{tpu_custom_call.1} parent=1 // pred_fallthru
      _
    // Predicated region
    $region6: #{tpu_custom_call.1} parent=1 // pred_check
      _
    $region7: #{tpu_custom_call.1} parent=1 // pred_check_branch
      %18 = sbr.rel (0) target = $region9
    $region8: #{tpu_custom_call.1} parent=1 // pred_region
      _
    $region9: #{tpu_custom_call.1} parent=1 // pred_fallthru
      _
    // Predicated region
    $region10: #{tpu_custom_call.1} parent=1 // pred_check
      _
    $region11: #{tpu_custom_call.1} parent=1 // pred_check_branch
      %20 = sbr.rel (0) target = $region13
    $region12: #{tpu_custom_call.1} parent=1 // pred_region
      _
    $region13: #{tpu_custom_call.1} parent=1 // pred_fallthru
      _
    // Predicated region
    $region14: #{tpu_custom_call.1} parent=1 // pred_check
      _
    $region15: #{tpu_custom_call.1} parent=1 // pred_check_branch
      %22 = sbr.rel (0) target = $region17
    $region16: #{tpu_custom_call.1} parent=1 // pred_region
      %s24 = ssub.s32 16384, 16384
      %25 = vsyncadd [#allocation3], %s24
      %s26 = sshll.u32 [#allocation2], 4
      %s27 = int_to_ptr.vmem [resolvable:$true] %s26
      %32 = dma.hbm_to_vmem [thread:$0]  %s3, 16384, %s27, [#allocation3], 128, 128, 8
    $region17: #{tpu_custom_call.1} parent=1 // pred_fallthru
      _
    // Predicated region
    $region18: #{tpu_custom_call.1} parent=1 // pred_check
      _
    $region19: #{tpu_custom_call.1} parent=1 // pred_check_branch
      %34 = sbr.rel (0) target = $region21
    $region20: #{tpu_custom_call.1} parent=1 // pred_region
      _
    $region21: #{tpu_custom_call.1} parent=1 // pred_fallthru
      _
    // Predicated region
    $region22: #{tpu_custom_call.1} parent=1 // pred_check
      _
    $region23: #{tpu_custom_call.1} parent=1 // pred_check_branch
      %36 = sbr.rel (0) target = $region25
    $region24: #{tpu_custom_call.1} parent=1 // pred_region
      _
    $region25: #{tpu_custom_call.1} parent=1 // pred_fallthru
      _
    // Predicated region
    $region26: #{tpu_custom_call.1} parent=1 // pred_check
      _
    $region27: #{tpu_custom_call.1} parent=1 // pred_check_branch
      %38 = sbr.rel (0) target = $region29
    $region28: #{tpu_custom_call.1} parent=1 // pred_region
      _
    $region29: #{tpu_custom_call.1} parent=1 // pred_fallthru
      _
    // Predicated region
    $region30: #{tpu_custom_call.1} parent=1 // pred_check
      _
    $region31: #{tpu_custom_call.1} parent=1 // pred_check_branch
      %40 = sbr.rel (0) target = $region33
    $region32: #{tpu_custom_call.1} parent=1 // pred_region
      _
    $region33: #{tpu_custom_call.1} parent=1 // pred_fallthru
      _
    // Predicated region
    $region34: #{tpu_custom_call.1} parent=1 // pred_check
      _
    $region35: #{tpu_custom_call.1} parent=1 // pred_check_branch
      %42 = sbr.rel (0) target = $region37
    $region36: #{tpu_custom_call.1} parent=1 // pred_region
      _
    $region37: #{tpu_custom_call.1} parent=1 // pred_fallthru
      _
    // Predicated region
    $region38: #{tpu_custom_call.1} parent=1 // pred_check
      _
    $region39: #{tpu_custom_call.1} parent=1 // pred_check_branch
      %44 = sbr.rel (0) target = $region41
    $region40: #{tpu_custom_call.1} parent=1 // pred_region
      %45 = dma.done [#allocation3], 16384
    $region41: #{tpu_custom_call.1} parent=1 // pred_fallthru
      _
    %v47 = vld [vmem:[%s0] sm:$0xff]
    %v48 = vpack.c.bf16 %v47, %v47
    %v49 = vld [vmem:[%s1] sm:$0xff]
    %v50 = vld [vmem:[%s1 + $0x8] sm:$0xff]
    %v51 = vld [vmem:[%s2] sm:$0xff]
    %v53 = vlaneseq
    %v54 = vshrl.u32 %v53, 7
    %v55 = vsub.s32 0, %v54
    %v56 = vrot.slane %v51, %v55
    %v57 = vlaneseq
    %v58 = vshrl.u32 %v57, 7
    %v59 = vsub.s32 1, %v58
    %v60 = vrot.slane %v51, %v59
    %v61 = vlaneseq
    %v62 = vshrl.u32 %v61, 7
    %v63 = vsub.s32 2, %v62
    %v64 = vrot.slane %v51, %v63
    %v65 = vlaneseq
    %v66 = vshrl.u32 %v65, 7
    %v67 = vsub.s32 3, %v66
    %v68 = vrot.slane %v51, %v67
    %v69 = vlaneseq
    %v70 = vshrl.u32 %v69, 7
    %v71 = vsub.s32 4, %v70
    %v72 = vrot.slane %v51, %v71
    %v73 = vlaneseq
    %v74 = vshrl.u32 %v73, 7
    %v75 = vsub.s32 5, %v74
    %v76 = vrot.slane %v51, %v75
    %v77 = vlaneseq
    %v78 = vshrl.u32 %v77, 7
    %v79 = vsub.s32 6, %v78
    %v80 = vrot.slane %v51, %v79
    %v81 = vlaneseq
    %v82 = vshrl.u32 %v81, 7
    %v83 = vsub.s32 7, %v82
    %v84 = vrot.slane %v51, %v83
    %v95 = vcombine.high %v49, %v49
    %v97 = vunpack.c.l.s4 1983009808
    %v98 = vunpack.c.0.s8 %v97
    %v99 = vlaneseq
    %v100 = vshrl.u32 %v99, 7
    %v101 = vsub.s32 %v98, %v100
    %v102 = vrot.slane %v49, %v101
    %v104 = vunpack.c.l.s4 1983009808
    %v105 = vunpack.c.0.s8 %v104
    %v106 = vlaneseq
    %v107 = vshrl.u32 %v106, 7
    %v108 = vsub.s32 %v105, %v107
    %v109 = vrot.slane %v95, %v108
    %v110 = vcombine.high %v102, %v102
    %v111 = vcombine.high %v109, %v109
    %v112 = vcombine.high %v50, %v50
    %v114 = vunpack.c.l.s4 1983009808
    %v115 = vunpack.c.0.s8 %v114
    %v116 = vlaneseq
    %v117 = vshrl.u32 %v116, 7
    %v118 = vsub.s32 %v115, %v117
    %v119 = vrot.slane %v50, %v118
    %v121 = vunpack.c.l.s4 1983009808
    %v122 = vunpack.c.0.s8 %v121
    %v123 = vlaneseq
    %v124 = vshrl.u32 %v123, 7
    %v125 = vsub.s32 %v122, %v124
    %v126 = vrot.slane %v112, %v125
    %v127 = vcombine.high %v119, %v119
    %v128 = vcombine.high %v126, %v126
    %vm129 = vcmask 23552
    %v131 = vsel %vm129, %v48, 0
    %vm133 = vcmask 1040384
    %vm134 = vcmask 1041408
    %v135 = vsel %vm133, 4294967295, 65535
    %v136 = vsel %vm134, %v135, 0
    %v138 = vand.u32 %v102, %v136
    %v141 = vand.u32 %v110, %v136
    %v144 = vand.u32 %v109, %v136
    %v147 = vand.u32 %v111, %v136
    %v150 = vand.u32 %v119, %v136
    %v153 = vand.u32 %v127, %v136
    %v156 = vand.u32 %v126, %v136
    %v159 = vand.u32 %v128, %v136
    %161 = vmatprep.subr.bf16.mxu0 %v141
    %162 = vmatpush1.bf16.msra.mxu0 %v138
    %163 = vmatprep.subr.bf16.mxu0 0
    %164 = vmatpush1.bf16.msra.mxu0 0
    %165 = vmatprep.subr.bf16.mxu0 0
    %166 = vmatpush1.bf16.msra.mxu0 0
    %167 = vmatprep.subr.bf16.mxu0 0
    %168 = vmatpush1.bf16.msra.mxu0 0
    %169 = vmatprep.subr.bf16.mxu0 0
    %170 = vmatpush1.bf16.msra.mxu0 0
    %171 = vmatprep.subr.bf16.mxu0 0
    %172 = vmatpush1.bf16.msra.mxu0 0
    %173 = vmatprep.subr.bf16.mxu0 0
    %174 = vmatpush1.bf16.msra.mxu0 0
    %175 = vmatprep.subr.bf16.mxu0 0
    %176 = vmatpush1.bf16.msra.mxu0 0
    %177 = vmatprep.subr.bf16.mxu0 0
    %178 = vmatpush1.bf16.msra.mxu0 0
    %179 = vmatprep.subr.bf16.mxu0 0
    %180 = vmatpush1.bf16.msra.mxu0 0
    %181 = vmatprep.subr.bf16.mxu0 0
    %182 = vmatpush1.bf16.msra.mxu0 0
    %183 = vmatprep.subr.bf16.mxu0 0
    %184 = vmatpush1.bf16.msra.mxu0 0
    %185 = vmatprep.subr.bf16.mxu0 0
    %186 = vmatpush1.bf16.msra.mxu0 0
    %187 = vmatprep.subr.bf16.mxu0 0
    %188 = vmatpush1.bf16.msra.mxu0 0
    %189 = vmatprep.subr.bf16.mxu0 0
    %190 = vmatpush1.bf16.msra.mxu0 0
    %191 = vmatprep.subr.bf16.mxu0 0
    %192 = vmatpush1.bf16.msra.mxu0 0
    %193 = vmatprep.mubr.bf16.mxu0 0
    %194 = vmatmul.mubr.bf16.gmra.mrb[0].mxu0 %v131
    %v195 = vpop.f32.mrb[0].mxu0
    %v196 = vadd.f32 %v56, %v195
    %v197 = vpop.f32.mrb[0].mxu0
    %v198 = vadd.f32 %v60, %v197
    %v199 = vpop.f32.mrb[0].mxu0
    %v200 = vpop.f32.mrb[0].mxu0
    %201 = vdwg.mxu0
    %202 = vmatprep.subr.bf16.mxu0 %v147
    %203 = vmatpush1.bf16.msra.mxu0 %v144
    %204 = vmatprep.subr.bf16.mxu0 0
    %205 = vmatpush1.bf16.msra.mxu0 0
    %206 = vmatprep.subr.bf16.mxu0 0
    %207 = vmatpush1.bf16.msra.mxu0 0
    %208 = vmatprep.subr.bf16.mxu0 0
    %209 = vmatpush1.bf16.msra.mxu0 0
    %210 = vmatprep.subr.bf16.mxu0 0
    %211 = vmatpush1.bf16.msra.mxu0 0
    %212 = vmatprep.subr.bf16.mxu0 0
    %213 = vmatpush1.bf16.msra.mxu0 0
    %214 = vmatprep.subr.bf16.mxu0 0
    %215 = vmatpush1.bf16.msra.mxu0 0
    %216 = vmatprep.subr.bf16.mxu0 0
    %217 = vmatpush1.bf16.msra.mxu0 0
    %218 = vmatprep.subr.bf16.mxu0 0
    %219 = vmatpush1.bf16.msra.mxu0 0
    %220 = vmatprep.subr.bf16.mxu0 0
    %221 = vmatpush1.bf16.msra.mxu0 0
    %222 = vmatprep.subr.bf16.mxu0 0
    %223 = vmatpush1.bf16.msra.mxu0 0
    %224 = vmatprep.subr.bf16.mxu0 0
    %225 = vmatpush1.bf16.msra.mxu0 0
    %226 = vmatprep.subr.bf16.mxu0 0
    %227 = vmatpush1.bf16.msra.mxu0 0
    %228 = vmatprep.subr.bf16.mxu0 0
    %229 = vmatpush1.bf16.msra.mxu0 0
    %230 = vmatprep.subr.bf16.mxu0 0
    %231 = vmatpush1.bf16.msra.mxu0 0
    %232 = vmatprep.subr.bf16.mxu0 0
    %233 = vmatpush1.bf16.msra.mxu0 0
    %234 = vmatprep.mubr.bf16.mxu0 0
    %235 = vmatmul.mubr.bf16.gmra.mrb[0].mxu0 %v131
    %v236 = vpop.f32.mrb[0].mxu0
    %v237 = vadd.f32 %v64, %v236
    %v238 = vpop.f32.mrb[0].mxu0
    %v239 = vadd.f32 %v68, %v238
    %v240 = vpop.f32.mrb[0].mxu0
    %v241 = vpop.f32.mrb[0].mxu0
    %242 = vdwg.mxu0
    %243 = vmatprep.subr.bf16.mxu0 %v153
    %244 = vmatpush1.bf16.msra.mxu0 %v150
    %245 = vmatprep.subr.bf16.mxu0 0
    %246 = vmatpush1.bf16.msra.mxu0 0
    %247 = vmatprep.subr.bf16.mxu0 0
    %248 = vmatpush1.bf16.msra.mxu0 0
    %249 = vmatprep.subr.bf16.mxu0 0
    %250 = vmatpush1.bf16.msra.mxu0 0
    %251 = vmatprep.subr.bf16.mxu0 0
    %252 = vmatpush1.bf16.msra.mxu0 0
    %253 = vmatprep.subr.bf16.mxu0 0
    %254 = vmatpush1.bf16.msra.mxu0 0
    %255 = vmatprep.subr.bf16.mxu0 0
    %256 = vmatpush1.bf16.msra.mxu0 0
    %257 = vmatprep.subr.bf16.mxu0 0
    %258 = vmatpush1.bf16.msra.mxu0 0
    %259 = vmatprep.subr.bf16.mxu0 0
    %260 = vmatpush1.bf16.msra.mxu0 0
    %261 = vmatprep.subr.bf16.mxu0 0
    %262 = vmatpush1.bf16.msra.mxu0 0
    %263 = vmatprep.subr.bf16.mxu0 0
    %264 = vmatpush1.bf16.msra.mxu0 0
    %265 = vmatprep.subr.bf16.mxu0 0
    %266 = vmatpush1.bf16.msra.mxu0 0
    %267 = vmatprep.subr.bf16.mxu0 0
    %268 = vmatpush1.bf16.msra.mxu0 0
    %269 = vmatprep.subr.bf16.mxu0 0
    %270 = vmatpush1.bf16.msra.mxu0 0
    %271 = vmatprep.subr.bf16.mxu0 0
    %272 = vmatpush1.bf16.msra.mxu0 0
    %273 = vmatprep.subr.bf16.mxu0 0
    %274 = vmatpush1.bf16.msra.mxu0 0
    %275 = vmatprep.mubr.bf16.mxu0 0
    %276 = vmatmul.mubr.bf16.gmra.mrb[0].mxu0 %v131
    %v277 = vpop.f32.mrb[0].mxu0
    %v278 = vadd.f32 %v72, %v277
    %v279 = vpop.f32.mrb[0].mxu0
    %v280 = vadd.f32 %v76, %v279
    %v281 = vpop.f32.mrb[0].mxu0
    %v282 = vpop.f32.mrb[0].mxu0
    %283 = vdwg.mxu0
    %284 = vmatprep.subr.bf16.mxu0 %v159
    %285 = vmatpush1.bf16.msra.mxu0 %v156
    %286 = vmatprep.subr.bf16.mxu0 0
    %287 = vmatpush1.bf16.msra.mxu0 0
    %288 = vmatprep.subr.bf16.mxu0 0
    %289 = vmatpush1.bf16.msra.mxu0 0
    %290 = vmatprep.subr.bf16.mxu0 0
    %291 = vmatpush1.bf16.msra.mxu0 0
    %292 = vmatprep.subr.bf16.mxu0 0
    %293 = vmatpush1.bf16.msra.mxu0 0
    %294 = vmatprep.subr.bf16.mxu0 0
    %295 = vmatpush1.bf16.msra.mxu0 0
    %296 = vmatprep.subr.bf16.mxu0 0
    %297 = vmatpush1.bf16.msra.mxu0 0
    %298 = vmatprep.subr.bf16.mxu0 0
    %299 = vmatpush1.bf16.msra.mxu0 0
    %300 = vmatprep.subr.bf16.mxu0 0
    %301 = vmatpush1.bf16.msra.mxu0 0
    %302 = vmatprep.subr.bf16.mxu0 0
    %303 = vmatpush1.bf16.msra.mxu0 0
    %304 = vmatprep.subr.bf16.mxu0 0
    %305 = vmatpush1.bf16.msra.mxu0 0
    %306 = vmatprep.subr.bf16.mxu0 0
    %307 = vmatpush1.bf16.msra.mxu0 0
    %308 = vmatprep.subr.bf16.mxu0 0
    %309 = vmatpush1.bf16.msra.mxu0 0
    %310 = vmatprep.subr.bf16.mxu0 0
    %311 = vmatpush1.bf16.msra.mxu0 0
    %312 = vmatprep.subr.bf16.mxu0 0
    %313 = vmatpush1.bf16.msra.mxu0 0
    %314 = vmatprep.subr.bf16.mxu0 0
    %315 = vmatpush1.bf16.msra.mxu0 0
    %316 = vmatprep.mubr.bf16.mxu0 0
    %317 = vmatmul.mubr.bf16.gmra.mrb[0].mxu0 %v131
    %v318 = vpop.f32.mrb[0].mxu0
    %v319 = vadd.f32 %v80, %v318
    %v320 = vpop.f32.mrb[0].mxu0
    %v321 = vadd.f32 %v84, %v320
    %v322 = vpop.f32.mrb[0].mxu0
    %v323 = vpop.f32.mrb[0].mxu0
    %324 = vdwg.mxu0
    %v325 = vmul.f32 %v196, 0.1
    %v326 = vmul.f32 %v198, 0.1
    %v327 = vmul.f32 %v237, 0.1
    %v328 = vmul.f32 %v239, 0.1
    %v329 = vmul.f32 %v278, 0.1
    %v330 = vmul.f32 %v280, 0.1
    %v331 = vmul.f32 %v319, 0.1
    %v332 = vmul.f32 %v321, 0.1
    %v333 = vmax.f32 %v196, %v325
    %v334 = vmax.f32 %v198, %v326
    %v335 = vmax.f32 %v237, %v327
    %v336 = vmax.f32 %v239, %v328
    %v337 = vmax.f32 %v278, %v329
    %v338 = vmax.f32 %v280, %v330
    %v339 = vmax.f32 %v319, %v331
    %v340 = vmax.f32 %v321, %v332
    %v341 = vpack.c.bf16 %v333, %v333
    %v342 = vpack.c.bf16 %v334, %v334
    %v343 = vpack.c.bf16 %v335, %v335
    %v344 = vpack.c.bf16 %v336, %v336
    %v345 = vpack.c.bf16 %v337, %v337
    %v346 = vpack.c.bf16 %v338, %v338
    %v347 = vpack.c.bf16 %v339, %v339
    %v348 = vpack.c.bf16 %v340, %v340
    %v349 = vld [vmem:[#allocation2] sm:$0xff]
    %v350 = vld [vmem:[#allocation2 + $0x8] sm:$0xff]
    %v351 = vld [vmem:[#allocation2 + $0x10] sm:$0xff]
    %v352 = vld [vmem:[#allocation2 + $0x18] sm:$0xff]
    %v353 = vld [vmem:[#allocation2 + $0x20] sm:$0xff]
    %v354 = vld [vmem:[#allocation2 + $0x28] sm:$0xff]
    %v355 = vld [vmem:[#allocation2 + $0x30] sm:$0xff]
    %v356 = vld [vmem:[#allocation2 + $0x38] sm:$0xff]
    %v357 = vld [vmem:[#allocation2 + $0x40] sm:$0xff]
    %v358 = vld [vmem:[#allocation2 + $0x48] sm:$0xff]
    %v359 = vld [vmem:[#allocation2 + $0x50] sm:$0xff]
    %v360 = vld [vmem:[#allocation2 + $0x58] sm:$0xff]
    %v361 = vld [vmem:[#allocation2 + $0x60] sm:$0xff]
    %v362 = vld [vmem:[#allocation2 + $0x68] sm:$0xff]
    %v363 = vld [vmem:[#allocation2 + $0x70] sm:$0xff]
    %v364 = vld [vmem:[#allocation2 + $0x78] sm:$0xff]
    %v365 = vld [vmem:[#allocation2 + $0x80] sm:$0xff]
    %v366 = vld [vmem:[#allocation2 + $0x88] sm:$0xff]
    %v367 = vld [vmem:[#allocation2 + $0x90] sm:$0xff]
    %v368 = vld [vmem:[#allocation2 + $0x98] sm:$0xff]
    %v369 = vld [vmem:[#allocation2 + $0xa0] sm:$0xff]
    %v370 = vld [vmem:[#allocation2 + $0xa8] sm:$0xff]
    %v371 = vld [vmem:[#allocation2 + $0xb0] sm:$0xff]
    %v372 = vld [vmem:[#allocation2 + $0xb8] sm:$0xff]
    %v373 = vld [vmem:[#allocation2 + $0xc0] sm:$0xff]
    %v374 = vld [vmem:[#allocation2 + $0xc8] sm:$0xff]
    %v375 = vld [vmem:[#allocation2 + $0xd0] sm:$0xff]
    %v376 = vld [vmem:[#allocation2 + $0xd8] sm:$0xff]
    %v377 = vld [vmem:[#allocation2 + $0xe0] sm:$0xff]
    %v378 = vld [vmem:[#allocation2 + $0xe8] sm:$0xff]
    %v379 = vld [vmem:[#allocation2 + $0xf0] sm:$0xff]
    %v380 = vld [vmem:[#allocation2 + $0xf8] sm:$0xff]
    %v381 = vld [vmem:[#allocation2 + $0x100] sm:$0xff]
    %v382 = vld [vmem:[#allocation2 + $0x108] sm:$0xff]
    %v383 = vld [vmem:[#allocation2 + $0x110] sm:$0xff]
    %v384 = vld [vmem:[#allocation2 + $0x118] sm:$0xff]
    %v385 = vld [vmem:[#allocation2 + $0x120] sm:$0xff]
    %v386 = vld [vmem:[#allocation2 + $0x128] sm:$0xff]
    %v387 = vld [vmem:[#allocation2 + $0x130] sm:$0xff]
    %v388 = vld [vmem:[#allocation2 + $0x138] sm:$0xff]
    %v389 = vld [vmem:[#allocation2 + $0x140] sm:$0xff]
    %v390 = vld [vmem:[#allocation2 + $0x148] sm:$0xff]
    %v391 = vld [vmem:[#allocation2 + $0x150] sm:$0xff]
    %v392 = vld [vmem:[#allocation2 + $0x158] sm:$0xff]
    %v393 = vld [vmem:[#allocation2 + $0x160] sm:$0xff]
    %v394 = vld [vmem:[#allocation2 + $0x168] sm:$0xff]
    %v395 = vld [vmem:[#allocation2 + $0x170] sm:$0xff]
    %v396 = vld [vmem:[#allocation2 + $0x178] sm:$0xff]
    %v397 = vld [vmem:[#allocation2 + $0x180] sm:$0xff]
    %v398 = vld [vmem:[#allocation2 + $0x188] sm:$0xff]
    %v399 = vld [vmem:[#allocation2 + $0x190] sm:$0xff]
    %v400 = vld [vmem:[#allocation2 + $0x198] sm:$0xff]
    %v401 = vld [vmem:[#allocation2 + $0x1a0] sm:$0xff]
    %v402 = vld [vmem:[#allocation2 + $0x1a8] sm:$0xff]
    %v403 = vld [vmem:[#allocation2 + $0x1b0] sm:$0xff]
    %v404 = vld [vmem:[#allocation2 + $0x1b8] sm:$0xff]
    %v405 = vld [vmem:[#allocation2 + $0x1c0] sm:$0xff]
    %v406 = vld [vmem:[#allocation2 + $0x1c8] sm:$0xff]
    %v407 = vld [vmem:[#allocation2 + $0x1d0] sm:$0xff]
    %v408 = vld [vmem:[#allocation2 + $0x1d8] sm:$0xff]
    %v409 = vld [vmem:[#allocation2 + $0x1e0] sm:$0xff]
    %v410 = vld [vmem:[#allocation2 + $0x1e8] sm:$0xff]
    %v411 = vld [vmem:[#allocation2 + $0x1f0] sm:$0xff]
    %v412 = vld [vmem:[#allocation2 + $0x1f8] sm:$0xff]
    %v413 = vld [vmem:[#allocation2 + $0x200] sm:$0xff]
    %v414 = vld [vmem:[#allocation2 + $0x208] sm:$0xff]
    %v415 = vld [vmem:[#allocation2 + $0x210] sm:$0xff]
    %v416 = vld [vmem:[#allocation2 + $0x218] sm:$0xff]
    %v417 = vld [vmem:[#allocation2 + $0x220] sm:$0xff]
    %v418 = vld [vmem:[#allocation2 + $0x228] sm:$0xff]
    %v419 = vld [vmem:[#allocation2 + $0x230] sm:$0xff]
    %v420 = vld [vmem:[#allocation2 + $0x238] sm:$0xff]
    %v421 = vld [vmem:[#allocation2 + $0x240] sm:$0xff]
    %v422 = vld [vmem:[#allocation2 + $0x248] sm:$0xff]
    %v423 = vld [vmem:[#allocation2 + $0x250] sm:$0xff]
    %v424 = vld [vmem:[#allocation2 + $0x258] sm:$0xff]
    %v425 = vld [vmem:[#allocation2 + $0x260] sm:$0xff]
    %v426 = vld [vmem:[#allocation2 + $0x268] sm:$0xff]
    %v427 = vld [vmem:[#allocation2 + $0x270] sm:$0xff]
    %v428 = vld [vmem:[#allocation2 + $0x278] sm:$0xff]
    %v429 = vld [vmem:[#allocation2 + $0x280] sm:$0xff]
    %v430 = vld [vmem:[#allocation2 + $0x288] sm:$0xff]
    %v431 = vld [vmem:[#allocation2 + $0x290] sm:$0xff]
    %v432 = vld [vmem:[#allocation2 + $0x298] sm:$0xff]
    %v433 = vld [vmem:[#allocation2 + $0x2a0] sm:$0xff]
    %v434 = vld [vmem:[#allocation2 + $0x2a8] sm:$0xff]
    %v435 = vld [vmem:[#allocation2 + $0x2b0] sm:$0xff]
    %v436 = vld [vmem:[#allocation2 + $0x2b8] sm:$0xff]
    %v437 = vld [vmem:[#allocation2 + $0x2c0] sm:$0xff]
    %v438 = vld [vmem:[#allocation2 + $0x2c8] sm:$0xff]
    %v439 = vld [vmem:[#allocation2 + $0x2d0] sm:$0xff]
    %v440 = vld [vmem:[#allocation2 + $0x2d8] sm:$0xff]
    %v441 = vld [vmem:[#allocation2 + $0x2e0] sm:$0xff]
    %v442 = vld [vmem:[#allocation2 + $0x2e8] sm:$0xff]
    %v443 = vld [vmem:[#allocation2 + $0x2f0] sm:$0xff]
    %v444 = vld [vmem:[#allocation2 + $0x2f8] sm:$0xff]
    %v445 = vld [vmem:[#allocation2 + $0x300] sm:$0xff]
    %v446 = vld [vmem:[#allocation2 + $0x308] sm:$0xff]
    %v447 = vld [vmem:[#allocation2 + $0x310] sm:$0xff]
    %v448 = vld [vmem:[#allocation2 + $0x318] sm:$0xff]
    %v449 = vld [vmem:[#allocation2 + $0x320] sm:$0xff]
    %v450 = vld [vmem:[#allocation2 + $0x328] sm:$0xff]
    %v451 = vld [vmem:[#allocation2 + $0x330] sm:$0xff]
    %v452 = vld [vmem:[#allocation2 + $0x338] sm:$0xff]
    %v453 = vld [vmem:[#allocation2 + $0x340] sm:$0xff]
    %v454 = vld [vmem:[#allocation2 + $0x348] sm:$0xff]
    %v455 = vld [vmem:[#allocation2 + $0x350] sm:$0xff]
    %v456 = vld [vmem:[#allocation2 + $0x358] sm:$0xff]
    %v457 = vld [vmem:[#allocation2 + $0x360] sm:$0xff]
    %v458 = vld [vmem:[#allocation2 + $0x368] sm:$0xff]
    %v459 = vld [vmem:[#allocation2 + $0x370] sm:$0xff]
    %v460 = vld [vmem:[#allocation2 + $0x378] sm:$0xff]
    %v461 = vld [vmem:[#allocation2 + $0x380] sm:$0xff]
    %v462 = vld [vmem:[#allocation2 + $0x388] sm:$0xff]
    %v463 = vld [vmem:[#allocation2 + $0x390] sm:$0xff]
    %v464 = vld [vmem:[#allocation2 + $0x398] sm:$0xff]
    %v465 = vld [vmem:[#allocation2 + $0x3a0] sm:$0xff]
    %v466 = vld [vmem:[#allocation2 + $0x3a8] sm:$0xff]
    %v467 = vld [vmem:[#allocation2 + $0x3b0] sm:$0xff]
    %v468 = vld [vmem:[#allocation2 + $0x3b8] sm:$0xff]
    %v469 = vld [vmem:[#allocation2 + $0x3c0] sm:$0xff]
    %v470 = vld [vmem:[#allocation2 + $0x3c8] sm:$0xff]
    %v471 = vld [vmem:[#allocation2 + $0x3d0] sm:$0xff]
    %v472 = vld [vmem:[#allocation2 + $0x3d8] sm:$0xff]
    %v473 = vld [vmem:[#allocation2 + $0x3e0] sm:$0xff]
    %v474 = vld [vmem:[#allocation2 + $0x3e8] sm:$0xff]
    %v475 = vld [vmem:[#allocation2 + $0x3f0] sm:$0xff]
    %v476 = vld [vmem:[#allocation2 + $0x3f8] sm:$0xff]
    %v477 = vld [vmem:[%s4] sm:$0x3]
    %v479 = vlaneseq
    %v480 = vshrl.u32 %v479, 7
    %v481 = vsub.s32 0, %v480
    %v482 = vrot.slane %v477, %v481
    %v483 = vlaneseq
    %v484 = vshrl.u32 %v483, 7
    %v485 = vsub.s32 1, %v484
    %v486 = vrot.slane %v477, %v485
    %v617 = vunpack.c.l.b16 %v349
    %v618 = vunpack.c.h.b16 %v349
    %v619 = vunpack.c.l.b16 %v350
    %v620 = vunpack.c.h.b16 %v350
    %v621 = vunpack.c.l.b16 %v351
    %v622 = vunpack.c.h.b16 %v351
    %v623 = vunpack.c.l.b16 %v352
    %v624 = vunpack.c.h.b16 %v352
    %v625 = vunpack.c.l.b16 %v353
    %v626 = vunpack.c.h.b16 %v353
    %v627 = vunpack.c.l.b16 %v354
    %v628 = vunpack.c.h.b16 %v354
    %v629 = vunpack.c.l.b16 %v355
    %v630 = vunpack.c.h.b16 %v355
    %v631 = vunpack.c.l.b16 %v356
    %v632 = vunpack.c.h.b16 %v356
    %v633 = vunpack.c.l.b16 %v357
    %v634 = vunpack.c.h.b16 %v357
    %v635 = vunpack.c.l.b16 %v358
    %v636 = vunpack.c.h.b16 %v358
    %v637 = vunpack.c.l.b16 %v359
    %v638 = vunpack.c.h.b16 %v359
    %v639 = vunpack.c.l.b16 %v360
    %v640 = vunpack.c.h.b16 %v360
    %v641 = vunpack.c.l.b16 %v361
    %v642 = vunpack.c.h.b16 %v361
    %v643 = vunpack.c.l.b16 %v362
    %v644 = vunpack.c.h.b16 %v362
    %v645 = vunpack.c.l.b16 %v363
    %v646 = vunpack.c.h.b16 %v363
    %v647 = vunpack.c.l.b16 %v364
    %v648 = vunpack.c.h.b16 %v364
    %v649 = vunpack.c.l.b16 %v365
    %v650 = vunpack.c.h.b16 %v365
    %v651 = vunpack.c.l.b16 %v366
    %v652 = vunpack.c.h.b16 %v366
    %v653 = vunpack.c.l.b16 %v367
    %v654 = vunpack.c.h.b16 %v367
    %v655 = vunpack.c.l.b16 %v368
    %v656 = vunpack.c.h.b16 %v368
    %v657 = vunpack.c.l.b16 %v369
    %v658 = vunpack.c.h.b16 %v369
    %v659 = vunpack.c.l.b16 %v370
    %v660 = vunpack.c.h.b16 %v370
    %v661 = vunpack.c.l.b16 %v371
    %v662 = vunpack.c.h.b16 %v371
    %v663 = vunpack.c.l.b16 %v372
    %v664 = vunpack.c.h.b16 %v372
    %v665 = vunpack.c.l.b16 %v373
    %v666 = vunpack.c.h.b16 %v373
    %v667 = vunpack.c.l.b16 %v374
    %v668 = vunpack.c.h.b16 %v374
    %v669 = vunpack.c.l.b16 %v375
    %v670 = vunpack.c.h.b16 %v375
    %v671 = vunpack.c.l.b16 %v376
    %v672 = vunpack.c.h.b16 %v376
    %v673 = vunpack.c.l.b16 %v377
    %v674 = vunpack.c.h.b16 %v377
    %v675 = vunpack.c.l.b16 %v378
    %v676 = vunpack.c.h.b16 %v378
    %v677 = vunpack.c.l.b16 %v379
    %v678 = vunpack.c.h.b16 %v379
    %v679 = vunpack.c.l.b16 %v380
    %v680 = vunpack.c.h.b16 %v380
    %v681 = vunpack.c.l.b16 %v381
    %v682 = vunpack.c.h.b16 %v381
    %v683 = vunpack.c.l.b16 %v382
    %v684 = vunpack.c.h.b16 %v382
    %v685 = vunpack.c.l.b16 %v383
    %v686 = vunpack.c.h.b16 %v383
    %v687 = vunpack.c.l.b16 %v384
    %v688 = vunpack.c.h.b16 %v384
    %v689 = vunpack.c.l.b16 %v385
    %v690 = vunpack.c.h.b16 %v385
    %v691 = vunpack.c.l.b16 %v386
    %v692 = vunpack.c.h.b16 %v386
    %v693 = vunpack.c.l.b16 %v387
    %v694 = vunpack.c.h.b16 %v387
    %v695 = vunpack.c.l.b16 %v388
    %v696 = vunpack.c.h.b16 %v388
    %v697 = vunpack.c.l.b16 %v389
    %v698 = vunpack.c.h.b16 %v389
    %v699 = vunpack.c.l.b16 %v390
    %v700 = vunpack.c.h.b16 %v390
    %v701 = vunpack.c.l.b16 %v391
    %v702 = vunpack.c.h.b16 %v391
    %v703 = vunpack.c.l.b16 %v392
    %v704 = vunpack.c.h.b16 %v392
    %v705 = vunpack.c.l.b16 %v393
    %v706 = vunpack.c.h.b16 %v393
    %v707 = vunpack.c.l.b16 %v394
    %v708 = vunpack.c.h.b16 %v394
    %v709 = vunpack.c.l.b16 %v395
    %v710 = vunpack.c.h.b16 %v395
    %v711 = vunpack.c.l.b16 %v396
    %v712 = vunpack.c.h.b16 %v396
    %v713 = vunpack.c.l.b16 %v397
    %v714 = vunpack.c.h.b16 %v397
    %v715 = vunpack.c.l.b16 %v398
    %v716 = vunpack.c.h.b16 %v398
    %v717 = vunpack.c.l.b16 %v399
    %v718 = vunpack.c.h.b16 %v399
    %v719 = vunpack.c.l.b16 %v400
    %v720 = vunpack.c.h.b16 %v400
    %v721 = vunpack.c.l.b16 %v401
    %v722 = vunpack.c.h.b16 %v401
    %v723 = vunpack.c.l.b16 %v402
    %v724 = vunpack.c.h.b16 %v402
    %v725 = vunpack.c.l.b16 %v403
    %v726 = vunpack.c.h.b16 %v403
    %v727 = vunpack.c.l.b16 %v404
    %v728 = vunpack.c.h.b16 %v404
    %v729 = vunpack.c.l.b16 %v405
    %v730 = vunpack.c.h.b16 %v405
    %v731 = vunpack.c.l.b16 %v406
    %v732 = vunpack.c.h.b16 %v406
    %v733 = vunpack.c.l.b16 %v407
    %v734 = vunpack.c.h.b16 %v407
    %v735 = vunpack.c.l.b16 %v408
    %v736 = vunpack.c.h.b16 %v408
    %v737 = vunpack.c.l.b16 %v409
    %v738 = vunpack.c.h.b16 %v409
    %v739 = vunpack.c.l.b16 %v410
    %v740 = vunpack.c.h.b16 %v410
    %v741 = vunpack.c.l.b16 %v411
    %v742 = vunpack.c.h.b16 %v411
    %v743 = vunpack.c.l.b16 %v412
    %v744 = vunpack.c.h.b16 %v412
    %v745 = vunpack.c.l.b16 %v413
    %v746 = vunpack.c.h.b16 %v413
    %v747 = vunpack.c.l.b16 %v414
    %v748 = vunpack.c.h.b16 %v414
    %v749 = vunpack.c.l.b16 %v415
    %v750 = vunpack.c.h.b16 %v415
    %v751 = vunpack.c.l.b16 %v416
    %v752 = vunpack.c.h.b16 %v416
    %v753 = vunpack.c.l.b16 %v417
    %v754 = vunpack.c.h.b16 %v417
    %v755 = vunpack.c.l.b16 %v418
    %v756 = vunpack.c.h.b16 %v418
    %v757 = vunpack.c.l.b16 %v419
    %v758 = vunpack.c.h.b16 %v419
    %v759 = vunpack.c.l.b16 %v420
    %v760 = vunpack.c.h.b16 %v420
    %v761 = vunpack.c.l.b16 %v421
    %v762 = vunpack.c.h.b16 %v421
    %v763 = vunpack.c.l.b16 %v422
    %v764 = vunpack.c.h.b16 %v422
    %v765 = vunpack.c.l.b16 %v423
    %v766 = vunpack.c.h.b16 %v423
    %v767 = vunpack.c.l.b16 %v424
    %v768 = vunpack.c.h.b16 %v424
    %v769 = vunpack.c.l.b16 %v425
    %v770 = vunpack.c.h.b16 %v425
    %v771 = vunpack.c.l.b16 %v426
    %v772 = vunpack.c.h.b16 %v426
    %v773 = vunpack.c.l.b16 %v427
    %v774 = vunpack.c.h.b16 %v427
    %v775 = vunpack.c.l.b16 %v428
    %v776 = vunpack.c.h.b16 %v428
    %v777 = vunpack.c.l.b16 %v429
    %v778 = vunpack.c.h.b16 %v429
    %v779 = vunpack.c.l.b16 %v430
    %v780 = vunpack.c.h.b16 %v430
    %v781 = vunpack.c.l.b16 %v431
    %v782 = vunpack.c.h.b16 %v431
    %v783 = vunpack.c.l.b16 %v432
    %v784 = vunpack.c.h.b16 %v432
    %v785 = vunpack.c.l.b16 %v433
    %v786 = vunpack.c.h.b16 %v433
    %v787 = vunpack.c.l.b16 %v434
    %v788 = vunpack.c.h.b16 %v434
    %v789 = vunpack.c.l.b16 %v435
    %v790 = vunpack.c.h.b16 %v435
    %v791 = vunpack.c.l.b16 %v436
    %v792 = vunpack.c.h.b16 %v436
    %v793 = vunpack.c.l.b16 %v437
    %v794 = vunpack.c.h.b16 %v437
    %v795 = vunpack.c.l.b16 %v438
    %v796 = vunpack.c.h.b16 %v438
    %v797 = vunpack.c.l.b16 %v439
    %v798 = vunpack.c.h.b16 %v439
    %v799 = vunpack.c.l.b16 %v440
    %v800 = vunpack.c.h.b16 %v440
    %v801 = vunpack.c.l.b16 %v441
    %v802 = vunpack.c.h.b16 %v441
    %v803 = vunpack.c.l.b16 %v442
    %v804 = vunpack.c.h.b16 %v442
    %v805 = vunpack.c.l.b16 %v443
    %v806 = vunpack.c.h.b16 %v443
    %v807 = vunpack.c.l.b16 %v444
    %v808 = vunpack.c.h.b16 %v444
    %v809 = vunpack.c.l.b16 %v445
    %v810 = vunpack.c.h.b16 %v445
    %v811 = vunpack.c.l.b16 %v446
    %v812 = vunpack.c.h.b16 %v446
    %v813 = vunpack.c.l.b16 %v447
    %v814 = vunpack.c.h.b16 %v447
    %v815 = vunpack.c.l.b16 %v448
    %v816 = vunpack.c.h.b16 %v448
    %v817 = vunpack.c.l.b16 %v449
    %v818 = vunpack.c.h.b16 %v449
    %v819 = vunpack.c.l.b16 %v450
    %v820 = vunpack.c.h.b16 %v450
    %v821 = vunpack.c.l.b16 %v451
    %v822 = vunpack.c.h.b16 %v451
    %v823 = vunpack.c.l.b16 %v452
    %v824 = vunpack.c.h.b16 %v452
    %v825 = vunpack.c.l.b16 %v453
    %v826 = vunpack.c.h.b16 %v453
    %v827 = vunpack.c.l.b16 %v454
    %v828 = vunpack.c.h.b16 %v454
    %v829 = vunpack.c.l.b16 %v455
    %v830 = vunpack.c.h.b16 %v455
    %v831 = vunpack.c.l.b16 %v456
    %v832 = vunpack.c.h.b16 %v456
    %v833 = vunpack.c.l.b16 %v457
    %v834 = vunpack.c.h.b16 %v457
    %v835 = vunpack.c.l.b16 %v458
    %v836 = vunpack.c.h.b16 %v458
    %v837 = vunpack.c.l.b16 %v459
    %v838 = vunpack.c.h.b16 %v459
    %v839 = vunpack.c.l.b16 %v460
    %v840 = vunpack.c.h.b16 %v460
    %v841 = vunpack.c.l.b16 %v461
    %v842 = vunpack.c.h.b16 %v461
    %v843 = vunpack.c.l.b16 %v462
    %v844 = vunpack.c.h.b16 %v462
    %v845 = vunpack.c.l.b16 %v463
    %v846 = vunpack.c.h.b16 %v463
    %v847 = vunpack.c.l.b16 %v464
    %v848 = vunpack.c.h.b16 %v464
    %v849 = vunpack.c.l.b16 %v465
    %v850 = vunpack.c.h.b16 %v465
    %v851 = vunpack.c.l.b16 %v466
    %v852 = vunpack.c.h.b16 %v466
    %v853 = vunpack.c.l.b16 %v467
    %v854 = vunpack.c.h.b16 %v467
    %v855 = vunpack.c.l.b16 %v468
    %v856 = vunpack.c.h.b16 %v468
    %v857 = vunpack.c.l.b16 %v469
    %v858 = vunpack.c.h.b16 %v469
    %v859 = vunpack.c.l.b16 %v470
    %v860 = vunpack.c.h.b16 %v470
    %v861 = vunpack.c.l.b16 %v471
    %v862 = vunpack.c.h.b16 %v471
    %v863 = vunpack.c.l.b16 %v472
    %v864 = vunpack.c.h.b16 %v472
    %v865 = vunpack.c.l.b16 %v473
    %v866 = vunpack.c.h.b16 %v473
    %v867 = vunpack.c.l.b16 %v474
    %v868 = vunpack.c.h.b16 %v474
    %v869 = vunpack.c.l.b16 %v475
    %v870 = vunpack.c.h.b16 %v475
    %v871 = vunpack.c.l.b16 %v476
    %v872 = vunpack.c.h.b16 %v476
    %v873 = vpack.c.b16 %v619, %v617
    %v874 = vpack.c.b16 %v620, %v618
    %v875 = vpack.c.b16 %v623, %v621
    %v876 = vpack.c.b16 %v624, %v622
    %v877 = vpack.c.b16 %v627, %v625
    %v878 = vpack.c.b16 %v628, %v626
    %v879 = vpack.c.b16 %v631, %v629
    %v880 = vpack.c.b16 %v632, %v630
    %v881 = vpack.c.b16 %v635, %v633
    %v882 = vpack.c.b16 %v636, %v634
    %v883 = vpack.c.b16 %v639, %v637
    %v884 = vpack.c.b16 %v640, %v638
    %v885 = vpack.c.b16 %v643, %v641
    %v886 = vpack.c.b16 %v644, %v642
    %v887 = vpack.c.b16 %v647, %v645
    %v888 = vpack.c.b16 %v648, %v646
    %v889 = vpack.c.b16 %v651, %v649
    %v890 = vpack.c.b16 %v652, %v650
    %v891 = vpack.c.b16 %v655, %v653
    %v892 = vpack.c.b16 %v656, %v654
    %v893 = vpack.c.b16 %v659, %v657
    %v894 = vpack.c.b16 %v660, %v658
    %v895 = vpack.c.b16 %v663, %v661
    %v896 = vpack.c.b16 %v664, %v662
    %v897 = vpack.c.b16 %v667, %v665
    %v898 = vpack.c.b16 %v668, %v666
    %v899 = vpack.c.b16 %v671, %v669
    %v900 = vpack.c.b16 %v672, %v670
    %v901 = vpack.c.b16 %v675, %v673
    %v902 = vpack.c.b16 %v676, %v674
    %v903 = vpack.c.b16 %v679, %v677
    %v904 = vpack.c.b16 %v680, %v678
    %v905 = vpack.c.b16 %v683, %v681
    %v906 = vpack.c.b16 %v684, %v682
    %v907 = vpack.c.b16 %v687, %v685
    %v908 = vpack.c.b16 %v688, %v686
    %v909 = vpack.c.b16 %v691, %v689
    %v910 = vpack.c.b16 %v692, %v690
    %v911 = vpack.c.b16 %v695, %v693
    %v912 = vpack.c.b16 %v696, %v694
    %v913 = vpack.c.b16 %v699, %v697
    %v914 = vpack.c.b16 %v700, %v698
    %v915 = vpack.c.b16 %v703, %v701
    %v916 = vpack.c.b16 %v704, %v702
    %v917 = vpack.c.b16 %v707, %v705
    %v918 = vpack.c.b16 %v708, %v706
    %v919 = vpack.c.b16 %v711, %v709
    %v920 = vpack.c.b16 %v712, %v710
    %v921 = vpack.c.b16 %v715, %v713
    %v922 = vpack.c.b16 %v716, %v714
    %v923 = vpack.c.b16 %v719, %v717
    %v924 = vpack.c.b16 %v720, %v718
    %v925 = vpack.c.b16 %v723, %v721
    %v926 = vpack.c.b16 %v724, %v722
    %v927 = vpack.c.b16 %v727, %v725
    %v928 = vpack.c.b16 %v728, %v726
    %v929 = vpack.c.b16 %v731, %v729
    %v930 = vpack.c.b16 %v732, %v730
    %v931 = vpack.c.b16 %v735, %v733
    %v932 = vpack.c.b16 %v736, %v734
    %v933 = vpack.c.b16 %v739, %v737
    %v934 = vpack.c.b16 %v740, %v738
    %v935 = vpack.c.b16 %v743, %v741
    %v936 = vpack.c.b16 %v744, %v742
    %v937 = vpack.c.b16 %v747, %v745
    %v938 = vpack.c.b16 %v748, %v746
    %v939 = vpack.c.b16 %v751, %v749
    %v940 = vpack.c.b16 %v752, %v750
    %v941 = vpack.c.b16 %v755, %v753
    %v942 = vpack.c.b16 %v756, %v754
    %v943 = vpack.c.b16 %v759, %v757
    %v944 = vpack.c.b16 %v760, %v758
    %v945 = vpack.c.b16 %v763, %v761
    %v946 = vpack.c.b16 %v764, %v762
    %v947 = vpack.c.b16 %v767, %v765
    %v948 = vpack.c.b16 %v768, %v766
    %v949 = vpack.c.b16 %v771, %v769
    %v950 = vpack.c.b16 %v772, %v770
    %v951 = vpack.c.b16 %v775, %v773
    %v952 = vpack.c.b16 %v776, %v774
    %v953 = vpack.c.b16 %v779, %v777
    %v954 = vpack.c.b16 %v780, %v778
    %v955 = vpack.c.b16 %v783, %v781
    %v956 = vpack.c.b16 %v784, %v782
    %v957 = vpack.c.b16 %v787, %v785
    %v958 = vpack.c.b16 %v788, %v786
    %v959 = vpack.c.b16 %v791, %v789
    %v960 = vpack.c.b16 %v792, %v790
    %v961 = vpack.c.b16 %v795, %v793
    %v962 = vpack.c.b16 %v796, %v794
    %v963 = vpack.c.b16 %v799, %v797
    %v964 = vpack.c.b16 %v800, %v798
    %v965 = vpack.c.b16 %v803, %v801
    %v966 = vpack.c.b16 %v804, %v802
    %v967 = vpack.c.b16 %v807, %v805
    %v968 = vpack.c.b16 %v808, %v806
    %v969 = vpack.c.b16 %v811, %v809
    %v970 = vpack.c.b16 %v812, %v810
    %v971 = vpack.c.b16 %v815, %v813
    %v972 = vpack.c.b16 %v816, %v814
    %v973 = vpack.c.b16 %v819, %v817
    %v974 = vpack.c.b16 %v820, %v818
    %v975 = vpack.c.b16 %v823, %v821
    %v976 = vpack.c.b16 %v824, %v822
    %v977 = vpack.c.b16 %v827, %v825
    %v978 = vpack.c.b16 %v828, %v826
    %v979 = vpack.c.b16 %v831, %v829
    %v980 = vpack.c.b16 %v832, %v830
    %v981 = vpack.c.b16 %v835, %v833
    %v982 = vpack.c.b16 %v836, %v834
    %v983 = vpack.c.b16 %v839, %v837
    %v984 = vpack.c.b16 %v840, %v838
    %v985 = vpack.c.b16 %v843, %v841
    %v986 = vpack.c.b16 %v844, %v842
    %v987 = vpack.c.b16 %v847, %v845
    %v988 = vpack.c.b16 %v848, %v846
    %v989 = vpack.c.b16 %v851, %v849
    %v990 = vpack.c.b16 %v852, %v850
    %v991 = vpack.c.b16 %v855, %v853
    %v992 = vpack.c.b16 %v856, %v854
    %v993 = vpack.c.b16 %v859, %v857
    %v994 = vpack.c.b16 %v860, %v858
    %v995 = vpack.c.b16 %v863, %v861
    %v996 = vpack.c.b16 %v864, %v862
    %v997 = vpack.c.b16 %v867, %v865
    %v998 = vpack.c.b16 %v868, %v866
    %v999 = vpack.c.b16 %v871, %v869
    %v1000 = vpack.c.b16 %v872, %v870
    %1129 = vmatprep.subr.bf16.mxu0 %v874
    %1130 = vmatpush1.bf16.msra.mxu0 %v873
    %1131 = vmatprep.subr.bf16.mxu0 %v876
    %1132 = vmatpush1.bf16.msra.mxu0 %v875
    %1133 = vmatprep.subr.bf16.mxu0 %v878
    %1134 = vmatpush1.bf16.msra.mxu0 %v877
    %1135 = vmatprep.subr.bf16.mxu0 %v880
    %1136 = vmatpush1.bf16.msra.mxu0 %v879
    %1137 = vmatprep.subr.bf16.mxu0 %v882
    %1138 = vmatpush1.bf16.msra.mxu0 %v881
    %1139 = vmatprep.subr.bf16.mxu0 %v884
    %1140 = vmatpush1.bf16.msra.mxu0 %v883
    %1141 = vmatprep.subr.bf16.mxu0 %v886
    %1142 = vmatpush1.bf16.msra.mxu0 %v885
    %1143 = vmatprep.subr.bf16.mxu0 %v888
    %1144 = vmatpush1.bf16.msra.mxu0 %v887
    %1145 = vmatprep.subr.bf16.mxu0 %v890
    %1146 = vmatpush1.bf16.msra.mxu0 %v889
    %1147 = vmatprep.subr.bf16.mxu0 %v892
    %1148 = vmatpush1.bf16.msra.mxu0 %v891
    %1149 = vmatprep.subr.bf16.mxu0 %v894
    %1150 = vmatpush1.bf16.msra.mxu0 %v893
    %1151 = vmatprep.subr.bf16.mxu0 %v896
    %1152 = vmatpush1.bf16.msra.mxu0 %v895
    %1153 = vmatprep.subr.bf16.mxu0 %v898
    %1154 = vmatpush1.bf16.msra.mxu0 %v897
    %1155 = vmatprep.subr.bf16.mxu0 %v900
    %1156 = vmatpush1.bf16.msra.mxu0 %v899
    %1157 = vmatprep.subr.bf16.mxu0 %v902
    %1158 = vmatpush1.bf16.msra.mxu0 %v901
    %1159 = vmatprep.subr.bf16.mxu0 %v904
    %1160 = vmatpush1.bf16.msra.mxu0 %v903
    %1161 = vmatprep.mubr.bf16.mxu0 %v342
    %1162 = vmatmul.mubr.bf16.gmra.mrb[0].mxu0 %v341
    %v1163 = vpop.f32.mrb[0].mxu0
    %v1164 = vadd.f32 %v482, %v1163
    %v1165 = vpop.f32.mrb[0].mxu0
    %v1166 = vadd.f32 %v486, %v1165
    %v1167 = vpop.f32.mrb[0].mxu0
    %v1168 = vpop.f32.mrb[0].mxu0
    %1169 = vdwg.mxu0
    %1170 = vmatprep.subr.bf16.mxu0 %v906
    %1171 = vmatpush1.bf16.msra.mxu0 %v905
    %1172 = vmatprep.subr.bf16.mxu0 %v908
    %1173 = vmatpush1.bf16.msra.mxu0 %v907
    %1174 = vmatprep.subr.bf16.mxu0 %v910
    %1175 = vmatpush1.bf16.msra.mxu0 %v909
    %1176 = vmatprep.subr.bf16.mxu0 %v912
    %1177 = vmatpush1.bf16.msra.mxu0 %v911
    %1178 = vmatprep.subr.bf16.mxu0 %v914
    %1179 = vmatpush1.bf16.msra.mxu0 %v913
    %1180 = vmatprep.subr.bf16.mxu0 %v916
    %1181 = vmatpush1.bf16.msra.mxu0 %v915
    %1182 = vmatprep.subr.bf16.mxu0 %v918
    %1183 = vmatpush1.bf16.msra.mxu0 %v917
    %1184 = vmatprep.subr.bf16.mxu0 %v920
    %1185 = vmatpush1.bf16.msra.mxu0 %v919
    %1186 = vmatprep.subr.bf16.mxu0 %v922
    %1187 = vmatpush1.bf16.msra.mxu0 %v921
    %1188 = vmatprep.subr.bf16.mxu0 %v924
    %1189 = vmatpush1.bf16.msra.mxu0 %v923
    %1190 = vmatprep.subr.bf16.mxu0 %v926
    %1191 = vmatpush1.bf16.msra.mxu0 %v925
    %1192 = vmatprep.subr.bf16.mxu0 %v928
    %1193 = vmatpush1.bf16.msra.mxu0 %v927
    %1194 = vmatprep.subr.bf16.mxu0 %v930
    %1195 = vmatpush1.bf16.msra.mxu0 %v929
    %1196 = vmatprep.subr.bf16.mxu0 %v932
    %1197 = vmatpush1.bf16.msra.mxu0 %v931
    %1198 = vmatprep.subr.bf16.mxu0 %v934
    %1199 = vmatpush1.bf16.msra.mxu0 %v933
    %1200 = vmatprep.subr.bf16.mxu0 %v936
    %1201 = vmatpush1.bf16.msra.mxu0 %v935
    %1202 = vmatprep.mubr.bf16.mxu0 %v344
    %1203 = vmatmul.mubr.bf16.gmra.mrb[0].mxu0 %v343
    %v1204 = vpop.f32.mrb[0].mxu0
    %v1205 = vadd.f32 %v1164, %v1204
    %v1206 = vpop.f32.mrb[0].mxu0
    %v1207 = vadd.f32 %v1166, %v1206
    %v1208 = vpop.f32.mrb[0].mxu0
    %v1209 = vpop.f32.mrb[0].mxu0
    %1210 = vdwg.mxu0
    %1211 = vmatprep.subr.bf16.mxu0 %v938
    %1212 = vmatpush1.bf16.msra.mxu0 %v937
    %1213 = vmatprep.subr.bf16.mxu0 %v940
    %1214 = vmatpush1.bf16.msra.mxu0 %v939
    %1215 = vmatprep.subr.bf16.mxu0 %v942
    %1216 = vmatpush1.bf16.msra.mxu0 %v941
    %1217 = vmatprep.subr.bf16.mxu0 %v944
    %1218 = vmatpush1.bf16.msra.mxu0 %v943
    %1219 = vmatprep.subr.bf16.mxu0 %v946
    %1220 = vmatpush1.bf16.msra.mxu0 %v945
    %1221 = vmatprep.subr.bf16.mxu0 %v948
    %1222 = vmatpush1.bf16.msra.mxu0 %v947
    %1223 = vmatprep.subr.bf16.mxu0 %v950
    %1224 = vmatpush1.bf16.msra.mxu0 %v949
    %1225 = vmatprep.subr.bf16.mxu0 %v952
    %1226 = vmatpush1.bf16.msra.mxu0 %v951
    %1227 = vmatprep.subr.bf16.mxu0 %v954
    %1228 = vmatpush1.bf16.msra.mxu0 %v953
    %1229 = vmatprep.subr.bf16.mxu0 %v956
    %1230 = vmatpush1.bf16.msra.mxu0 %v955
    %1231 = vmatprep.subr.bf16.mxu0 %v958
    %1232 = vmatpush1.bf16.msra.mxu0 %v957
    %1233 = vmatprep.subr.bf16.mxu0 %v960
    %1234 = vmatpush1.bf16.msra.mxu0 %v959
    %1235 = vmatprep.subr.bf16.mxu0 %v962
    %1236 = vmatpush1.bf16.msra.mxu0 %v961
    %1237 = vmatprep.subr.bf16.mxu0 %v964
    %1238 = vmatpush1.bf16.msra.mxu0 %v963
    %1239 = vmatprep.subr.bf16.mxu0 %v966
    %1240 = vmatpush1.bf16.msra.mxu0 %v965
    %1241 = vmatprep.subr.bf16.mxu0 %v968
    %1242 = vmatpush1.bf16.msra.mxu0 %v967
    %1243 = vmatprep.mubr.bf16.mxu0 %v346
    %1244 = vmatmul.mubr.bf16.gmra.mrb[0].mxu0 %v345
    %v1245 = vpop.f32.mrb[0].mxu0
    %v1246 = vadd.f32 %v1205, %v1245
    %v1247 = vpop.f32.mrb[0].mxu0
    %v1248 = vadd.f32 %v1207, %v1247
    %v1249 = vpop.f32.mrb[0].mxu0
    %v1250 = vpop.f32.mrb[0].mxu0
    %1251 = vdwg.mxu0
    %1252 = vmatprep.subr.bf16.mxu0 %v970
    %1253 = vmatpush1.bf16.msra.mxu0 %v969
    %1254 = vmatprep.subr.bf16.mxu0 %v972
    %1255 = vmatpush1.bf16.msra.mxu0 %v971
    %1256 = vmatprep.subr.bf16.mxu0 %v974
    %1257 = vmatpush1.bf16.msra.mxu0 %v973
    %1258 = vmatprep.subr.bf16.mxu0 %v976
    %1259 = vmatpush1.bf16.msra.mxu0 %v975
    %1260 = vmatprep.subr.bf16.mxu0 %v978
    %1261 = vmatpush1.bf16.msra.mxu0 %v977
    %1262 = vmatprep.subr.bf16.mxu0 %v980
    %1263 = vmatpush1.bf16.msra.mxu0 %v979
    %1264 = vmatprep.subr.bf16.mxu0 %v982
    %1265 = vmatpush1.bf16.msra.mxu0 %v981
    %1266 = vmatprep.subr.bf16.mxu0 %v984
    %1267 = vmatpush1.bf16.msra.mxu0 %v983
    %1268 = vmatprep.subr.bf16.mxu0 %v986
    %1269 = vmatpush1.bf16.msra.mxu0 %v985
    %1270 = vmatprep.subr.bf16.mxu0 %v988
    %1271 = vmatpush1.bf16.msra.mxu0 %v987
    %1272 = vmatprep.subr.bf16.mxu0 %v990
    %1273 = vmatpush1.bf16.msra.mxu0 %v989
    %1274 = vmatprep.subr.bf16.mxu0 %v992
    %1275 = vmatpush1.bf16.msra.mxu0 %v991
    %1276 = vmatprep.subr.bf16.mxu0 %v994
    %1277 = vmatpush1.bf16.msra.mxu0 %v993
    %1278 = vmatprep.subr.bf16.mxu0 %v996
    %1279 = vmatpush1.bf16.msra.mxu0 %v995
    %1280 = vmatprep.subr.bf16.mxu0 %v998
    %1281 = vmatpush1.bf16.msra.mxu0 %v997
    %1282 = vmatprep.subr.bf16.mxu0 %v1000
    %1283 = vmatpush1.bf16.msra.mxu0 %v999
    %1284 = vmatprep.mubr.bf16.mxu0 %v348
    %1285 = vmatmul.mubr.bf16.gmra.mrb[0].mxu0 %v347
    %v1286 = vpop.f32.mrb[0].mxu0
    %v1287 = vadd.f32 %v1246, %v1286
    %v1288 = vpop.f32.mrb[0].mxu0
    %v1289 = vadd.f32 %v1248, %v1288
    %v1290 = vpop.f32.mrb[0].mxu0
    %v1291 = vpop.f32.mrb[0].mxu0
    %1292 = vdwg.mxu0
    %v1293 = vmul.f32 %v1287, 0.1
    %v1294 = vmul.f32 %v1289, 0.1
    %v1295 = vmax.f32 %v1287, %v1293
    %v1296 = vmax.f32 %v1289, %v1294
    %v1297 = vpack.c.bf16 %v1295, %v1295
    %v1298 = vpack.c.bf16 %v1296, %v1296
    %v1299 = vld [vmem:[%s5] sm:$0xf]
    %v1300 = vld [vmem:[%s5 + $0x4] sm:$0xf]
    %v1301 = vld [vmem:[%s5 + $0x8] sm:$0xf]
    %v1302 = vld [vmem:[%s5 + $0xc] sm:$0xf]
    %v1303 = vld [vmem:[%s5 + $0x10] sm:$0xf]
    %v1304 = vld [vmem:[%s5 + $0x14] sm:$0xf]
    %v1305 = vld [vmem:[%s5 + $0x18] sm:$0xf]
    %v1306 = vld [vmem:[%s5 + $0x1c] sm:$0xf]
    %v1307 = vld [vmem:[%s5 + $0x20] sm:$0xf]
    %v1308 = vld [vmem:[%s5 + $0x24] sm:$0xf]
    %v1309 = vld [vmem:[%s5 + $0x28] sm:$0xf]
    %v1310 = vld [vmem:[%s5 + $0x2c] sm:$0xf]
    %v1311 = vld [vmem:[%s5 + $0x30] sm:$0xf]
    %v1312 = vld [vmem:[%s5 + $0x34] sm:$0xf]
    %v1313 = vld [vmem:[%s5 + $0x38] sm:$0xf]
    %v1314 = vld [vmem:[%s5 + $0x3c] sm:$0xf]
    %v1315 = vld [vmem:[%s5 + $0x40] sm:$0xf]
    %v1316 = vld [vmem:[%s5 + $0x44] sm:$0xf]
    %v1317 = vld [vmem:[%s5 + $0x48] sm:$0xf]
    %v1318 = vld [vmem:[%s5 + $0x4c] sm:$0xf]
    %v1319 = vld [vmem:[%s5 + $0x50] sm:$0xf]
    %v1320 = vld [vmem:[%s5 + $0x54] sm:$0xf]
    %v1321 = vld [vmem:[%s5 + $0x58] sm:$0xf]
    %v1322 = vld [vmem:[%s5 + $0x5c] sm:$0xf]
    %v1323 = vld [vmem:[%s5 + $0x60] sm:$0xf]
    %v1324 = vld [vmem:[%s5 + $0x64] sm:$0xf]
    %v1325 = vld [vmem:[%s5 + $0x68] sm:$0xf]
    %v1326 = vld [vmem:[%s5 + $0x6c] sm:$0xf]
    %v1327 = vld [vmem:[%s5 + $0x70] sm:$0xf]
    %v1328 = vld [vmem:[%s5 + $0x74] sm:$0xf]
    %v1329 = vld [vmem:[%s5 + $0x78] sm:$0xf]
    %v1330 = vld [vmem:[%s5 + $0x7c] sm:$0xf]
    %v1331 = vld [vmem:[%s6] sm:$0x1]
    %v1333 = vlaneseq
    %v1334 = vshrl.u32 %v1333, 7
    %v1335 = vsub.s32 0, %v1334
    %v1336 = vrot.slane %v1331, %v1335
    %v1370 = vunpack.c.l.b16 %v1299
    %v1371 = vunpack.c.l.b16 %v1300
    %v1372 = vunpack.c.l.b16 %v1301
    %v1373 = vunpack.c.l.b16 %v1302
    %v1374 = vunpack.c.l.b16 %v1303
    %v1375 = vunpack.c.l.b16 %v1304
    %v1376 = vunpack.c.l.b16 %v1305
    %v1377 = vunpack.c.l.b16 %v1306
    %v1378 = vunpack.c.l.b16 %v1307
    %v1379 = vunpack.c.l.b16 %v1308
    %v1380 = vunpack.c.l.b16 %v1309
    %v1381 = vunpack.c.l.b16 %v1310
    %v1382 = vunpack.c.l.b16 %v1311
    %v1383 = vunpack.c.l.b16 %v1312
    %v1384 = vunpack.c.l.b16 %v1313
    %v1385 = vunpack.c.l.b16 %v1314
    %v1386 = vunpack.c.l.b16 %v1315
    %v1387 = vunpack.c.l.b16 %v1316
    %v1388 = vunpack.c.l.b16 %v1317
    %v1389 = vunpack.c.l.b16 %v1318
    %v1390 = vunpack.c.l.b16 %v1319
    %v1391 = vunpack.c.l.b16 %v1320
    %v1392 = vunpack.c.l.b16 %v1321
    %v1393 = vunpack.c.l.b16 %v1322
    %v1394 = vunpack.c.l.b16 %v1323
    %v1395 = vunpack.c.l.b16 %v1324
    %v1396 = vunpack.c.l.b16 %v1325
    %v1397 = vunpack.c.l.b16 %v1326
    %v1398 = vunpack.c.l.b16 %v1327
    %v1399 = vunpack.c.l.b16 %v1328
    %v1400 = vunpack.c.l.b16 %v1329
    %v1401 = vunpack.c.l.b16 %v1330
    %v1402 = vpack.c.b16 %v1371, %v1370
    %v1403 = vpack.c.b16 %v1373, %v1372
    %v1404 = vpack.c.b16 %v1375, %v1374
    %v1405 = vpack.c.b16 %v1377, %v1376
    %v1406 = vpack.c.b16 %v1379, %v1378
    %v1407 = vpack.c.b16 %v1381, %v1380
    %v1408 = vpack.c.b16 %v1383, %v1382
    %v1409 = vpack.c.b16 %v1385, %v1384
    %v1410 = vpack.c.b16 %v1387, %v1386
    %v1411 = vpack.c.b16 %v1389, %v1388
    %v1412 = vpack.c.b16 %v1391, %v1390
    %v1413 = vpack.c.b16 %v1393, %v1392
    %v1414 = vpack.c.b16 %v1395, %v1394
    %v1415 = vpack.c.b16 %v1397, %v1396
    %v1416 = vpack.c.b16 %v1399, %v1398
    %v1417 = vpack.c.b16 %v1401, %v1400
    %1434 = vmatprep.subr.bf16.mxu0 0
    %1435 = vmatpush1.bf16.msra.mxu0 %v1402
    %1436 = vmatprep.subr.bf16.mxu0 0
    %1437 = vmatpush1.bf16.msra.mxu0 %v1403
    %1438 = vmatprep.subr.bf16.mxu0 0
    %1439 = vmatpush1.bf16.msra.mxu0 %v1404
    %1440 = vmatprep.subr.bf16.mxu0 0
    %1441 = vmatpush1.bf16.msra.mxu0 %v1405
    %1442 = vmatprep.subr.bf16.mxu0 0
    %1443 = vmatpush1.bf16.msra.mxu0 %v1406
    %1444 = vmatprep.subr.bf16.mxu0 0
    %1445 = vmatpush1.bf16.msra.mxu0 %v1407
    %1446 = vmatprep.subr.bf16.mxu0 0
    %1447 = vmatpush1.bf16.msra.mxu0 %v1408
    %1448 = vmatprep.subr.bf16.mxu0 0
    %1449 = vmatpush1.bf16.msra.mxu0 %v1409
    %1450 = vmatprep.subr.bf16.mxu0 0
    %1451 = vmatpush1.bf16.msra.mxu0 %v1410
    %1452 = vmatprep.subr.bf16.mxu0 0
    %1453 = vmatpush1.bf16.msra.mxu0 %v1411
    %1454 = vmatprep.subr.bf16.mxu0 0
    %1455 = vmatpush1.bf16.msra.mxu0 %v1412
    %1456 = vmatprep.subr.bf16.mxu0 0
    %1457 = vmatpush1.bf16.msra.mxu0 %v1413
    %1458 = vmatprep.subr.bf16.mxu0 0
    %1459 = vmatpush1.bf16.msra.mxu0 %v1414
    %1460 = vmatprep.subr.bf16.mxu0 0
    %1461 = vmatpush1.bf16.msra.mxu0 %v1415
    %1462 = vmatprep.subr.bf16.mxu0 0
    %1463 = vmatpush1.bf16.msra.mxu0 %v1416
    %1464 = vmatprep.subr.bf16.mxu0 0
    %1465 = vmatpush1.bf16.msra.mxu0 %v1417
    %1466 = vmatprep.mubr.bf16.mxu0 %v1298
    %1467 = vmatmul.mubr.bf16.gmra.mrb[0].mxu0 %v1297
    %v1468 = vpop.f32.mrb[0].mxu0
    %v1469 = vadd.f32 %v1336, %v1468
    %v1470 = vpop.f32.mrb[0].mxu0
    %v1471 = vpop.f32.mrb[0].mxu0
    %v1472 = vpop.f32.mrb[0].mxu0
    %1473 = vdwg.mxu0
    %v1474 = vmul.f32 %v1469, 0.1
    %v1475 = vmax.f32 %v1469, %v1474
    %v1476 = vpack.c.bf16 %v1475, %v1475
    %v1477 = vld [vmem:[%s7] sm:$0xf]
    %v1478 = vld [vmem:[%s7 + $0x4] sm:$0xf]
    %v1479 = vld [vmem:[%s7 + $0x8] sm:$0xf]
    %v1480 = vld [vmem:[%s7 + $0xc] sm:$0xf]
    %v1481 = vld [vmem:[%s7 + $0x10] sm:$0xf]
    %v1482 = vld [vmem:[%s7 + $0x14] sm:$0xf]
    %v1483 = vld [vmem:[%s7 + $0x18] sm:$0xf]
    %v1484 = vld [vmem:[%s7 + $0x1c] sm:$0xf]
    %v1485 = vld [vmem:[%s8] sm:$0x1]
    %v1487 = vlaneseq
    %v1488 = vshrl.u32 %v1487, 7
    %v1489 = vsub.s32 0, %v1488
    %v1490 = vrot.slane %v1485, %v1489
    %v1500 = vunpack.c.l.b16 %v1477
    %v1501 = vunpack.c.l.b16 %v1478
    %v1502 = vunpack.c.l.b16 %v1479
    %v1503 = vunpack.c.l.b16 %v1480
    %v1504 = vunpack.c.l.b16 %v1481
    %v1505 = vunpack.c.l.b16 %v1482
    %v1506 = vunpack.c.l.b16 %v1483
    %v1507 = vunpack.c.l.b16 %v1484
    %v1508 = vpack.c.b16 %v1501, %v1500
    %v1509 = vpack.c.b16 %v1503, %v1502
    %v1510 = vpack.c.b16 %v1505, %v1504
    %v1511 = vpack.c.b16 %v1507, %v1506
    %vm1516 = vcmask 523264
    %v1518 = vsel %vm1516, %v1476, 0
    %1520 = vmatprep.subr.bf16.mxu0 0
    %1521 = vmatpush1.bf16.msra.mxu0 %v1508
    %1522 = vmatprep.subr.bf16.mxu0 0
    %1523 = vmatpush1.bf16.msra.mxu0 %v1509
    %1524 = vmatprep.subr.bf16.mxu0 0
    %1525 = vmatpush1.bf16.msra.mxu0 %v1510
    %1526 = vmatprep.subr.bf16.mxu0 0
    %1527 = vmatpush1.bf16.msra.mxu0 %v1511
    %1528 = vmatprep.subr.bf16.mxu0 0
    %1529 = vmatpush1.bf16.msra.mxu0 0
    %1530 = vmatprep.subr.bf16.mxu0 0
    %1531 = vmatpush1.bf16.msra.mxu0 0
    %1532 = vmatprep.subr.bf16.mxu0 0
    %1533 = vmatpush1.bf16.msra.mxu0 0
    %1534 = vmatprep.subr.bf16.mxu0 0
    %1535 = vmatpush1.bf16.msra.mxu0 0
    %1536 = vmatprep.subr.bf16.mxu0 0
    %1537 = vmatpush1.bf16.msra.mxu0 0
    %1538 = vmatprep.subr.bf16.mxu0 0
    %1539 = vmatpush1.bf16.msra.mxu0 0
    %1540 = vmatprep.subr.bf16.mxu0 0
    %1541 = vmatpush1.bf16.msra.mxu0 0
    %1542 = vmatprep.subr.bf16.mxu0 0
    %1543 = vmatpush1.bf16.msra.mxu0 0
    %1544 = vmatprep.subr.bf16.mxu0 0
    %1545 = vmatpush1.bf16.msra.mxu0 0
    %1546 = vmatprep.subr.bf16.mxu0 0
    %1547 = vmatpush1.bf16.msra.mxu0 0
    %1548 = vmatprep.subr.bf16.mxu0 0
    %1549 = vmatpush1.bf16.msra.mxu0 0
    %1550 = vmatprep.subr.bf16.mxu0 0
    %1551 = vmatpush1.bf16.msra.mxu0 0
    %1552 = vmatprep.mubr.bf16.mxu0 0
    %1553 = vmatmul.mubr.bf16.gmra.mrb[0].mxu0 %v1518
    %v1554 = vpop.f32.mrb[0].mxu0
    %v1555 = vadd.f32 %v1490, %v1554
    %v1556 = vpop.f32.mrb[0].mxu0
    %v1557 = vpop.f32.mrb[0].mxu0
    %v1558 = vpop.f32.mrb[0].mxu0
    %1559 = vdwg.mxu0
    %vm1560 = vcmask 15360
    %1561 = vst.msk [vmem:[%s9] sm:$0xff] %vm1560, %v1555
    // Predicated region
    $region42: #{tpu_custom_call.1} parent=1 // pred_check
      _
    $region43: #{tpu_custom_call.1} parent=1 // pred_check_branch
      %1563 = sbr.rel (0) target = $region45
    $region44: #{tpu_custom_call.1} parent=1 // pred_region
      _
    $region45: #{tpu_custom_call.1} parent=1 // pred_fallthru
      _
    // Predicated region
    $region46: #{tpu_custom_call.1} parent=1 // pred_check
      _
    $region47: #{tpu_custom_call.1} parent=1 // pred_check_branch
      %1565 = sbr.rel (0) target = $region49
    $region48: #{tpu_custom_call.1} parent=1 // pred_region
      _
    $region49: #{tpu_custom_call.1} parent=1 // pred_fallthru
      _
    %1566 = vsyncpa [#allocation3], 1

// kernel: tpu_custom_call.1
$region0: #{tpu_custom_call.1}
  #allocation0 [shape = 'u32[]', space=smem, size = 0x4, offset = 0x4, fixed_abs, tag = 'smem constant byte address 0x4 - core index']
  #allocation1 [shape = 'u32[144,128]{1,0:T(1,128)}', space=vmem, size = 0x12000, scoped, tag = 'internal scratch']
  %s0 = inlined_call_operand.vmem [shape: f32[8,3], index: 0, kind: input, shape index: {}]
  %s1 = inlined_call_operand.vmem [shape: f32[3,1024], index: 1, kind: input, shape index: {}]
  %s2 = inlined_call_operand.vmem [shape: f32[1,1024], index: 2, kind: input, shape index: {}]
  %s3 = inlined_call_operand.hbm [shape: bf16[1024,256], index: 3, kind: input, shape index: {}]
  %s4 = inlined_call_operand.vmem [shape: f32[1,256], index: 4, kind: input, shape index: {}]
  %s5 = inlined_call_operand.vmem [shape: bf16[256,64], index: 5, kind: input, shape index: {}]
  %s6 = inlined_call_operand.vmem [shape: f32[1,64], index: 6, kind: input, shape index: {}]
  %s7 = inlined_call_operand.vmem [shape: bf16[64,2], index: 7, kind: input, shape index: {}]
  %s8 = inlined_call_operand.vmem [shape: f32[1,2], index: 8, kind: input, shape index: {}]
  %s9 = inlined_call_operand.vmem [shape: f32[8,2], index: 9, kind: output, shape index: {}]
  %s10 = sld [smem:[#allocation0]]
  $region50: #{tpu_custom_call.1} parent=0
    _
  %s12 = ssub.s32 1, %s10
  %s13 = scalar_select 0, %s12, %s10
  $region1: #{tpu_custom_call.1} parent=0
    #allocation2 [shape = 'u8[524288]{0}', space=vmem, size = 0x80000, scoped, tag = 'input window, operand 3, single buffered']
    #allocation3 [shape = 's32[1]{0}', space=sflag, size = 0x4, scoped, tag = 'scoped memory for tpu_custom_call.1']
    %14 = vsyncpa [#allocation3], 0
    // Predicated region
    $region2: #{tpu_custom_call.1} parent=1 // pred_check
      _
    $region3: #{tpu_custom_call.1} parent=1 // pred_check_branch
      %16 = sbr.rel (0) target = $region5
    $region4: #{tpu_custom_call.1} parent=1 // pred_region
      _
    $region5: #{tpu_custom_call.1} parent=1 // pred_fallthru
      _
    // Predicated region
    $region6: #{tpu_custom_call.1} parent=1 // pred_check
      _
    $region7: #{tpu_custom_call.1} parent=1 // pred_check_branch
      %18 = sbr.rel (0) target = $region9
    $region8: #{tpu_custom_call.1} parent=1 // pred_region
      _
    $region9: #{tpu_custom_call.1} parent=1 // pred_fallthru
      _
    // Predicated region
    $region10: #{tpu_custom_call.1} parent=1 // pred_check
      _
    $region11: #{tpu_custom_call.1} parent=1 // pred_check_branch
      %20 = sbr.rel (0) target = $region13
    $region12: #{tpu_custom_call.1} parent=1 // pred_region
      _
    $region13: #{tpu_custom_call.1} parent=1 // pred_fallthru
      _
    // Predicated region
    $region14: #{tpu_custom_call.1} parent=1 // pred_check
      _
    $region15: #{tpu_custom_call.1} parent=1 // pred_check_branch
      %22 = sbr.rel (0) target = $region17
    $region16: #{tpu_custom_call.1} parent=1 // pred_region
      %s24 = ssub.s32 16384, 16384
      %25 = vsyncadd [#allocation3], %s24
      %s26 = sshll.u32 [#allocation2], 4
      %s27 = int_to_ptr.vmem [resolvable:$true] %s26
      %32 = dma.hbm_to_vmem [thread:$0]  %s3, 16384, %s27, [#allocation3], 128, 128, 8
    $region17: #{tpu_custom_call.1} parent=1 // pred_fallthru
      _
    // Predicated region
    $region18: #{tpu_custom_call.1} parent=1 // pred_check
      _
    $region19: #{tpu_custom_call.1} parent=1 // pred_check_branch
      %34 = sbr.rel (0) target = $region21
    $region20: #{tpu_custom_call.1} parent=1 // pred_region
      _
    $region21: #{tpu_custom_call.1} parent=1 // pred_fallthru
      _
    // Predicated region
    $region22: #{tpu_custom_call.1} parent=1 // pred_check
      _
    $region23: #{tpu_custom_call.1} parent=1 // pred_check_branch
      %36 = sbr.rel (0) target = $region25
    $region24: #{tpu_custom_call.1} parent=1 // pred_region
      _
    $region25: #{tpu_custom_call.1} parent=1 // pred_fallthru
      _
    // Predicated region
    $region26: #{tpu_custom_call.1} parent=1 // pred_check
      _
    $region27: #{tpu_custom_call.1} parent=1 // pred_check_branch
      %38 = sbr.rel (0) target = $region29
    $region28: #{tpu_custom_call.1} parent=1 // pred_region
      _
    $region29: #{tpu_custom_call.1} parent=1 // pred_fallthru
      _
    // Predicated region
    $region30: #{tpu_custom_call.1} parent=1 // pred_check
      _
    $region31: #{tpu_custom_call.1} parent=1 // pred_check_branch
      %40 = sbr.rel (0) target = $region33
    $region32: #{tpu_custom_call.1} parent=1 // pred_region
      _
    $region33: #{tpu_custom_call.1} parent=1 // pred_fallthru
      _
    // Predicated region
    $region34: #{tpu_custom_call.1} parent=1 // pred_check
      _
    $region35: #{tpu_custom_call.1} parent=1 // pred_check_branch
      %42 = sbr.rel (0) target = $region37
    $region36: #{tpu_custom_call.1} parent=1 // pred_region
      _
    $region37: #{tpu_custom_call.1} parent=1 // pred_fallthru
      _
    // Predicated region
    $region38: #{tpu_custom_call.1} parent=1 // pred_check
      _
    $region39: #{tpu_custom_call.1} parent=1 // pred_check_branch
      %44 = sbr.rel (0) target = $region41
    $region40: #{tpu_custom_call.1} parent=1 // pred_region
      %45 = dma.done [#allocation3], 16384
    $region41: #{tpu_custom_call.1} parent=1 // pred_fallthru
      _
    %v47 = vld [vmem:[%s0] sm:$0xff]
    %v48 = vld [vmem:[%s1] sm:$0x77]
    %v49 = vld [vmem:[%s1 + $0x8] sm:$0x77]
    %v50 = vld [vmem:[%s1 + $0x10] sm:$0x77]
    %v51 = vld [vmem:[%s1 + $0x18] sm:$0x77]
    %53 = vset.pattern.permute.xlu0 0
    %54 = vperm.xlu0 %53, %v47
    %v55 = vpop.permute.xlu0 %54
    %v61 = vlaneseq
    %v62 = vshrl.u32 %v61, 7
    %v63 = vsub.s32 0, %v62
    %v64 = vrot.slane %v48, %v63
    %v65 = vlaneseq
    %v66 = vshrl.u32 %v65, 7
    %v67 = vsub.s32 4, %v66
    %v68 = vrot.slane %v48, %v67
    %v69 = vlaneseq
    %v70 = vshrl.u32 %v69, 7
    %v71 = vsub.s32 0, %v70
    %v72 = vrot.slane %v49, %v71
    %v73 = vlaneseq
    %v74 = vshrl.u32 %v73, 7
    %v75 = vsub.s32 4, %v74
    %v76 = vrot.slane %v49, %v75
    %v77 = vlaneseq
    %v78 = vshrl.u32 %v77, 7
    %v79 = vsub.s32 0, %v78
    %v80 = vrot.slane %v50, %v79
    %v81 = vlaneseq
    %v82 = vshrl.u32 %v81, 7
    %v83 = vsub.s32 4, %v82
    %v84 = vrot.slane %v50, %v83
    %v85 = vlaneseq
    %v86 = vshrl.u32 %v85, 7
    %v87 = vsub.s32 0, %v86
    %v88 = vrot.slane %v51, %v87
    %v89 = vlaneseq
    %v90 = vshrl.u32 %v89, 7
    %v91 = vsub.s32 4, %v90
    %v92 = vrot.slane %v51, %v91
    %v101 = vlaneseq
    %v102 = vshrl.u32 %v101, 7
    %v103 = vsub.s32 0, %v102
    %v104 = vrot.slane %v64, %v103
    %v105 = vlaneseq
    %v106 = vshrl.u32 %v105, 7
    %v107 = vsub.s32 0, %v106
    %v108 = vrot.slane %v68, %v107
    %v109 = vlaneseq
    %v110 = vshrl.u32 %v109, 7
    %v111 = vsub.s32 0, %v110
    %v112 = vrot.slane %v72, %v111
    %v113 = vlaneseq
    %v114 = vshrl.u32 %v113, 7
    %v115 = vsub.s32 0, %v114
    %v116 = vrot.slane %v76, %v115
    %v117 = vlaneseq
    %v118 = vshrl.u32 %v117, 7
    %v119 = vsub.s32 0, %v118
    %v120 = vrot.slane %v80, %v119
    %v121 = vlaneseq
    %v122 = vshrl.u32 %v121, 7
    %v123 = vsub.s32 0, %v122
    %v124 = vrot.slane %v84, %v123
    %v125 = vlaneseq
    %v126 = vshrl.u32 %v125, 7
    %v127 = vsub.s32 0, %v126
    %v128 = vrot.slane %v88, %v127
    %v129 = vlaneseq
    %v130 = vshrl.u32 %v129, 7
    %v131 = vsub.s32 0, %v130
    %v132 = vrot.slane %v92, %v131
    %v133 = vmul.f32 %v55, %v104
    %v134 = vmul.f32 %v55, %v108
    %v135 = vmul.f32 %v55, %v112
    %v136 = vmul.f32 %v55, %v116
    %v137 = vmul.f32 %v55, %v120
    %v138 = vmul.f32 %v55, %v124
    %v139 = vmul.f32 %v55, %v128
    %v140 = vmul.f32 %v55, %v132
    %141 = vset.pattern.permute.xlu0 1
    %142 = vperm.xlu0 %141, %v47
    %v143 = vpop.permute.xlu0 %142
    %v145 = vlaneseq
    %v146 = vshrl.u32 %v145, 7
    %v147 = vsub.s32 1, %v146
    %v148 = vrot.slane %v48, %v147
    %v149 = vlaneseq
    %v150 = vshrl.u32 %v149, 7
    %v151 = vsub.s32 5, %v150
    %v152 = vrot.slane %v48, %v151
    %v153 = vlaneseq
    %v154 = vshrl.u32 %v153, 7
    %v155 = vsub.s32 1, %v154
    %v156 = vrot.slane %v49, %v155
    %v157 = vlaneseq
    %v158 = vshrl.u32 %v157, 7
    %v159 = vsub.s32 5, %v158
    %v160 = vrot.slane %v49, %v159
    %v161 = vlaneseq
    %v162 = vshrl.u32 %v161, 7
    %v163 = vsub.s32 1, %v162
    %v164 = vrot.slane %v50, %v163
    %v165 = vlaneseq
    %v166 = vshrl.u32 %v165, 7
    %v167 = vsub.s32 5, %v166
    %v168 = vrot.slane %v50, %v167
    %v169 = vlaneseq
    %v170 = vshrl.u32 %v169, 7
    %v171 = vsub.s32 1, %v170
    %v172 = vrot.slane %v51, %v171
    %v173 = vlaneseq
    %v174 = vshrl.u32 %v173, 7
    %v175 = vsub.s32 5, %v174
    %v176 = vrot.slane %v51, %v175
    %v185 = vlaneseq
    %v186 = vshrl.u32 %v185, 7
    %v187 = vsub.s32 1, %v186
    %v188 = vrot.slane %v148, %v187
    %v189 = vlaneseq
    %v190 = vshrl.u32 %v189, 7
    %v191 = vsub.s32 1, %v190
    %v192 = vrot.slane %v152, %v191
    %v193 = vlaneseq
    %v194 = vshrl.u32 %v193, 7
    %v195 = vsub.s32 1, %v194
    %v196 = vrot.slane %v156, %v195
    %v197 = vlaneseq
    %v198 = vshrl.u32 %v197, 7
    %v199 = vsub.s32 1, %v198
    %v200 = vrot.slane %v160, %v199
    %v201 = vlaneseq
    %v202 = vshrl.u32 %v201, 7
    %v203 = vsub.s32 1, %v202
    %v204 = vrot.slane %v164, %v203
    %v205 = vlaneseq
    %v206 = vshrl.u32 %v205, 7
    %v207 = vsub.s32 1, %v206
    %v208 = vrot.slane %v168, %v207
    %v209 = vlaneseq
    %v210 = vshrl.u32 %v209, 7
    %v211 = vsub.s32 1, %v210
    %v212 = vrot.slane %v172, %v211
    %v213 = vlaneseq
    %v214 = vshrl.u32 %v213, 7
    %v215 = vsub.s32 1, %v214
    %v216 = vrot.slane %v176, %v215
    %v217 = vmul.f32 %v143, %v188
    %v218 = vmul.f32 %v143, %v192
    %v219 = vmul.f32 %v143, %v196
    %v220 = vmul.f32 %v143, %v200
    %v221 = vmul.f32 %v143, %v204
    %v222 = vmul.f32 %v143, %v208
    %v223 = vmul.f32 %v143, %v212
    %v224 = vmul.f32 %v143, %v216
    %v225 = vadd.f32 %v133, %v217
    %v226 = vadd.f32 %v134, %v218
    %v227 = vadd.f32 %v135, %v219
    %v228 = vadd.f32 %v136, %v220
    %v229 = vadd.f32 %v137, %v221
    %v230 = vadd.f32 %v138, %v222
    %v231 = vadd.f32 %v139, %v223
    %v232 = vadd.f32 %v140, %v224
    %233 = vset.pattern.permute.xlu0 2
    %234 = vperm.xlu0 %233, %v47
    %v235 = vpop.permute.xlu0 %234
    %v237 = vlaneseq
    %v238 = vshrl.u32 %v237, 7
    %v239 = vsub.s32 2, %v238
    %v240 = vrot.slane %v48, %v239
    %v241 = vlaneseq
    %v242 = vshrl.u32 %v241, 7
    %v243 = vsub.s32 6, %v242
    %v244 = vrot.slane %v48, %v243
    %v245 = vlaneseq
    %v246 = vshrl.u32 %v245, 7
    %v247 = vsub.s32 2, %v246
    %v248 = vrot.slane %v49, %v247
    %v249 = vlaneseq
    %v250 = vshrl.u32 %v249, 7
    %v251 = vsub.s32 6, %v250
    %v252 = vrot.slane %v49, %v251
    %v253 = vlaneseq
    %v254 = vshrl.u32 %v253, 7
    %v255 = vsub.s32 2, %v254
    %v256 = vrot.slane %v50, %v255
    %v257 = vlaneseq
    %v258 = vshrl.u32 %v257, 7
    %v259 = vsub.s32 6, %v258
    %v260 = vrot.slane %v50, %v259
    %v261 = vlaneseq
    %v262 = vshrl.u32 %v261, 7
    %v263 = vsub.s32 2, %v262
    %v264 = vrot.slane %v51, %v263
    %v265 = vlaneseq
    %v266 = vshrl.u32 %v265, 7
    %v267 = vsub.s32 6, %v266
    %v268 = vrot.slane %v51, %v267
    %v277 = vlaneseq
    %v278 = vshrl.u32 %v277, 7
    %v279 = vsub.s32 2, %v278
    %v280 = vrot.slane %v240, %v279
    %v281 = vlaneseq
    %v282 = vshrl.u32 %v281, 7
    %v283 = vsub.s32 2, %v282
    %v284 = vrot.slane %v244, %v283
    %v285 = vlaneseq
    %v286 = vshrl.u32 %v285, 7
    %v287 = vsub.s32 2, %v286
    %v288 = vrot.slane %v248, %v287
    %v289 = vlaneseq
    %v290 = vshrl.u32 %v289, 7
    %v291 = vsub.s32 2, %v290
    %v292 = vrot.slane %v252, %v291
    %v293 = vlaneseq
    %v294 = vshrl.u32 %v293, 7
    %v295 = vsub.s32 2, %v294
    %v296 = vrot.slane %v256, %v295
    %v297 = vlaneseq
    %v298 = vshrl.u32 %v297, 7
    %v299 = vsub.s32 2, %v298
    %v300 = vrot.slane %v260, %v299
    %v301 = vlaneseq
    %v302 = vshrl.u32 %v301, 7
    %v303 = vsub.s32 2, %v302
    %v304 = vrot.slane %v264, %v303
    %v305 = vlaneseq
    %v306 = vshrl.u32 %v305, 7
    %v307 = vsub.s32 2, %v306
    %v308 = vrot.slane %v268, %v307
    %v309 = vmul.f32 %v235, %v280
    %v310 = vmul.f32 %v235, %v284
    %v311 = vmul.f32 %v235, %v288
    %v312 = vmul.f32 %v235, %v292
    %v313 = vmul.f32 %v235, %v296
    %v314 = vmul.f32 %v235, %v300
    %v315 = vmul.f32 %v235, %v304
    %v316 = vmul.f32 %v235, %v308
    %v317 = vadd.f32 %v225, %v309
    %v318 = vadd.f32 %v226, %v310
    %v319 = vadd.f32 %v227, %v311
    %v320 = vadd.f32 %v228, %v312
    %v321 = vadd.f32 %v229, %v313
    %v322 = vadd.f32 %v230, %v314
    %v323 = vadd.f32 %v231, %v315
    %v324 = vadd.f32 %v232, %v316
    %v325 = vld [vmem:[%s2] sm:$0xff]
    %v327 = vlaneseq
    %v328 = vshrl.u32 %v327, 7
    %v329 = vsub.s32 0, %v328
    %v330 = vrot.slane %v325, %v329
    %v331 = vlaneseq
    %v332 = vshrl.u32 %v331, 7
    %v333 = vsub.s32 1, %v332
    %v334 = vrot.slane %v325, %v333
    %v335 = vlaneseq
    %v336 = vshrl.u32 %v335, 7
    %v337 = vsub.s32 2, %v336
    %v338 = vrot.slane %v325, %v337
    %v339 = vlaneseq
    %v340 = vshrl.u32 %v339, 7
    %v341 = vsub.s32 3, %v340
    %v342 = vrot.slane %v325, %v341
    %v343 = vlaneseq
    %v344 = vshrl.u32 %v343, 7
    %v345 = vsub.s32 4, %v344
    %v346 = vrot.slane %v325, %v345
    %v347 = vlaneseq
    %v348 = vshrl.u32 %v347, 7
    %v349 = vsub.s32 5, %v348
    %v350 = vrot.slane %v325, %v349
    %v351 = vlaneseq
    %v352 = vshrl.u32 %v351, 7
    %v353 = vsub.s32 6, %v352
    %v354 = vrot.slane %v325, %v353
    %v355 = vlaneseq
    %v356 = vshrl.u32 %v355, 7
    %v357 = vsub.s32 7, %v356
    %v358 = vrot.slane %v325, %v357
    %v367 = vadd.f32 %v317, %v330
    %v368 = vadd.f32 %v318, %v334
    %v369 = vadd.f32 %v319, %v338
    %v370 = vadd.f32 %v320, %v342
    %v371 = vadd.f32 %v321, %v346
    %v372 = vadd.f32 %v322, %v350
    %v373 = vadd.f32 %v323, %v354
    %v374 = vadd.f32 %v324, %v358
    %v375 = vmul.f32 %v367, 0.1
    %v376 = vmul.f32 %v368, 0.1
    %v377 = vmul.f32 %v369, 0.1
    %v378 = vmul.f32 %v370, 0.1
    %v379 = vmul.f32 %v371, 0.1
    %v380 = vmul.f32 %v372, 0.1
    %v381 = vmul.f32 %v373, 0.1
    %v382 = vmul.f32 %v374, 0.1
    %v383 = vmax.f32 %v367, %v375
    %v384 = vmax.f32 %v368, %v376
    %v385 = vmax.f32 %v369, %v377
    %v386 = vmax.f32 %v370, %v378
    %v387 = vmax.f32 %v371, %v379
    %v388 = vmax.f32 %v372, %v380
    %v389 = vmax.f32 %v373, %v381
    %v390 = vmax.f32 %v374, %v382
    %v391 = vpack.c.bf16 %v383, %v383
    %v392 = vpack.c.bf16 %v384, %v384
    %v393 = vpack.c.bf16 %v385, %v385
    %v394 = vpack.c.bf16 %v386, %v386
    %v395 = vpack.c.bf16 %v387, %v387
    %v396 = vpack.c.bf16 %v388, %v388
    %v397 = vpack.c.bf16 %v389, %v389
    %v398 = vpack.c.bf16 %v390, %v390
    %v399 = vld [vmem:[#allocation2] sm:$0xff]
    %v400 = vld [vmem:[#allocation2 + $0x8] sm:$0xff]
    %v401 = vld [vmem:[#allocation2 + $0x10] sm:$0xff]
    %v402 = vld [vmem:[#allocation2 + $0x18] sm:$0xff]
    %v403 = vld [vmem:[#allocation2 + $0x20] sm:$0xff]
    %v404 = vld [vmem:[#allocation2 + $0x28] sm:$0xff]
    %v405 = vld [vmem:[#allocation2 + $0x30] sm:$0xff]
    %v406 = vld [vmem:[#allocation2 + $0x38] sm:$0xff]
    %v407 = vld [vmem:[#allocation2 + $0x40] sm:$0xff]
    %v408 = vld [vmem:[#allocation2 + $0x48] sm:$0xff]
    %v409 = vld [vmem:[#allocation2 + $0x50] sm:$0xff]
    %v410 = vld [vmem:[#allocation2 + $0x58] sm:$0xff]
    %v411 = vld [vmem:[#allocation2 + $0x60] sm:$0xff]
    %v412 = vld [vmem:[#allocation2 + $0x68] sm:$0xff]
    %v413 = vld [vmem:[#allocation2 + $0x70] sm:$0xff]
    %v414 = vld [vmem:[#allocation2 + $0x78] sm:$0xff]
    %v415 = vld [vmem:[#allocation2 + $0x80] sm:$0xff]
    %v416 = vld [vmem:[#allocation2 + $0x88] sm:$0xff]
    %v417 = vld [vmem:[#allocation2 + $0x90] sm:$0xff]
    %v418 = vld [vmem:[#allocation2 + $0x98] sm:$0xff]
    %v419 = vld [vmem:[#allocation2 + $0xa0] sm:$0xff]
    %v420 = vld [vmem:[#allocation2 + $0xa8] sm:$0xff]
    %v421 = vld [vmem:[#allocation2 + $0xb0] sm:$0xff]
    %v422 = vld [vmem:[#allocation2 + $0xb8] sm:$0xff]
    %v423 = vld [vmem:[#allocation2 + $0xc0] sm:$0xff]
    %v424 = vld [vmem:[#allocation2 + $0xc8] sm:$0xff]
    %v425 = vld [vmem:[#allocation2 + $0xd0] sm:$0xff]
    %v426 = vld [vmem:[#allocation2 + $0xd8] sm:$0xff]
    %v427 = vld [vmem:[#allocation2 + $0xe0] sm:$0xff]
    %v428 = vld [vmem:[#allocation2 + $0xe8] sm:$0xff]
    %v429 = vld [vmem:[#allocation2 + $0xf0] sm:$0xff]
    %v430 = vld [vmem:[#allocation2 + $0xf8] sm:$0xff]
    %v431 = vld [vmem:[#allocation2 + $0x100] sm:$0xff]
    %v432 = vld [vmem:[#allocation2 + $0x108] sm:$0xff]
    %v433 = vld [vmem:[#allocation2 + $0x110] sm:$0xff]
    %v434 = vld [vmem:[#allocation2 + $0x118] sm:$0xff]
    %v435 = vld [vmem:[#allocation2 + $0x120] sm:$0xff]
    %v436 = vld [vmem:[#allocation2 + $0x128] sm:$0xff]
    %v437 = vld [vmem:[#allocation2 + $0x130] sm:$0xff]
    %v438 = vld [vmem:[#allocation2 + $0x138] sm:$0xff]
    %v439 = vld [vmem:[#allocation2 + $0x140] sm:$0xff]
    %v440 = vld [vmem:[#allocation2 + $0x148] sm:$0xff]
    %v441 = vld [vmem:[#allocation2 + $0x150] sm:$0xff]
    %v442 = vld [vmem:[#allocation2 + $0x158] sm:$0xff]
    %v443 = vld [vmem:[#allocation2 + $0x160] sm:$0xff]
    %v444 = vld [vmem:[#allocation2 + $0x168] sm:$0xff]
    %v445 = vld [vmem:[#allocation2 + $0x170] sm:$0xff]
    %v446 = vld [vmem:[#allocation2 + $0x178] sm:$0xff]
    %v447 = vld [vmem:[#allocation2 + $0x180] sm:$0xff]
    %v448 = vld [vmem:[#allocation2 + $0x188] sm:$0xff]
    %v449 = vld [vmem:[#allocation2 + $0x190] sm:$0xff]
    %v450 = vld [vmem:[#allocation2 + $0x198] sm:$0xff]
    %v451 = vld [vmem:[#allocation2 + $0x1a0] sm:$0xff]
    %v452 = vld [vmem:[#allocation2 + $0x1a8] sm:$0xff]
    %v453 = vld [vmem:[#allocation2 + $0x1b0] sm:$0xff]
    %v454 = vld [vmem:[#allocation2 + $0x1b8] sm:$0xff]
    %v455 = vld [vmem:[#allocation2 + $0x1c0] sm:$0xff]
    %v456 = vld [vmem:[#allocation2 + $0x1c8] sm:$0xff]
    %v457 = vld [vmem:[#allocation2 + $0x1d0] sm:$0xff]
    %v458 = vld [vmem:[#allocation2 + $0x1d8] sm:$0xff]
    %v459 = vld [vmem:[#allocation2 + $0x1e0] sm:$0xff]
    %v460 = vld [vmem:[#allocation2 + $0x1e8] sm:$0xff]
    %v461 = vld [vmem:[#allocation2 + $0x1f0] sm:$0xff]
    %v462 = vld [vmem:[#allocation2 + $0x1f8] sm:$0xff]
    %v463 = vld [vmem:[#allocation2 + $0x200] sm:$0xff]
    %v464 = vld [vmem:[#allocation2 + $0x208] sm:$0xff]
    %v465 = vld [vmem:[#allocation2 + $0x210] sm:$0xff]
    %v466 = vld [vmem:[#allocation2 + $0x218] sm:$0xff]
    %v467 = vld [vmem:[#allocation2 + $0x220] sm:$0xff]
    %v468 = vld [vmem:[#allocation2 + $0x228] sm:$0xff]
    %v469 = vld [vmem:[#allocation2 + $0x230] sm:$0xff]
    %v470 = vld [vmem:[#allocation2 + $0x238] sm:$0xff]
    %v471 = vld [vmem:[#allocation2 + $0x240] sm:$0xff]
    %v472 = vld [vmem:[#allocation2 + $0x248] sm:$0xff]
    %v473 = vld [vmem:[#allocation2 + $0x250] sm:$0xff]
    %v474 = vld [vmem:[#allocation2 + $0x258] sm:$0xff]
    %v475 = vld [vmem:[#allocation2 + $0x260] sm:$0xff]
    %v476 = vld [vmem:[#allocation2 + $0x268] sm:$0xff]
    %v477 = vld [vmem:[#allocation2 + $0x270] sm:$0xff]
    %v478 = vld [vmem:[#allocation2 + $0x278] sm:$0xff]
    %v479 = vld [vmem:[#allocation2 + $0x280] sm:$0xff]
    %v480 = vld [vmem:[#allocation2 + $0x288] sm:$0xff]
    %v481 = vld [vmem:[#allocation2 + $0x290] sm:$0xff]
    %v482 = vld [vmem:[#allocation2 + $0x298] sm:$0xff]
    %v483 = vld [vmem:[#allocation2 + $0x2a0] sm:$0xff]
    %v484 = vld [vmem:[#allocation2 + $0x2a8] sm:$0xff]
    %v485 = vld [vmem:[#allocation2 + $0x2b0] sm:$0xff]
    %v486 = vld [vmem:[#allocation2 + $0x2b8] sm:$0xff]
    %v487 = vld [vmem:[#allocation2 + $0x2c0] sm:$0xff]
    %v488 = vld [vmem:[#allocation2 + $0x2c8] sm:$0xff]
    %v489 = vld [vmem:[#allocation2 + $0x2d0] sm:$0xff]
    %v490 = vld [vmem:[#allocation2 + $0x2d8] sm:$0xff]
    %v491 = vld [vmem:[#allocation2 + $0x2e0] sm:$0xff]
    %v492 = vld [vmem:[#allocation2 + $0x2e8] sm:$0xff]
    %v493 = vld [vmem:[#allocation2 + $0x2f0] sm:$0xff]
    %v494 = vld [vmem:[#allocation2 + $0x2f8] sm:$0xff]
    %v495 = vld [vmem:[#allocation2 + $0x300] sm:$0xff]
    %v496 = vld [vmem:[#allocation2 + $0x308] sm:$0xff]
    %v497 = vld [vmem:[#allocation2 + $0x310] sm:$0xff]
    %v498 = vld [vmem:[#allocation2 + $0x318] sm:$0xff]
    %v499 = vld [vmem:[#allocation2 + $0x320] sm:$0xff]
    %v500 = vld [vmem:[#allocation2 + $0x328] sm:$0xff]
    %v501 = vld [vmem:[#allocation2 + $0x330] sm:$0xff]
    %v502 = vld [vmem:[#allocation2 + $0x338] sm:$0xff]
    %v503 = vld [vmem:[#allocation2 + $0x340] sm:$0xff]
    %v504 = vld [vmem:[#allocation2 + $0x348] sm:$0xff]
    %v505 = vld [vmem:[#allocation2 + $0x350] sm:$0xff]
    %v506 = vld [vmem:[#allocation2 + $0x358] sm:$0xff]
    %v507 = vld [vmem:[#allocation2 + $0x360] sm:$0xff]
    %v508 = vld [vmem:[#allocation2 + $0x368] sm:$0xff]
    %v509 = vld [vmem:[#allocation2 + $0x370] sm:$0xff]
    %v510 = vld [vmem:[#allocation2 + $0x378] sm:$0xff]
    %v511 = vld [vmem:[#allocation2 + $0x380] sm:$0xff]
    %v512 = vld [vmem:[#allocation2 + $0x388] sm:$0xff]
    %v513 = vld [vmem:[#allocation2 + $0x390] sm:$0xff]
    %v514 = vld [vmem:[#allocation2 + $0x398] sm:$0xff]
    %v515 = vld [vmem:[#allocation2 + $0x3a0] sm:$0xff]
    %v516 = vld [vmem:[#allocation2 + $0x3a8] sm:$0xff]
    %v517 = vld [vmem:[#allocation2 + $0x3b0] sm:$0xff]
    %v518 = vld [vmem:[#allocation2 + $0x3b8] sm:$0xff]
    %v519 = vld [vmem:[#allocation2 + $0x3c0] sm:$0xff]
    %v520 = vld [vmem:[#allocation2 + $0x3c8] sm:$0xff]
    %v521 = vld [vmem:[#allocation2 + $0x3d0] sm:$0xff]
    %v522 = vld [vmem:[#allocation2 + $0x3d8] sm:$0xff]
    %v523 = vld [vmem:[#allocation2 + $0x3e0] sm:$0xff]
    %v524 = vld [vmem:[#allocation2 + $0x3e8] sm:$0xff]
    %v525 = vld [vmem:[#allocation2 + $0x3f0] sm:$0xff]
    %v526 = vld [vmem:[#allocation2 + $0x3f8] sm:$0xff]
    %v527 = vld [vmem:[%s4] sm:$0x3]
    %v529 = vlaneseq
    %v530 = vshrl.u32 %v529, 7
    %v531 = vsub.s32 0, %v530
    %v532 = vrot.slane %v527, %v531
    %v533 = vlaneseq
    %v534 = vshrl.u32 %v533, 7
    %v535 = vsub.s32 1, %v534
    %v536 = vrot.slane %v527, %v535
    %v667 = vunpack.c.l.b16 %v399
    %v668 = vunpack.c.h.b16 %v399
    %v669 = vunpack.c.l.b16 %v400
    %v670 = vunpack.c.h.b16 %v400
    %v671 = vunpack.c.l.b16 %v401
    %v672 = vunpack.c.h.b16 %v401
    %v673 = vunpack.c.l.b16 %v402
    %v674 = vunpack.c.h.b16 %v402
    %v675 = vunpack.c.l.b16 %v403
    %v676 = vunpack.c.h.b16 %v403
    %v677 = vunpack.c.l.b16 %v404
    %v678 = vunpack.c.h.b16 %v404
    %v679 = vunpack.c.l.b16 %v405
    %v680 = vunpack.c.h.b16 %v405
    %v681 = vunpack.c.l.b16 %v406
    %v682 = vunpack.c.h.b16 %v406
    %v683 = vunpack.c.l.b16 %v407
    %v684 = vunpack.c.h.b16 %v407
    %v685 = vunpack.c.l.b16 %v408
    %v686 = vunpack.c.h.b16 %v408
    %v687 = vunpack.c.l.b16 %v409
    %v688 = vunpack.c.h.b16 %v409
    %v689 = vunpack.c.l.b16 %v410
    %v690 = vunpack.c.h.b16 %v410
    %v691 = vunpack.c.l.b16 %v411
    %v692 = vunpack.c.h.b16 %v411
    %v693 = vunpack.c.l.b16 %v412
    %v694 = vunpack.c.h.b16 %v412
    %v695 = vunpack.c.l.b16 %v413
    %v696 = vunpack.c.h.b16 %v413
    %v697 = vunpack.c.l.b16 %v414
    %v698 = vunpack.c.h.b16 %v414
    %v699 = vunpack.c.l.b16 %v415
    %v700 = vunpack.c.h.b16 %v415
    %v701 = vunpack.c.l.b16 %v416
    %v702 = vunpack.c.h.b16 %v416
    %v703 = vunpack.c.l.b16 %v417
    %v704 = vunpack.c.h.b16 %v417
    %v705 = vunpack.c.l.b16 %v418
    %v706 = vunpack.c.h.b16 %v418
    %v707 = vunpack.c.l.b16 %v419
    %v708 = vunpack.c.h.b16 %v419
    %v709 = vunpack.c.l.b16 %v420
    %v710 = vunpack.c.h.b16 %v420
    %v711 = vunpack.c.l.b16 %v421
    %v712 = vunpack.c.h.b16 %v421
    %v713 = vunpack.c.l.b16 %v422
    %v714 = vunpack.c.h.b16 %v422
    %v715 = vunpack.c.l.b16 %v423
    %v716 = vunpack.c.h.b16 %v423
    %v717 = vunpack.c.l.b16 %v424
    %v718 = vunpack.c.h.b16 %v424
    %v719 = vunpack.c.l.b16 %v425
    %v720 = vunpack.c.h.b16 %v425
    %v721 = vunpack.c.l.b16 %v426
    %v722 = vunpack.c.h.b16 %v426
    %v723 = vunpack.c.l.b16 %v427
    %v724 = vunpack.c.h.b16 %v427
    %v725 = vunpack.c.l.b16 %v428
    %v726 = vunpack.c.h.b16 %v428
    %v727 = vunpack.c.l.b16 %v429
    %v728 = vunpack.c.h.b16 %v429
    %v729 = vunpack.c.l.b16 %v430
    %v730 = vunpack.c.h.b16 %v430
    %v731 = vunpack.c.l.b16 %v431
    %v732 = vunpack.c.h.b16 %v431
    %v733 = vunpack.c.l.b16 %v432
    %v734 = vunpack.c.h.b16 %v432
    %v735 = vunpack.c.l.b16 %v433
    %v736 = vunpack.c.h.b16 %v433
    %v737 = vunpack.c.l.b16 %v434
    %v738 = vunpack.c.h.b16 %v434
    %v739 = vunpack.c.l.b16 %v435
    %v740 = vunpack.c.h.b16 %v435
    %v741 = vunpack.c.l.b16 %v436
    %v742 = vunpack.c.h.b16 %v436
    %v743 = vunpack.c.l.b16 %v437
    %v744 = vunpack.c.h.b16 %v437
    %v745 = vunpack.c.l.b16 %v438
    %v746 = vunpack.c.h.b16 %v438
    %v747 = vunpack.c.l.b16 %v439
    %v748 = vunpack.c.h.b16 %v439
    %v749 = vunpack.c.l.b16 %v440
    %v750 = vunpack.c.h.b16 %v440
    %v751 = vunpack.c.l.b16 %v441
    %v752 = vunpack.c.h.b16 %v441
    %v753 = vunpack.c.l.b16 %v442
    %v754 = vunpack.c.h.b16 %v442
    %v755 = vunpack.c.l.b16 %v443
    %v756 = vunpack.c.h.b16 %v443
    %v757 = vunpack.c.l.b16 %v444
    %v758 = vunpack.c.h.b16 %v444
    %v759 = vunpack.c.l.b16 %v445
    %v760 = vunpack.c.h.b16 %v445
    %v761 = vunpack.c.l.b16 %v446
    %v762 = vunpack.c.h.b16 %v446
    %v763 = vunpack.c.l.b16 %v447
    %v764 = vunpack.c.h.b16 %v447
    %v765 = vunpack.c.l.b16 %v448
    %v766 = vunpack.c.h.b16 %v448
    %v767 = vunpack.c.l.b16 %v449
    %v768 = vunpack.c.h.b16 %v449
    %v769 = vunpack.c.l.b16 %v450
    %v770 = vunpack.c.h.b16 %v450
    %v771 = vunpack.c.l.b16 %v451
    %v772 = vunpack.c.h.b16 %v451
    %v773 = vunpack.c.l.b16 %v452
    %v774 = vunpack.c.h.b16 %v452
    %v775 = vunpack.c.l.b16 %v453
    %v776 = vunpack.c.h.b16 %v453
    %v777 = vunpack.c.l.b16 %v454
    %v778 = vunpack.c.h.b16 %v454
    %v779 = vunpack.c.l.b16 %v455
    %v780 = vunpack.c.h.b16 %v455
    %v781 = vunpack.c.l.b16 %v456
    %v782 = vunpack.c.h.b16 %v456
    %v783 = vunpack.c.l.b16 %v457
    %v784 = vunpack.c.h.b16 %v457
    %v785 = vunpack.c.l.b16 %v458
    %v786 = vunpack.c.h.b16 %v458
    %v787 = vunpack.c.l.b16 %v459
    %v788 = vunpack.c.h.b16 %v459
    %v789 = vunpack.c.l.b16 %v460
    %v790 = vunpack.c.h.b16 %v460
    %v791 = vunpack.c.l.b16 %v461
    %v792 = vunpack.c.h.b16 %v461
    %v793 = vunpack.c.l.b16 %v462
    %v794 = vunpack.c.h.b16 %v462
    %v795 = vunpack.c.l.b16 %v463
    %v796 = vunpack.c.h.b16 %v463
    %v797 = vunpack.c.l.b16 %v464
    %v798 = vunpack.c.h.b16 %v464
    %v799 = vunpack.c.l.b16 %v465
    %v800 = vunpack.c.h.b16 %v465
    %v801 = vunpack.c.l.b16 %v466
    %v802 = vunpack.c.h.b16 %v466
    %v803 = vunpack.c.l.b16 %v467
    %v804 = vunpack.c.h.b16 %v467
    %v805 = vunpack.c.l.b16 %v468
    %v806 = vunpack.c.h.b16 %v468
    %v807 = vunpack.c.l.b16 %v469
    %v808 = vunpack.c.h.b16 %v469
    %v809 = vunpack.c.l.b16 %v470
    %v810 = vunpack.c.h.b16 %v470
    %v811 = vunpack.c.l.b16 %v471
    %v812 = vunpack.c.h.b16 %v471
    %v813 = vunpack.c.l.b16 %v472
    %v814 = vunpack.c.h.b16 %v472
    %v815 = vunpack.c.l.b16 %v473
    %v816 = vunpack.c.h.b16 %v473
    %v817 = vunpack.c.l.b16 %v474
    %v818 = vunpack.c.h.b16 %v474
    %v819 = vunpack.c.l.b16 %v475
    %v820 = vunpack.c.h.b16 %v475
    %v821 = vunpack.c.l.b16 %v476
    %v822 = vunpack.c.h.b16 %v476
    %v823 = vunpack.c.l.b16 %v477
    %v824 = vunpack.c.h.b16 %v477
    %v825 = vunpack.c.l.b16 %v478
    %v826 = vunpack.c.h.b16 %v478
    %v827 = vunpack.c.l.b16 %v479
    %v828 = vunpack.c.h.b16 %v479
    %v829 = vunpack.c.l.b16 %v480
    %v830 = vunpack.c.h.b16 %v480
    %v831 = vunpack.c.l.b16 %v481
    %v832 = vunpack.c.h.b16 %v481
    %v833 = vunpack.c.l.b16 %v482
    %v834 = vunpack.c.h.b16 %v482
    %v835 = vunpack.c.l.b16 %v483
    %v836 = vunpack.c.h.b16 %v483
    %v837 = vunpack.c.l.b16 %v484
    %v838 = vunpack.c.h.b16 %v484
    %v839 = vunpack.c.l.b16 %v485
    %v840 = vunpack.c.h.b16 %v485
    %v841 = vunpack.c.l.b16 %v486
    %v842 = vunpack.c.h.b16 %v486
    %v843 = vunpack.c.l.b16 %v487
    %v844 = vunpack.c.h.b16 %v487
    %v845 = vunpack.c.l.b16 %v488
    %v846 = vunpack.c.h.b16 %v488
    %v847 = vunpack.c.l.b16 %v489
    %v848 = vunpack.c.h.b16 %v489
    %v849 = vunpack.c.l.b16 %v490
    %v850 = vunpack.c.h.b16 %v490
    %v851 = vunpack.c.l.b16 %v491
    %v852 = vunpack.c.h.b16 %v491
    %v853 = vunpack.c.l.b16 %v492
    %v854 = vunpack.c.h.b16 %v492
    %v855 = vunpack.c.l.b16 %v493
    %v856 = vunpack.c.h.b16 %v493
    %v857 = vunpack.c.l.b16 %v494
    %v858 = vunpack.c.h.b16 %v494
    %v859 = vunpack.c.l.b16 %v495
    %v860 = vunpack.c.h.b16 %v495
    %v861 = vunpack.c.l.b16 %v496
    %v862 = vunpack.c.h.b16 %v496
    %v863 = vunpack.c.l.b16 %v497
    %v864 = vunpack.c.h.b16 %v497
    %v865 = vunpack.c.l.b16 %v498
    %v866 = vunpack.c.h.b16 %v498
    %v867 = vunpack.c.l.b16 %v499
    %v868 = vunpack.c.h.b16 %v499
    %v869 = vunpack.c.l.b16 %v500
    %v870 = vunpack.c.h.b16 %v500
    %v871 = vunpack.c.l.b16 %v501
    %v872 = vunpack.c.h.b16 %v501
    %v873 = vunpack.c.l.b16 %v502
    %v874 = vunpack.c.h.b16 %v502
    %v875 = vunpack.c.l.b16 %v503
    %v876 = vunpack.c.h.b16 %v503
    %v877 = vunpack.c.l.b16 %v504
    %v878 = vunpack.c.h.b16 %v504
    %v879 = vunpack.c.l.b16 %v505
    %v880 = vunpack.c.h.b16 %v505
    %v881 = vunpack.c.l.b16 %v506
    %v882 = vunpack.c.h.b16 %v506
    %v883 = vunpack.c.l.b16 %v507
    %v884 = vunpack.c.h.b16 %v507
    %v885 = vunpack.c.l.b16 %v508
    %v886 = vunpack.c.h.b16 %v508
    %v887 = vunpack.c.l.b16 %v509
    %v888 = vunpack.c.h.b16 %v509
    %v889 = vunpack.c.l.b16 %v510
    %v890 = vunpack.c.h.b16 %v510
    %v891 = vunpack.c.l.b16 %v511
    %v892 = vunpack.c.h.b16 %v511
    %v893 = vunpack.c.l.b16 %v512
    %v894 = vunpack.c.h.b16 %v512
    %v895 = vunpack.c.l.b16 %v513
    %v896 = vunpack.c.h.b16 %v513
    %v897 = vunpack.c.l.b16 %v514
    %v898 = vunpack.c.h.b16 %v514
    %v899 = vunpack.c.l.b16 %v515
    %v900 = vunpack.c.h.b16 %v515
    %v901 = vunpack.c.l.b16 %v516
    %v902 = vunpack.c.h.b16 %v516
    %v903 = vunpack.c.l.b16 %v517
    %v904 = vunpack.c.h.b16 %v517
    %v905 = vunpack.c.l.b16 %v518
    %v906 = vunpack.c.h.b16 %v518
    %v907 = vunpack.c.l.b16 %v519
    %v908 = vunpack.c.h.b16 %v519
    %v909 = vunpack.c.l.b16 %v520
    %v910 = vunpack.c.h.b16 %v520
    %v911 = vunpack.c.l.b16 %v521
    %v912 = vunpack.c.h.b16 %v521
    %v913 = vunpack.c.l.b16 %v522
    %v914 = vunpack.c.h.b16 %v522
    %v915 = vunpack.c.l.b16 %v523
    %v916 = vunpack.c.h.b16 %v523
    %v917 = vunpack.c.l.b16 %v524
    %v918 = vunpack.c.h.b16 %v524
    %v919 = vunpack.c.l.b16 %v525
    %v920 = vunpack.c.h.b16 %v525
    %v921 = vunpack.c.l.b16 %v526
    %v922 = vunpack.c.h.b16 %v526
    %v923 = vpack.c.b16 %v669, %v667
    %v924 = vpack.c.b16 %v670, %v668
    %v925 = vpack.c.b16 %v673, %v671
    %v926 = vpack.c.b16 %v674, %v672
    %v927 = vpack.c.b16 %v677, %v675
    %v928 = vpack.c.b16 %v678, %v676
    %v929 = vpack.c.b16 %v681, %v679
    %v930 = vpack.c.b16 %v682, %v680
    %v931 = vpack.c.b16 %v685, %v683
    %v932 = vpack.c.b16 %v686, %v684
    %v933 = vpack.c.b16 %v689, %v687
    %v934 = vpack.c.b16 %v690, %v688
    %v935 = vpack.c.b16 %v693, %v691
    %v936 = vpack.c.b16 %v694, %v692
    %v937 = vpack.c.b16 %v697, %v695
    %v938 = vpack.c.b16 %v698, %v696
    %v939 = vpack.c.b16 %v701, %v699
    %v940 = vpack.c.b16 %v702, %v700
    %v941 = vpack.c.b16 %v705, %v703
    %v942 = vpack.c.b16 %v706, %v704
    %v943 = vpack.c.b16 %v709, %v707
    %v944 = vpack.c.b16 %v710, %v708
    %v945 = vpack.c.b16 %v713, %v711
    %v946 = vpack.c.b16 %v714, %v712
    %v947 = vpack.c.b16 %v717, %v715
    %v948 = vpack.c.b16 %v718, %v716
    %v949 = vpack.c.b16 %v721, %v719
    %v950 = vpack.c.b16 %v722, %v720
    %v951 = vpack.c.b16 %v725, %v723
    %v952 = vpack.c.b16 %v726, %v724
    %v953 = vpack.c.b16 %v729, %v727
    %v954 = vpack.c.b16 %v730, %v728
    %v955 = vpack.c.b16 %v733, %v731
    %v956 = vpack.c.b16 %v734, %v732
    %v957 = vpack.c.b16 %v737, %v735
    %v958 = vpack.c.b16 %v738, %v736
    %v959 = vpack.c.b16 %v741, %v739
    %v960 = vpack.c.b16 %v742, %v740
    %v961 = vpack.c.b16 %v745, %v743
    %v962 = vpack.c.b16 %v746, %v744
    %v963 = vpack.c.b16 %v749, %v747
    %v964 = vpack.c.b16 %v750, %v748
    %v965 = vpack.c.b16 %v753, %v751
    %v966 = vpack.c.b16 %v754, %v752
    %v967 = vpack.c.b16 %v757, %v755
    %v968 = vpack.c.b16 %v758, %v756
    %v969 = vpack.c.b16 %v761, %v759
    %v970 = vpack.c.b16 %v762, %v760
    %v971 = vpack.c.b16 %v765, %v763
    %v972 = vpack.c.b16 %v766, %v764
    %v973 = vpack.c.b16 %v769, %v767
    %v974 = vpack.c.b16 %v770, %v768
    %v975 = vpack.c.b16 %v773, %v771
    %v976 = vpack.c.b16 %v774, %v772
    %v977 = vpack.c.b16 %v777, %v775
    %v978 = vpack.c.b16 %v778, %v776
    %v979 = vpack.c.b16 %v781, %v779
    %v980 = vpack.c.b16 %v782, %v780
    %v981 = vpack.c.b16 %v785, %v783
    %v982 = vpack.c.b16 %v786, %v784
    %v983 = vpack.c.b16 %v789, %v787
    %v984 = vpack.c.b16 %v790, %v788
    %v985 = vpack.c.b16 %v793, %v791
    %v986 = vpack.c.b16 %v794, %v792
    %v987 = vpack.c.b16 %v797, %v795
    %v988 = vpack.c.b16 %v798, %v796
    %v989 = vpack.c.b16 %v801, %v799
    %v990 = vpack.c.b16 %v802, %v800
    %v991 = vpack.c.b16 %v805, %v803
    %v992 = vpack.c.b16 %v806, %v804
    %v993 = vpack.c.b16 %v809, %v807
    %v994 = vpack.c.b16 %v810, %v808
    %v995 = vpack.c.b16 %v813, %v811
    %v996 = vpack.c.b16 %v814, %v812
    %v997 = vpack.c.b16 %v817, %v815
    %v998 = vpack.c.b16 %v818, %v816
    %v999 = vpack.c.b16 %v821, %v819
    %v1000 = vpack.c.b16 %v822, %v820
    %v1001 = vpack.c.b16 %v825, %v823
    %v1002 = vpack.c.b16 %v826, %v824
    %v1003 = vpack.c.b16 %v829, %v827
    %v1004 = vpack.c.b16 %v830, %v828
    %v1005 = vpack.c.b16 %v833, %v831
    %v1006 = vpack.c.b16 %v834, %v832
    %v1007 = vpack.c.b16 %v837, %v835
    %v1008 = vpack.c.b16 %v838, %v836
    %v1009 = vpack.c.b16 %v841, %v839
    %v1010 = vpack.c.b16 %v842, %v840
    %v1011 = vpack.c.b16 %v845, %v843
    %v1012 = vpack.c.b16 %v846, %v844
    %v1013 = vpack.c.b16 %v849, %v847
    %v1014 = vpack.c.b16 %v850, %v848
    %v1015 = vpack.c.b16 %v853, %v851
    %v1016 = vpack.c.b16 %v854, %v852
    %v1017 = vpack.c.b16 %v857, %v855
    %v1018 = vpack.c.b16 %v858, %v856
    %v1019 = vpack.c.b16 %v861, %v859
    %v1020 = vpack.c.b16 %v862, %v860
    %v1021 = vpack.c.b16 %v865, %v863
    %v1022 = vpack.c.b16 %v866, %v864
    %v1023 = vpack.c.b16 %v869, %v867
    %v1024 = vpack.c.b16 %v870, %v868
    %v1025 = vpack.c.b16 %v873, %v871
    %v1026 = vpack.c.b16 %v874, %v872
    %v1027 = vpack.c.b16 %v877, %v875
    %v1028 = vpack.c.b16 %v878, %v876
    %v1029 = vpack.c.b16 %v881, %v879
    %v1030 = vpack.c.b16 %v882, %v880
    %v1031 = vpack.c.b16 %v885, %v883
    %v1032 = vpack.c.b16 %v886, %v884
    %v1033 = vpack.c.b16 %v889, %v887
    %v1034 = vpack.c.b16 %v890, %v888
    %v1035 = vpack.c.b16 %v893, %v891
    %v1036 = vpack.c.b16 %v894, %v892
    %v1037 = vpack.c.b16 %v897, %v895
    %v1038 = vpack.c.b16 %v898, %v896
    %v1039 = vpack.c.b16 %v901, %v899
    %v1040 = vpack.c.b16 %v902, %v900
    %v1041 = vpack.c.b16 %v905, %v903
    %v1042 = vpack.c.b16 %v906, %v904
    %v1043 = vpack.c.b16 %v909, %v907
    %v1044 = vpack.c.b16 %v910, %v908
    %v1045 = vpack.c.b16 %v913, %v911
    %v1046 = vpack.c.b16 %v914, %v912
    %v1047 = vpack.c.b16 %v917, %v915
    %v1048 = vpack.c.b16 %v918, %v916
    %v1049 = vpack.c.b16 %v921, %v919
    %v1050 = vpack.c.b16 %v922, %v920
    %1179 = vmatprep.subr.bf16.mxu0 %v924
    %1180 = vmatpush1.bf16.msra.mxu0 %v923
    %1181 = vmatprep.subr.bf16.mxu0 %v926
    %1182 = vmatpush1.bf16.msra.mxu0 %v925
    %1183 = vmatprep.subr.bf16.mxu0 %v928
    %1184 = vmatpush1.bf16.msra.mxu0 %v927
    %1185 = vmatprep.subr.bf16.mxu0 %v930
    %1186 = vmatpush1.bf16.msra.mxu0 %v929
    %1187 = vmatprep.subr.bf16.mxu0 %v932
    %1188 = vmatpush1.bf16.msra.mxu0 %v931
    %1189 = vmatprep.subr.bf16.mxu0 %v934
    %1190 = vmatpush1.bf16.msra.mxu0 %v933
    %1191 = vmatprep.subr.bf16.mxu0 %v936
    %1192 = vmatpush1.bf16.msra.mxu0 %v935
    %1193 = vmatprep.subr.bf16.mxu0 %v938
    %1194 = vmatpush1.bf16.msra.mxu0 %v937
    %1195 = vmatprep.subr.bf16.mxu0 %v940
    %1196 = vmatpush1.bf16.msra.mxu0 %v939
    %1197 = vmatprep.subr.bf16.mxu0 %v942
    %1198 = vmatpush1.bf16.msra.mxu0 %v941
    %1199 = vmatprep.subr.bf16.mxu0 %v944
    %1200 = vmatpush1.bf16.msra.mxu0 %v943
    %1201 = vmatprep.subr.bf16.mxu0 %v946
    %1202 = vmatpush1.bf16.msra.mxu0 %v945
    %1203 = vmatprep.subr.bf16.mxu0 %v948
    %1204 = vmatpush1.bf16.msra.mxu0 %v947
    %1205 = vmatprep.subr.bf16.mxu0 %v950
    %1206 = vmatpush1.bf16.msra.mxu0 %v949
    %1207 = vmatprep.subr.bf16.mxu0 %v952
    %1208 = vmatpush1.bf16.msra.mxu0 %v951
    %1209 = vmatprep.subr.bf16.mxu0 %v954
    %1210 = vmatpush1.bf16.msra.mxu0 %v953
    %1211 = vmatprep.mubr.bf16.mxu0 %v392
    %1212 = vmatmul.mubr.bf16.gmra.mrb[0].mxu0 %v391
    %v1213 = vpop.f32.mrb[0].mxu0
    %v1214 = vadd.f32 %v532, %v1213
    %v1215 = vpop.f32.mrb[0].mxu0
    %v1216 = vadd.f32 %v536, %v1215
    %v1217 = vpop.f32.mrb[0].mxu0
    %v1218 = vpop.f32.mrb[0].mxu0
    %1219 = vdwg.mxu0
    %1220 = vmatprep.subr.bf16.mxu0 %v956
    %1221 = vmatpush1.bf16.msra.mxu0 %v955
    %1222 = vmatprep.subr.bf16.mxu0 %v958
    %1223 = vmatpush1.bf16.msra.mxu0 %v957
    %1224 = vmatprep.subr.bf16.mxu0 %v960
    %1225 = vmatpush1.bf16.msra.mxu0 %v959
    %1226 = vmatprep.subr.bf16.mxu0 %v962
    %1227 = vmatpush1.bf16.msra.mxu0 %v961
    %1228 = vmatprep.subr.bf16.mxu0 %v964
    %1229 = vmatpush1.bf16.msra.mxu0 %v963
    %1230 = vmatprep.subr.bf16.mxu0 %v966
    %1231 = vmatpush1.bf16.msra.mxu0 %v965
    %1232 = vmatprep.subr.bf16.mxu0 %v968
    %1233 = vmatpush1.bf16.msra.mxu0 %v967
    %1234 = vmatprep.subr.bf16.mxu0 %v970
    %1235 = vmatpush1.bf16.msra.mxu0 %v969
    %1236 = vmatprep.subr.bf16.mxu0 %v972
    %1237 = vmatpush1.bf16.msra.mxu0 %v971
    %1238 = vmatprep.subr.bf16.mxu0 %v974
    %1239 = vmatpush1.bf16.msra.mxu0 %v973
    %1240 = vmatprep.subr.bf16.mxu0 %v976
    %1241 = vmatpush1.bf16.msra.mxu0 %v975
    %1242 = vmatprep.subr.bf16.mxu0 %v978
    %1243 = vmatpush1.bf16.msra.mxu0 %v977
    %1244 = vmatprep.subr.bf16.mxu0 %v980
    %1245 = vmatpush1.bf16.msra.mxu0 %v979
    %1246 = vmatprep.subr.bf16.mxu0 %v982
    %1247 = vmatpush1.bf16.msra.mxu0 %v981
    %1248 = vmatprep.subr.bf16.mxu0 %v984
    %1249 = vmatpush1.bf16.msra.mxu0 %v983
    %1250 = vmatprep.subr.bf16.mxu0 %v986
    %1251 = vmatpush1.bf16.msra.mxu0 %v985
    %1252 = vmatprep.mubr.bf16.mxu0 %v394
    %1253 = vmatmul.mubr.bf16.gmra.mrb[0].mxu0 %v393
    %v1254 = vpop.f32.mrb[0].mxu0
    %v1255 = vadd.f32 %v1214, %v1254
    %v1256 = vpop.f32.mrb[0].mxu0
    %v1257 = vadd.f32 %v1216, %v1256
    %v1258 = vpop.f32.mrb[0].mxu0
    %v1259 = vpop.f32.mrb[0].mxu0
    %1260 = vdwg.mxu0
    %1261 = vmatprep.subr.bf16.mxu0 %v988
    %1262 = vmatpush1.bf16.msra.mxu0 %v987
    %1263 = vmatprep.subr.bf16.mxu0 %v990
    %1264 = vmatpush1.bf16.msra.mxu0 %v989
    %1265 = vmatprep.subr.bf16.mxu0 %v992
    %1266 = vmatpush1.bf16.msra.mxu0 %v991
    %1267 = vmatprep.subr.bf16.mxu0 %v994
    %1268 = vmatpush1.bf16.msra.mxu0 %v993
    %1269 = vmatprep.subr.bf16.mxu0 %v996
    %1270 = vmatpush1.bf16.msra.mxu0 %v995
    %1271 = vmatprep.subr.bf16.mxu0 %v998
    %1272 = vmatpush1.bf16.msra.mxu0 %v997
    %1273 = vmatprep.subr.bf16.mxu0 %v1000
    %1274 = vmatpush1.bf16.msra.mxu0 %v999
    %1275 = vmatprep.subr.bf16.mxu0 %v1002
    %1276 = vmatpush1.bf16.msra.mxu0 %v1001
    %1277 = vmatprep.subr.bf16.mxu0 %v1004
    %1278 = vmatpush1.bf16.msra.mxu0 %v1003
    %1279 = vmatprep.subr.bf16.mxu0 %v1006
    %1280 = vmatpush1.bf16.msra.mxu0 %v1005
    %1281 = vmatprep.subr.bf16.mxu0 %v1008
    %1282 = vmatpush1.bf16.msra.mxu0 %v1007
    %1283 = vmatprep.subr.bf16.mxu0 %v1010
    %1284 = vmatpush1.bf16.msra.mxu0 %v1009
    %1285 = vmatprep.subr.bf16.mxu0 %v1012
    %1286 = vmatpush1.bf16.msra.mxu0 %v1011
    %1287 = vmatprep.subr.bf16.mxu0 %v1014
    %1288 = vmatpush1.bf16.msra.mxu0 %v1013
    %1289 = vmatprep.subr.bf16.mxu0 %v1016
    %1290 = vmatpush1.bf16.msra.mxu0 %v1015
    %1291 = vmatprep.subr.bf16.mxu0 %v1018
    %1292 = vmatpush1.bf16.msra.mxu0 %v1017
    %1293 = vmatprep.mubr.bf16.mxu0 %v396
    %1294 = vmatmul.mubr.bf16.gmra.mrb[0].mxu0 %v395
    %v1295 = vpop.f32.mrb[0].mxu0
    %v1296 = vadd.f32 %v1255, %v1295
    %v1297 = vpop.f32.mrb[0].mxu0
    %v1298 = vadd.f32 %v1257, %v1297
    %v1299 = vpop.f32.mrb[0].mxu0
    %v1300 = vpop.f32.mrb[0].mxu0
    %1301 = vdwg.mxu0
    %1302 = vmatprep.subr.bf16.mxu0 %v1020
    %1303 = vmatpush1.bf16.msra.mxu0 %v1019
    %1304 = vmatprep.subr.bf16.mxu0 %v1022
    %1305 = vmatpush1.bf16.msra.mxu0 %v1021
    %1306 = vmatprep.subr.bf16.mxu0 %v1024
    %1307 = vmatpush1.bf16.msra.mxu0 %v1023
    %1308 = vmatprep.subr.bf16.mxu0 %v1026
    %1309 = vmatpush1.bf16.msra.mxu0 %v1025
    %1310 = vmatprep.subr.bf16.mxu0 %v1028
    %1311 = vmatpush1.bf16.msra.mxu0 %v1027
    %1312 = vmatprep.subr.bf16.mxu0 %v1030
    %1313 = vmatpush1.bf16.msra.mxu0 %v1029
    %1314 = vmatprep.subr.bf16.mxu0 %v1032
    %1315 = vmatpush1.bf16.msra.mxu0 %v1031
    %1316 = vmatprep.subr.bf16.mxu0 %v1034
    %1317 = vmatpush1.bf16.msra.mxu0 %v1033
    %1318 = vmatprep.subr.bf16.mxu0 %v1036
    %1319 = vmatpush1.bf16.msra.mxu0 %v1035
    %1320 = vmatprep.subr.bf16.mxu0 %v1038
    %1321 = vmatpush1.bf16.msra.mxu0 %v1037
    %1322 = vmatprep.subr.bf16.mxu0 %v1040
    %1323 = vmatpush1.bf16.msra.mxu0 %v1039
    %1324 = vmatprep.subr.bf16.mxu0 %v1042
    %1325 = vmatpush1.bf16.msra.mxu0 %v1041
    %1326 = vmatprep.subr.bf16.mxu0 %v1044
    %1327 = vmatpush1.bf16.msra.mxu0 %v1043
    %1328 = vmatprep.subr.bf16.mxu0 %v1046
    %1329 = vmatpush1.bf16.msra.mxu0 %v1045
    %1330 = vmatprep.subr.bf16.mxu0 %v1048
    %1331 = vmatpush1.bf16.msra.mxu0 %v1047
    %1332 = vmatprep.subr.bf16.mxu0 %v1050
    %1333 = vmatpush1.bf16.msra.mxu0 %v1049
    %1334 = vmatprep.mubr.bf16.mxu0 %v398
    %1335 = vmatmul.mubr.bf16.gmra.mrb[0].mxu0 %v397
    %v1336 = vpop.f32.mrb[0].mxu0
    %v1337 = vadd.f32 %v1296, %v1336
    %v1338 = vpop.f32.mrb[0].mxu0
    %v1339 = vadd.f32 %v1298, %v1338
    %v1340 = vpop.f32.mrb[0].mxu0
    %v1341 = vpop.f32.mrb[0].mxu0
    %1342 = vdwg.mxu0
    %v1343 = vmul.f32 %v1337, 0.1
    %v1344 = vmul.f32 %v1339, 0.1
    %v1345 = vmax.f32 %v1337, %v1343
    %v1346 = vmax.f32 %v1339, %v1344
    %v1347 = vpack.c.bf16 %v1345, %v1345
    %v1348 = vpack.c.bf16 %v1346, %v1346
    %v1349 = vld [vmem:[%s5] sm:$0xf]
    %v1350 = vld [vmem:[%s5 + $0x4] sm:$0xf]
    %v1351 = vld [vmem:[%s5 + $0x8] sm:$0xf]
    %v1352 = vld [vmem:[%s5 + $0xc] sm:$0xf]
    %v1353 = vld [vmem:[%s5 + $0x10] sm:$0xf]
    %v1354 = vld [vmem:[%s5 + $0x14] sm:$0xf]
    %v1355 = vld [vmem:[%s5 + $0x18] sm:$0xf]
    %v1356 = vld [vmem:[%s5 + $0x1c] sm:$0xf]
    %v1357 = vld [vmem:[%s5 + $0x20] sm:$0xf]
    %v1358 = vld [vmem:[%s5 + $0x24] sm:$0xf]
    %v1359 = vld [vmem:[%s5 + $0x28] sm:$0xf]
    %v1360 = vld [vmem:[%s5 + $0x2c] sm:$0xf]
    %v1361 = vld [vmem:[%s5 + $0x30] sm:$0xf]
    %v1362 = vld [vmem:[%s5 + $0x34] sm:$0xf]
    %v1363 = vld [vmem:[%s5 + $0x38] sm:$0xf]
    %v1364 = vld [vmem:[%s5 + $0x3c] sm:$0xf]
    %v1365 = vld [vmem:[%s5 + $0x40] sm:$0xf]
    %v1366 = vld [vmem:[%s5 + $0x44] sm:$0xf]
    %v1367 = vld [vmem:[%s5 + $0x48] sm:$0xf]
    %v1368 = vld [vmem:[%s5 + $0x4c] sm:$0xf]
    %v1369 = vld [vmem:[%s5 + $0x50] sm:$0xf]
    %v1370 = vld [vmem:[%s5 + $0x54] sm:$0xf]
    %v1371 = vld [vmem:[%s5 + $0x58] sm:$0xf]
    %v1372 = vld [vmem:[%s5 + $0x5c] sm:$0xf]
    %v1373 = vld [vmem:[%s5 + $0x60] sm:$0xf]
    %v1374 = vld [vmem:[%s5 + $0x64] sm:$0xf]
    %v1375 = vld [vmem:[%s5 + $0x68] sm:$0xf]
    %v1376 = vld [vmem:[%s5 + $0x6c] sm:$0xf]
    %v1377 = vld [vmem:[%s5 + $0x70] sm:$0xf]
    %v1378 = vld [vmem:[%s5 + $0x74] sm:$0xf]
    %v1379 = vld [vmem:[%s5 + $0x78] sm:$0xf]
    %v1380 = vld [vmem:[%s5 + $0x7c] sm:$0xf]
    %v1381 = vld [vmem:[%s6] sm:$0x1]
    %v1383 = vlaneseq
    %v1384 = vshrl.u32 %v1383, 7
    %v1385 = vsub.s32 0, %v1384
    %v1386 = vrot.slane %v1381, %v1385
    %v1420 = vunpack.c.l.b16 %v1349
    %v1421 = vunpack.c.l.b16 %v1350
    %v1422 = vunpack.c.l.b16 %v1351
    %v1423 = vunpack.c.l.b16 %v1352
    %v1424 = vunpack.c.l.b16 %v1353
    %v1425 = vunpack.c.l.b16 %v1354
    %v1426 = vunpack.c.l.b16 %v1355
    %v1427 = vunpack.c.l.b16 %v1356
    %v1428 = vunpack.c.l.b16 %v1357
    %v1429 = vunpack.c.l.b16 %v1358
    %v1430 = vunpack.c.l.b16 %v1359
    %v1431 = vunpack.c.l.b16 %v1360
    %v1432 = vunpack.c.l.b16 %v1361
    %v1433 = vunpack.c.l.b16 %v1362
    %v1434 = vunpack.c.l.b16 %v1363
    %v1435 = vunpack.c.l.b16 %v1364
    %v1436 = vunpack.c.l.b16 %v1365
    %v1437 = vunpack.c.l.b16 %v1366
    %v1438 = vunpack.c.l.b16 %v1367
    %v1439 = vunpack.c.l.b16 %v1368
    %v1440 = vunpack.c.l.b16 %v1369
    %v1441 = vunpack.c.l.b16 %v1370
    %v1442 = vunpack.c.l.b16 %v1371
    %v1443 = vunpack.c.l.b16 %v1372
    %v1444 = vunpack.c.l.b16 %v1373
    %v1445 = vunpack.c.l.b16 %v1374
    %v1446 = vunpack.c.l.b16 %v1375
    %v1447 = vunpack.c.l.b16 %v1376
    %v1448 = vunpack.c.l.b16 %v1377
    %v1449 = vunpack.c.l.b16 %v1378
    %v1450 = vunpack.c.l.b16 %v1379
    %v1451 = vunpack.c.l.b16 %v1380
    %v1452 = vpack.c.b16 %v1421, %v1420
    %v1453 = vpack.c.b16 %v1423, %v1422
    %v1454 = vpack.c.b16 %v1425, %v1424
    %v1455 = vpack.c.b16 %v1427, %v1426
    %v1456 = vpack.c.b16 %v1429, %v1428
    %v1457 = vpack.c.b16 %v1431, %v1430
    %v1458 = vpack.c.b16 %v1433, %v1432
    %v1459 = vpack.c.b16 %v1435, %v1434
    %v1460 = vpack.c.b16 %v1437, %v1436
    %v1461 = vpack.c.b16 %v1439, %v1438
    %v1462 = vpack.c.b16 %v1441, %v1440
    %v1463 = vpack.c.b16 %v1443, %v1442
    %v1464 = vpack.c.b16 %v1445, %v1444
    %v1465 = vpack.c.b16 %v1447, %v1446
    %v1466 = vpack.c.b16 %v1449, %v1448
    %v1467 = vpack.c.b16 %v1451, %v1450
    %1484 = vmatprep.subr.bf16.mxu0 0
    %1485 = vmatpush1.bf16.msra.mxu0 %v1452
    %1486 = vmatprep.subr.bf16.mxu0 0
    %1487 = vmatpush1.bf16.msra.mxu0 %v1453
    %1488 = vmatprep.subr.bf16.mxu0 0
    %1489 = vmatpush1.bf16.msra.mxu0 %v1454
    %1490 = vmatprep.subr.bf16.mxu0 0
    %1491 = vmatpush1.bf16.msra.mxu0 %v1455
    %1492 = vmatprep.subr.bf16.mxu0 0
    %1493 = vmatpush1.bf16.msra.mxu0 %v1456
    %1494 = vmatprep.subr.bf16.mxu0 0
    %1495 = vmatpush1.bf16.msra.mxu0 %v1457
    %1496 = vmatprep.subr.bf16.mxu0 0
    %1497 = vmatpush1.bf16.msra.mxu0 %v1458
    %1498 = vmatprep.subr.bf16.mxu0 0
    %1499 = vmatpush1.bf16.msra.mxu0 %v1459
    %1500 = vmatprep.subr.bf16.mxu0 0
    %1501 = vmatpush1.bf16.msra.mxu0 %v1460
    %1502 = vmatprep.subr.bf16.mxu0 0
    %1503 = vmatpush1.bf16.msra.mxu0 %v1461
    %1504 = vmatprep.subr.bf16.mxu0 0
    %1505 = vmatpush1.bf16.msra.mxu0 %v1462
    %1506 = vmatprep.subr.bf16.mxu0 0
    %1507 = vmatpush1.bf16.msra.mxu0 %v1463
    %1508 = vmatprep.subr.bf16.mxu0 0
    %1509 = vmatpush1.bf16.msra.mxu0 %v1464
    %1510 = vmatprep.subr.bf16.mxu0 0
    %1511 = vmatpush1.bf16.msra.mxu0 %v1465
    %1512 = vmatprep.subr.bf16.mxu0 0
    %1513 = vmatpush1.bf16.msra.mxu0 %v1466
    %1514 = vmatprep.subr.bf16.mxu0 0
    %1515 = vmatpush1.bf16.msra.mxu0 %v1467
    %1516 = vmatprep.mubr.bf16.mxu0 %v1348
    %1517 = vmatmul.mubr.bf16.gmra.mrb[0].mxu0 %v1347
    %v1518 = vpop.f32.mrb[0].mxu0
    %v1519 = vadd.f32 %v1386, %v1518
    %v1520 = vpop.f32.mrb[0].mxu0
    %v1521 = vpop.f32.mrb[0].mxu0
    %v1522 = vpop.f32.mrb[0].mxu0
    %1523 = vdwg.mxu0
    %v1524 = vmul.f32 %v1519, 0.1
    %v1525 = vmax.f32 %v1519, %v1524
    %v1526 = vpack.c.bf16 %v1525, %v1525
    %v1527 = vld [vmem:[%s7] sm:$0xf]
    %v1528 = vld [vmem:[%s7 + $0x4] sm:$0xf]
    %v1529 = vld [vmem:[%s7 + $0x8] sm:$0xf]
    %v1530 = vld [vmem:[%s7 + $0xc] sm:$0xf]
    %v1531 = vld [vmem:[%s7 + $0x10] sm:$0xf]
    %v1532 = vld [vmem:[%s7 + $0x14] sm:$0xf]
    %v1533 = vld [vmem:[%s7 + $0x18] sm:$0xf]
    %v1534 = vld [vmem:[%s7 + $0x1c] sm:$0xf]
    %v1535 = vld [vmem:[%s8] sm:$0x1]
    %v1537 = vlaneseq
    %v1538 = vshrl.u32 %v1537, 7
    %v1539 = vsub.s32 0, %v1538
    %v1540 = vrot.slane %v1535, %v1539
    %v1550 = vunpack.c.l.b16 %v1527
    %v1551 = vunpack.c.l.b16 %v1528
    %v1552 = vunpack.c.l.b16 %v1529
    %v1553 = vunpack.c.l.b16 %v1530
    %v1554 = vunpack.c.l.b16 %v1531
    %v1555 = vunpack.c.l.b16 %v1532
    %v1556 = vunpack.c.l.b16 %v1533
    %v1557 = vunpack.c.l.b16 %v1534
    %v1558 = vpack.c.b16 %v1551, %v1550
    %v1559 = vpack.c.b16 %v1553, %v1552
    %v1560 = vpack.c.b16 %v1555, %v1554
    %v1561 = vpack.c.b16 %v1557, %v1556
    %vm1566 = vcmask 523264
    %v1568 = vsel %vm1566, %v1526, 0
    %1570 = vmatprep.subr.bf16.mxu0 0
    %1571 = vmatpush1.bf16.msra.mxu0 %v1558
    %1572 = vmatprep.subr.bf16.mxu0 0
    %1573 = vmatpush1.bf16.msra.mxu0 %v1559
    %1574 = vmatprep.subr.bf16.mxu0 0
    %1575 = vmatpush1.bf16.msra.mxu0 %v1560
    %1576 = vmatprep.subr.bf16.mxu0 0
    %1577 = vmatpush1.bf16.msra.mxu0 %v1561
    %1578 = vmatprep.subr.bf16.mxu0 0
    %1579 = vmatpush1.bf16.msra.mxu0 0
    %1580 = vmatprep.subr.bf16.mxu0 0
    %1581 = vmatpush1.bf16.msra.mxu0 0
    %1582 = vmatprep.subr.bf16.mxu0 0
    %1583 = vmatpush1.bf16.msra.mxu0 0
    %1584 = vmatprep.subr.bf16.mxu0 0
    %1585 = vmatpush1.bf16.msra.mxu0 0
    %1586 = vmatprep.subr.bf16.mxu0 0
    %1587 = vmatpush1.bf16.msra.mxu0 0
    %1588 = vmatprep.subr.bf16.mxu0 0
    %1589 = vmatpush1.bf16.msra.mxu0 0
    %1590 = vmatprep.subr.bf16.mxu0 0
    %1591 = vmatpush1.bf16.msra.mxu0 0
    %1592 = vmatprep.subr.bf16.mxu0 0
    %1593 = vmatpush1.bf16.msra.mxu0 0
    %1594 = vmatprep.subr.bf16.mxu0 0
    %1595 = vmatpush1.bf16.msra.mxu0 0
    %1596 = vmatprep.subr.bf16.mxu0 0
    %1597 = vmatpush1.bf16.msra.mxu0 0
    %1598 = vmatprep.subr.bf16.mxu0 0
    %1599 = vmatpush1.bf16.msra.mxu0 0
    %1600 = vmatprep.subr.bf16.mxu0 0
    %1601 = vmatpush1.bf16.msra.mxu0 0
    %1602 = vmatprep.mubr.bf16.mxu0 0
    %1603 = vmatmul.mubr.bf16.gmra.mrb[0].mxu0 %v1568
    %v1604 = vpop.f32.mrb[0].mxu0
    %v1605 = vadd.f32 %v1540, %v1604
    %v1606 = vpop.f32.mrb[0].mxu0
    %v1607 = vpop.f32.mrb[0].mxu0
    %v1608 = vpop.f32.mrb[0].mxu0
    %1609 = vdwg.mxu0
    %vm1610 = vcmask 15360
    %1611 = vst.msk [vmem:[%s9] sm:$0xff] %vm1610, %v1605
    // Predicated region
    $region42: #{tpu_custom_call.1} parent=1 // pred_check
      _
    $region43: #{tpu_custom_call.1} parent=1 // pred_check_branch
      %1613 = sbr.rel (0) target = $region45
    $region44: #{tpu_custom_call.1} parent=1 // pred_region
      _
    $region45: #{tpu_custom_call.1} parent=1 // pred_fallthru
      _
    // Predicated region
    $region46: #{tpu_custom_call.1} parent=1 // pred_check
      _
    $region47: #{tpu_custom_call.1} parent=1 // pred_check_branch
      %1615 = sbr.rel (0) target = $region49
    $region48: #{tpu_custom_call.1} parent=1 // pred_region
      _
    $region49: #{tpu_custom_call.1} parent=1 // pred_fallthru
      _
    %1616 = vsyncpa [#allocation3], 1

</llo_original>
